<compile_context>
chip_gen: v7x
topology: tpu7x:2x2x1
jax: 0.10.0
libtpu: 0.0.40
codegen_flags: <defaults>
</compile_context>

<pallas_src>
import jax
import jax.numpy as jnp
import numpy as np
from jax import lax
from jax.experimental import pallas as pl
from jax.experimental.pallas import tpu as pltpu

KH = KW = 3          # kernel_size=3
NEG_SLOPE = 0.01     # nn.LeakyReLU default
BN_EPS = 1e-5        # nn.BatchNorm2d default


def _conv_bn_lrelu_kernel(x_ref, w_ref, gamma_ref, beta_ref, o_ref, xp_ref):
    # x_ref:     (N, H, W, Cin)       NHWC input, whole batch in VMEM
    # w_ref:     (KH*KW*Cin, Cout)    im2col-folded weights, row = (kh*KW+kw)*Cin + cin
    # gamma_ref: (1, Cout)            BN weight
    # beta_ref:  (1, Cout)            BN bias
    # o_ref:     (N, Cout, H*W)       NCHW-ordered, lane-dense output
    # xp_ref:    (N, H+2, W+2, Cin)   VMEM scratch holding the zero-padded input
    N, H, W, Cin = x_ref.shape
    Cout = o_ref.shape[1]
    HW = H * W

    # ---- zero padding (padding=1) done in VMEM; no wrapper jnp.pad ----
    xp_ref[...] = jnp.zeros_like(xp_ref)
    xp_ref[:, 1:H + 1, 1:W + 1, :] = x_ref[...]

    # ---- im2col patch matrix (N*H*W, KH*KW*Cin), leading-dim-only reshapes ----
    rows = []
    for n in range(N):
        taps = []
        for kh in range(KH):
            for kw in range(KW):
                taps.append(xp_ref[n, kh:kh + H, kw:kw + W, :].reshape(HW, Cin))
        rows.append(jnp.concatenate(taps, axis=1))        # (H*W, KH*KW*Cin)
    patches = jnp.concatenate(rows, axis=0)               # (N*H*W, KH*KW*Cin)

    # ---- single MXU matmul, K folded to KH*KW*Cin, f32 accumulation ----
    y = jnp.dot(patches, w_ref[...],
                preferred_element_type=jnp.float32)       # (N*H*W, Cout)

    # ---- training-mode BatchNorm: per-channel batch mean / biased variance ----
    cnt = float(N * HW)
    mean = jnp.sum(y, axis=0, keepdims=True) / cnt                  # (1, Cout)
    var = jnp.sum(y * y, axis=0, keepdims=True) / cnt - mean * mean  # (1, Cout)
    scale = gamma_ref[...] * lax.rsqrt(var + BN_EPS)                # (1, Cout)
    shift = beta_ref[...] - mean * scale

    # ---- BN affine + LeakyReLU, then lane-dense NCHW-ordered stores ----
    z = y * scale + shift
    z = jnp.where(z > 0, z, NEG_SLOPE * z)
    zt = z.T.astype(o_ref.dtype)                          # (Cout, N*H*W), via XLU
    for n in range(N):
        o_ref[n] = zt[:, n * HW:(n + 1) * HW]             # (Cout, H*W) slab, unmasked vst


def conv_block_forward(x_nchw, w_oihw, gamma, beta):
    """Forward of the conv block. x_nchw: (N, Cin, H, W); returns (N, Cout, H, W)."""
    N, Cin, H, W = x_nchw.shape
    Cout = w_oihw.shape[0]
    HW = H * W
    K = KH * KW * Cin

    # NCHW -> NHWC so the channel (contraction) dim is minor for im2col.
    x_nhwc = jnp.transpose(x_nchw, (0, 2, 3, 1)).astype(jnp.float32)
    # (Cout, Cin, KH, KW) -> (KH*KW*Cin, Cout), row index = (kh*KW + kw)*Cin + cin.
    w_cat = jnp.transpose(w_oihw, (2, 3, 1, 0)).reshape(K, Cout).astype(jnp.float32)
    g = gamma.reshape(1, Cout).astype(jnp.float32)
    b = beta.reshape(1, Cout).astype(jnp.float32)

    out = pl.pallas_call(
        _conv_bn_lrelu_kernel,
        out_shape=jax.ShapeDtypeStruct((N, Cout, HW), jnp.float32),
        grid_spec=pltpu.PrefetchScalarGridSpec(
            num_scalar_prefetch=0,
            grid=(1,),
            in_specs=[
                pl.BlockSpec((N, H, W, Cin), lambda i: (0, 0, 0, 0)),
                pl.BlockSpec((K, Cout), lambda i: (0, 0)),
                pl.BlockSpec((1, Cout), lambda i: (0, 0)),
                pl.BlockSpec((1, Cout), lambda i: (0, 0)),
            ],
            out_specs=pl.BlockSpec((N, Cout, HW), lambda i: (0, 0, 0)),
            scratch_shapes=[pltpu.VMEM((N, H + 2, W + 2, Cin), jnp.float32)],
        ),
        compiler_params=pltpu.CompilerParams(dimension_semantics=("arbitrary",)),
    )(x_nhwc, w_cat, g, b)

    # (N, Cout, H*W) is already NCHW element order -> free reshape, no transpose.
    return out.reshape(N, Cout, H, W).astype(x_nchw.dtype)


def _reference(x_nchw, w_oihw, gamma, beta):
    """Pure-JAX reference matching PyTorch Conv2d + BatchNorm2d(train) + LeakyReLU."""
    y = lax.conv_general_dilated(
        x_nchw.astype(jnp.float32), w_oihw.astype(jnp.float32),
        window_strides=(1, 1), padding=((1, 1), (1, 1)),
        dimension_numbers=("NCHW", "OIHW", "NCHW"))
    mean = jnp.mean(y, axis=(0, 2, 3), keepdims=True)
    var = jnp.mean((y - mean) ** 2, axis=(0, 2, 3), keepdims=True)  # biased
    yhat = (y - mean) / jnp.sqrt(var + BN_EPS)
    z = yhat * gamma.reshape(1, -1, 1, 1) + beta.reshape(1, -1, 1, 1)
    return jnp.where(z > 0, z, NEG_SLOPE * z)


if __name__ == "__main__":
    N, CIN, COUT, H, W = 2, 4, 8, 16, 16

    key = jax.random.PRNGKey(0)
    kx, kw = jax.random.split(key)
    x = jax.random.normal(kx, (N, CIN, H, W), dtype=jnp.float32)
    # Conv2d weight (Cout, Cin, KH, KW), bias=False.
    w = 0.1 * jax.random.normal(kw, (COUT, CIN, KH, KW), dtype=jnp.float32)
    # BatchNorm2d default init: weight=1, bias=0.
    gamma = jnp.ones((COUT,), dtype=jnp.float32)
    beta = jnp.zeros((COUT,), dtype=jnp.float32)

    out = conv_block_forward(x, w, gamma, beta)
    out = jax.block_until_ready(out)

    ref = jax.block_until_ready(_reference(x, w, gamma, beta))
    np.testing.assert_allclose(np.asarray(out), np.asarray(ref), rtol=1e-4, atol=1e-4)

    print("KERNEL_OK")
</pallas_src>

<mosaic_0001>
module attributes {stable_mosaic.version = 11 : i64} {
  func.func @_conv_bn_lrelu_kernel(%arg0: i32, %arg1: memref<2x16x16x4xf32, #tpu.memory_space<vmem>>, %arg2: memref<36x8xf32, #tpu.memory_space<vmem>>, %arg3: memref<1x8xf32, #tpu.memory_space<vmem>>, %arg4: memref<1x8xf32, #tpu.memory_space<vmem>>, %arg5: memref<2x8x256xf32, #tpu.memory_space<vmem>>, %arg6: memref<2x18x18x4xf32, #tpu.memory_space<vmem>>) attributes {dimension_semantics = [#tpu.dimension_semantics<arbitrary>], iteration_bounds = array<i64: 1>, scalar_prefetch = 0 : i64, scratch_operands = 1 : i64, tpu.core_type = #tpu.core_type<tc>, window_params = [{pipeline_mode = #tpu.pipeline_mode<synchronous>, transform_indices = @transform_0, window_bounds = array<i64: 2, 16, 16, 4>}, {pipeline_mode = #tpu.pipeline_mode<synchronous>, transform_indices = @transform_1, window_bounds = array<i64: 36, 8>}, {pipeline_mode = #tpu.pipeline_mode<synchronous>, transform_indices = @transform_2, window_bounds = array<i64: 1, 8>}, {pipeline_mode = #tpu.pipeline_mode<synchronous>, transform_indices = @transform_3, window_bounds = array<i64: 1, 8>}, {pipeline_mode = #tpu.pipeline_mode<synchronous>, transform_indices = @transform_4, window_bounds = array<i64: 2, 8, 256>}]} {
    %cst = arith.constant 0.000000e+00 : f32
    %0 = vector.broadcast %cst : f32 to vector<2x18x18x4xf32>
    %c0 = arith.constant 0 : index
    %c0_0 = arith.constant 0 : index
    %c0_1 = arith.constant 0 : index
    %c0_2 = arith.constant 0 : index
    %1 = vector.load %arg6[%c0, %c0_0, %c0_1, %c0_2] : memref<2x18x18x4xf32, #tpu.memory_space<vmem>>, vector<2x18x18x4xf32>
    tpu.vector_store %arg6[%c0, %c0_0, %c0_1, %c0_2], %0 {strides = array<i32>} : memref<2x18x18x4xf32, #tpu.memory_space<vmem>>, vector<2x18x18x4xf32>,
    %c0_3 = arith.constant 0 : index
    %c0_4 = arith.constant 0 : index
    %c0_5 = arith.constant 0 : index
    %c0_6 = arith.constant 0 : index
    %2 = vector.load %arg1[%c0_3, %c0_4, %c0_5, %c0_6] : memref<2x16x16x4xf32, #tpu.memory_space<vmem>>, vector<2x16x16x4xf32>
    %c0_7 = arith.constant 0 : index
    %c1 = arith.constant 1 : index
    %c1_8 = arith.constant 1 : index
    %c0_9 = arith.constant 0 : index
    %3 = vector.load %arg6[%c0_7, %c1, %c1_8, %c0_9] : memref<2x18x18x4xf32, #tpu.memory_space<vmem>>, vector<2x16x16x4xf32>
    tpu.vector_store %arg6[%c0_7, %c1, %c1_8, %c0_9], %2 {strides = array<i32>} : memref<2x18x18x4xf32, #tpu.memory_space<vmem>>, vector<2x16x16x4xf32>,
    %c0_10 = arith.constant 0 : index
    %c0_11 = arith.constant 0 : index
    %c0_12 = arith.constant 0 : index
    %c0_13 = arith.constant 0 : index
    %4 = vector.load %arg6[%c0_10, %c0_11, %c0_12, %c0_13] : memref<2x18x18x4xf32, #tpu.memory_space<vmem>>, vector<1x16x16x4xf32>
    %5 = vector.shape_cast %4 : vector<1x16x16x4xf32> to vector<16x16x4xf32>
    %6 = vector.shape_cast %5 : vector<16x16x4xf32> to vector<256x4xf32>
    %c0_14 = arith.constant 0 : index
    %c0_15 = arith.constant 0 : index
    %c1_16 = arith.constant 1 : index
    %c0_17 = arith.constant 0 : index
    %7 = vector.load %arg6[%c0_14, %c0_15, %c1_16, %c0_17] : memref<2x18x18x4xf32, #tpu.memory_space<vmem>>, vector<1x16x16x4xf32>
    %8 = vector.shape_cast %7 : vector<1x16x16x4xf32> to vector<16x16x4xf32>
    %9 = vector.shape_cast %8 : vector<16x16x4xf32> to vector<256x4xf32>
    %c0_18 = arith.constant 0 : index
    %c0_19 = arith.constant 0 : index
    %c2 = arith.constant 2 : index
    %c0_20 = arith.constant 0 : index
    %10 = vector.load %arg6[%c0_18, %c0_19, %c2, %c0_20] : memref<2x18x18x4xf32, #tpu.memory_space<vmem>>, vector<1x16x16x4xf32>
    %11 = vector.shape_cast %10 : vector<1x16x16x4xf32> to vector<16x16x4xf32>
    %12 = vector.shape_cast %11 : vector<16x16x4xf32> to vector<256x4xf32>
    %c0_21 = arith.constant 0 : index
    %c1_22 = arith.constant 1 : index
    %c0_23 = arith.constant 0 : index
    %c0_24 = arith.constant 0 : index
    %13 = vector.load %arg6[%c0_21, %c1_22, %c0_23, %c0_24] : memref<2x18x18x4xf32, #tpu.memory_space<vmem>>, vector<1x16x16x4xf32>
    %14 = vector.shape_cast %13 : vector<1x16x16x4xf32> to vector<16x16x4xf32>
    %15 = vector.shape_cast %14 : vector<16x16x4xf32> to vector<256x4xf32>
    %c0_25 = arith.constant 0 : index
    %c1_26 = arith.constant 1 : index
    %c1_27 = arith.constant 1 : index
    %c0_28 = arith.constant 0 : index
    %16 = vector.load %arg6[%c0_25, %c1_26, %c1_27, %c0_28] : memref<2x18x18x4xf32, #tpu.memory_space<vmem>>, vector<1x16x16x4xf32>
    %17 = vector.shape_cast %16 : vector<1x16x16x4xf32> to vector<16x16x4xf32>
    %18 = vector.shape_cast %17 : vector<16x16x4xf32> to vector<256x4xf32>
    %c0_29 = arith.constant 0 : index
    %c1_30 = arith.constant 1 : index
    %c2_31 = arith.constant 2 : index
    %c0_32 = arith.constant 0 : index
    %19 = vector.load %arg6[%c0_29, %c1_30, %c2_31, %c0_32] : memref<2x18x18x4xf32, #tpu.memory_space<vmem>>, vector<1x16x16x4xf32>
    %20 = vector.shape_cast %19 : vector<1x16x16x4xf32> to vector<16x16x4xf32>
    %21 = vector.shape_cast %20 : vector<16x16x4xf32> to vector<256x4xf32>
    %c0_33 = arith.constant 0 : index
    %c2_34 = arith.constant 2 : index
    %c0_35 = arith.constant 0 : index
    %c0_36 = arith.constant 0 : index
    %22 = vector.load %arg6[%c0_33, %c2_34, %c0_35, %c0_36] : memref<2x18x18x4xf32, #tpu.memory_space<vmem>>, vector<1x16x16x4xf32>
    %23 = vector.shape_cast %22 : vector<1x16x16x4xf32> to vector<16x16x4xf32>
    %24 = vector.shape_cast %23 : vector<16x16x4xf32> to vector<256x4xf32>
    %c0_37 = arith.constant 0 : index
    %c2_38 = arith.constant 2 : index
    %c1_39 = arith.constant 1 : index
    %c0_40 = arith.constant 0 : index
    %25 = vector.load %arg6[%c0_37, %c2_38, %c1_39, %c0_40] : memref<2x18x18x4xf32, #tpu.memory_space<vmem>>, vector<1x16x16x4xf32>
    %26 = vector.shape_cast %25 : vector<1x16x16x4xf32> to vector<16x16x4xf32>
    %27 = vector.shape_cast %26 : vector<16x16x4xf32> to vector<256x4xf32>
    %c0_41 = arith.constant 0 : index
    %c2_42 = arith.constant 2 : index
    %c2_43 = arith.constant 2 : index
    %c0_44 = arith.constant 0 : index
    %28 = vector.load %arg6[%c0_41, %c2_42, %c2_43, %c0_44] : memref<2x18x18x4xf32, #tpu.memory_space<vmem>>, vector<1x16x16x4xf32>
    %29 = vector.shape_cast %28 : vector<1x16x16x4xf32> to vector<16x16x4xf32>
    %30 = vector.shape_cast %29 : vector<16x16x4xf32> to vector<256x4xf32>
    %31 = tpu.concatenate %6, %9, %12, %15, %18, %21, %24, %27, %30 in 1 : vector<256x4xf32>, vector<256x4xf32>, vector<256x4xf32>, vector<256x4xf32>, vector<256x4xf32>, vector<256x4xf32>, vector<256x4xf32>, vector<256x4xf32>, vector<256x4xf32> -> vector<256x36xf32>
    %c1_45 = arith.constant 1 : index
    %c0_46 = arith.constant 0 : index
    %c0_47 = arith.constant 0 : index
    %c0_48 = arith.constant 0 : index
    %32 = vector.load %arg6[%c1_45, %c0_46, %c0_47, %c0_48] : memref<2x18x18x4xf32, #tpu.memory_space<vmem>>, vector<1x16x16x4xf32>
    %33 = vector.shape_cast %32 : vector<1x16x16x4xf32> to vector<16x16x4xf32>
    %34 = vector.shape_cast %33 : vector<16x16x4xf32> to vector<256x4xf32>
    %c1_49 = arith.constant 1 : index
    %c0_50 = arith.constant 0 : index
    %c1_51 = arith.constant 1 : index
    %c0_52 = arith.constant 0 : index
    %35 = vector.load %arg6[%c1_49, %c0_50, %c1_51, %c0_52] : memref<2x18x18x4xf32, #tpu.memory_space<vmem>>, vector<1x16x16x4xf32>
    %36 = vector.shape_cast %35 : vector<1x16x16x4xf32> to vector<16x16x4xf32>
    %37 = vector.shape_cast %36 : vector<16x16x4xf32> to vector<256x4xf32>
    %c1_53 = arith.constant 1 : index
    %c0_54 = arith.constant 0 : index
    %c2_55 = arith.constant 2 : index
    %c0_56 = arith.constant 0 : index
    %38 = vector.load %arg6[%c1_53, %c0_54, %c2_55, %c0_56] : memref<2x18x18x4xf32, #tpu.memory_space<vmem>>, vector<1x16x16x4xf32>
    %39 = vector.shape_cast %38 : vector<1x16x16x4xf32> to vector<16x16x4xf32>
    %40 = vector.shape_cast %39 : vector<16x16x4xf32> to vector<256x4xf32>
    %c1_57 = arith.constant 1 : index
    %c1_58 = arith.constant 1 : index
    %c0_59 = arith.constant 0 : index
    %c0_60 = arith.constant 0 : index
    %41 = vector.load %arg6[%c1_57, %c1_58, %c0_59, %c0_60] : memref<2x18x18x4xf32, #tpu.memory_space<vmem>>, vector<1x16x16x4xf32>
    %42 = vector.shape_cast %41 : vector<1x16x16x4xf32> to vector<16x16x4xf32>
    %43 = vector.shape_cast %42 : vector<16x16x4xf32> to vector<256x4xf32>
    %c1_61 = arith.constant 1 : index
    %c1_62 = arith.constant 1 : index
    %c1_63 = arith.constant 1 : index
    %c0_64 = arith.constant 0 : index
    %44 = vector.load %arg6[%c1_61, %c1_62, %c1_63, %c0_64] : memref<2x18x18x4xf32, #tpu.memory_space<vmem>>, vector<1x16x16x4xf32>
    %45 = vector.shape_cast %44 : vector<1x16x16x4xf32> to vector<16x16x4xf32>
    %46 = vector.shape_cast %45 : vector<16x16x4xf32> to vector<256x4xf32>
    %c1_65 = arith.constant 1 : index
    %c1_66 = arith.constant 1 : index
    %c2_67 = arith.constant 2 : index
    %c0_68 = arith.constant 0 : index
    %47 = vector.load %arg6[%c1_65, %c1_66, %c2_67, %c0_68] : memref<2x18x18x4xf32, #tpu.memory_space<vmem>>, vector<1x16x16x4xf32>
    %48 = vector.shape_cast %47 : vector<1x16x16x4xf32> to vector<16x16x4xf32>
    %49 = vector.shape_cast %48 : vector<16x16x4xf32> to vector<256x4xf32>
    %c1_69 = arith.constant 1 : index
    %c2_70 = arith.constant 2 : index
    %c0_71 = arith.constant 0 : index
    %c0_72 = arith.constant 0 : index
    %50 = vector.load %arg6[%c1_69, %c2_70, %c0_71, %c0_72] : memref<2x18x18x4xf32, #tpu.memory_space<vmem>>, vector<1x16x16x4xf32>
    %51 = vector.shape_cast %50 : vector<1x16x16x4xf32> to vector<16x16x4xf32>
    %52 = vector.shape_cast %51 : vector<16x16x4xf32> to vector<256x4xf32>
    %c1_73 = arith.constant 1 : index
    %c2_74 = arith.constant 2 : index
    %c1_75 = arith.constant 1 : index
    %c0_76 = arith.constant 0 : index
    %53 = vector.load %arg6[%c1_73, %c2_74, %c1_75, %c0_76] : memref<2x18x18x4xf32, #tpu.memory_space<vmem>>, vector<1x16x16x4xf32>
    %54 = vector.shape_cast %53 : vector<1x16x16x4xf32> to vector<16x16x4xf32>
    %55 = vector.shape_cast %54 : vector<16x16x4xf32> to vector<256x4xf32>
    %c1_77 = arith.constant 1 : index
    %c2_78 = arith.constant 2 : index
    %c2_79 = arith.constant 2 : index
    %c0_80 = arith.constant 0 : index
    %56 = vector.load %arg6[%c1_77, %c2_78, %c2_79, %c0_80] : memref<2x18x18x4xf32, #tpu.memory_space<vmem>>, vector<1x16x16x4xf32>
    %57 = vector.shape_cast %56 : vector<1x16x16x4xf32> to vector<16x16x4xf32>
    %58 = vector.shape_cast %57 : vector<16x16x4xf32> to vector<256x4xf32>
    %59 = tpu.concatenate %34, %37, %40, %43, %46, %49, %52, %55, %58 in 1 : vector<256x4xf32>, vector<256x4xf32>, vector<256x4xf32>, vector<256x4xf32>, vector<256x4xf32>, vector<256x4xf32>, vector<256x4xf32>, vector<256x4xf32>, vector<256x4xf32> -> vector<256x36xf32>
    %60 = tpu.concatenate %31, %59 in 0 : vector<256x36xf32>, vector<256x36xf32> -> vector<512x36xf32>
    %c0_81 = arith.constant 0 : index
    %c0_82 = arith.constant 0 : index
    %61 = vector.load %arg2[%c0_81, %c0_82] : memref<36x8xf32, #tpu.memory_space<vmem>>, vector<36x8xf32>
    %cst_83 = arith.constant dense<0.000000e+00> : vector<512x8xf32>
    %62 = tpu.matmul %60, %61, %cst_83 {dimension_numbers = #tpu.dot_dimension_numbers<[1], [0], [0], [1], [0, 0, 1, 1], [], []>} : vector<512x36xf32>, vector<36x8xf32>, vector<512x8xf32> -> vector<512x8xf32>
    %cst_84 = arith.constant dense<0.000000e+00> : vector<8xf32>
    %63 = vector.multi_reduction <add>, %62, %cst_84 [0] : vector<512x8xf32> to vector<8xf32>
    %64 = vector.shape_cast %63 : vector<8xf32> to vector<1x8xf32>
    %cst_85 = arith.constant 5.120000e+02 : f32
    %65 = vector.broadcast %cst_85 : f32 to vector<1x8xf32>
    %66 = arith.divf %64, %65 : vector<1x8xf32>
    %67 = arith.mulf %62, %62 : vector<512x8xf32>
    %cst_86 = arith.constant dense<0.000000e+00> : vector<8xf32>
    %68 = vector.multi_reduction <add>, %67, %cst_86 [0] : vector<512x8xf32> to vector<8xf32>
    %69 = vector.shape_cast %68 : vector<8xf32> to vector<1x8xf32>
    %cst_87 = arith.constant 5.120000e+02 : f32
    %70 = vector.broadcast %cst_87 : f32 to vector<1x8xf32>
    %71 = arith.divf %69, %70 : vector<1x8xf32>
    %72 = arith.mulf %66, %66 : vector<1x8xf32>
    %73 = arith.subf %71, %72 : vector<1x8xf32>
    %c0_88 = arith.constant 0 : index
    %c0_89 = arith.constant 0 : index
    %74 = vector.load %arg3[%c0_88, %c0_89] : memref<1x8xf32, #tpu.memory_space<vmem>>, vector<1x8xf32>
    %cst_90 = arith.constant 9.99999974E-6 : f32
    %75 = vector.broadcast %cst_90 : f32 to vector<1x8xf32>
    %76 = arith.addf %73, %75 : vector<1x8xf32>
    %77 = math.rsqrt %76 : vector<1x8xf32>
    %78 = arith.mulf %74, %77 : vector<1x8xf32>
    %c0_91 = arith.constant 0 : index
    %c0_92 = arith.constant 0 : index
    %79 = vector.load %arg4[%c0_91, %c0_92] : memref<1x8xf32, #tpu.memory_space<vmem>>, vector<1x8xf32>
    %80 = arith.mulf %66, %78 : vector<1x8xf32>
    %81 = arith.subf %79, %80 : vector<1x8xf32>
    %82 = vector.broadcast %78 : vector<1x8xf32> to vector<512x8xf32>
    %83 = arith.mulf %62, %82 : vector<512x8xf32>
    %84 = vector.broadcast %81 : vector<1x8xf32> to vector<512x8xf32>
    %85 = arith.addf %83, %84 : vector<512x8xf32>
    %cst_93 = arith.constant 0.000000e+00 : f32
    %86 = vector.broadcast %cst_93 : f32 to vector<512x8xf32>
    %87 = arith.cmpf ogt, %85, %86 : vector<512x8xf32>
    %cst_94 = arith.constant 0.00999999977 : f32
    %88 = vector.broadcast %cst_94 : f32 to vector<512x8xf32>
    %89 = arith.mulf %88, %85 : vector<512x8xf32>
    %90 = arith.select %87, %85, %89 : vector<512x8xi1>, vector<512x8xf32>
    %91 = tpu.transpose %90, [1, 0] : vector<512x8xf32> -> vector<8x512xf32>
    %92 = vector.extract_strided_slice %91 {offsets = [0, 0], sizes = [8, 256], strides = [1, 1]} : vector<8x512xf32> to vector<8x256xf32>
    %c0_95 = arith.constant 0 : index
    %c0_96 = arith.constant 0 : index
    %c0_97 = arith.constant 0 : index
    %93 = vector.load %arg5[%c0_95, %c0_96, %c0_97] : memref<2x8x256xf32, #tpu.memory_space<vmem>>, vector<1x8x256xf32>
    %94 = vector.shape_cast %93 : vector<1x8x256xf32> to vector<8x256xf32>
    %95 = vector.shape_cast %92 : vector<8x256xf32> to vector<1x8x256xf32>
    tpu.vector_store %arg5[%c0_95, %c0_96, %c0_97], %95 {strides = array<i32>} : memref<2x8x256xf32, #tpu.memory_space<vmem>>, vector<1x8x256xf32>,
    %96 = vector.extract_strided_slice %91 {offsets = [0, 256], sizes = [8, 256], strides = [1, 1]} : vector<8x512xf32> to vector<8x256xf32>
    %c1_98 = arith.constant 1 : index
    %c0_99 = arith.constant 0 : index
    %c0_100 = arith.constant 0 : index
    %97 = vector.load %arg5[%c1_98, %c0_99, %c0_100] : memref<2x8x256xf32, #tpu.memory_space<vmem>>, vector<1x8x256xf32>
    %98 = vector.shape_cast %97 : vector<1x8x256xf32> to vector<8x256xf32>
    %99 = vector.shape_cast %96 : vector<8x256xf32> to vector<1x8x256xf32>
    tpu.vector_store %arg5[%c1_98, %c0_99, %c0_100], %99 {strides = array<i32>} : memref<2x8x256xf32, #tpu.memory_space<vmem>>, vector<1x8x256xf32>,
    return
  }
  func.func @transform_0(%arg0: i32) -> (i32, i32, i32, i32) {
    %c0_i32 = arith.constant 0 : i32
    %c0_i32_0 = arith.constant 0 : i32
    %c0_i32_1 = arith.constant 0 : i32
    %c0_i32_2 = arith.constant 0 : i32
    %c0_i32_3 = arith.constant 0 : i32
    return %c0_i32, %c0_i32_0, %c0_i32_1, %c0_i32_2 : i32, i32, i32, i32
  }
  func.func @transform_1(%arg0: i32) -> (i32, i32) {
    %c0_i32 = arith.constant 0 : i32
    %c0_i32_0 = arith.constant 0 : i32
    %c0_i32_1 = arith.constant 0 : i32
    return %c0_i32, %c0_i32_0 : i32, i32
  }
  func.func @transform_2(%arg0: i32) -> (i32, i32) {
    %c0_i32 = arith.constant 0 : i32
    %c0_i32_0 = arith.constant 0 : i32
    %c0_i32_1 = arith.constant 0 : i32
    return %c0_i32, %c0_i32_0 : i32, i32
  }
  func.func @transform_3(%arg0: i32) -> (i32, i32) {
    %c0_i32 = arith.constant 0 : i32
    %c0_i32_0 = arith.constant 0 : i32
    %c0_i32_1 = arith.constant 0 : i32
    return %c0_i32, %c0_i32_0 : i32, i32
  }
  func.func @transform_4(%arg0: i32) -> (i32, i32, i32) {
    %c0_i32 = arith.constant 0 : i32
    %c0_i32_0 = arith.constant 0 : i32
    %c0_i32_1 = arith.constant 0 : i32
    %c0_i32_2 = arith.constant 0 : i32
    return %c0_i32, %c0_i32_0, %c0_i32_1 : i32, i32, i32
  }
}

</mosaic_0001>

<llo_original>
// kernel: tpu_custom_call.1
$region0: #{tpu_custom_call.1}
  #allocation0 [shape = 'u32[]', space=smem, size = 0x4, offset = 0x4, fixed_abs, tag = 'smem constant byte address 0x4 - core index']
  #allocation1 [shape = 'u32[144,128]{1,0:T(1,128)}', space=vmem, size = 0x12000, scoped, tag = 'internal scratch']
  #allocation2 [shape = 'f32[2,18,18,4]{3,2,1,0:T(8,128)}', space=vmem, size = 0x6c000, scoped, tag = 'scratch operand']
  %s0 = inlined_call_operand.vmem [shape: f32[2,16,16,4], index: 0, kind: input, shape index: {}]
  %s1 = inlined_call_operand.vmem [shape: f32[36,8], index: 1, kind: input, shape index: {}]
  %s2 = inlined_call_operand.vmem [shape: f32[1,8], index: 2, kind: input, shape index: {}]
  %s3 = inlined_call_operand.vmem [shape: f32[1,8], index: 3, kind: input, shape index: {}]
  %s4 = inlined_call_operand.hbm [shape: f32[2,8,256], index: 4, kind: output, shape index: {}]
  %s5 = sld [smem:[#allocation0]]
  $region26: #{tpu_custom_call.1} parent=0
    _
  %s7 = ssub.s32 1, %s5
  %s8 = scalar_select 0, %s7, %s5
  $region1: #{tpu_custom_call.1} parent=0
    #allocation3 [shape = 'u8[16384]{0}', space=vmem, size = 0x4000, scoped, tag = 'output window, operand 0, single buffered']
    #allocation4 [shape = 's32[1]{0}', space=sflag, size = 0x4, scoped, tag = 'scoped memory for tpu_custom_call.1']
    %9 = vsyncpa [#allocation4], 0
    // Predicated region
    $region2: #{tpu_custom_call.1} parent=1 // pred_check
      _
    $region3: #{tpu_custom_call.1} parent=1 // pred_check_branch
      %11 = sbr.rel (0) target = $region5
    $region4: #{tpu_custom_call.1} parent=1 // pred_region
      _
    $region5: #{tpu_custom_call.1} parent=1 // pred_fallthru
      _
    // Predicated region
    $region6: #{tpu_custom_call.1} parent=1 // pred_check
      _
    $region7: #{tpu_custom_call.1} parent=1 // pred_check_branch
      %13 = sbr.rel (0) target = $region9
    $region8: #{tpu_custom_call.1} parent=1 // pred_region
      _
    $region9: #{tpu_custom_call.1} parent=1 // pred_fallthru
      _
    // Predicated region
    $region10: #{tpu_custom_call.1} parent=1 // pred_check
      _
    $region11: #{tpu_custom_call.1} parent=1 // pred_check_branch
      %15 = sbr.rel (0) target = $region13
    $region12: #{tpu_custom_call.1} parent=1 // pred_region
      _
    $region13: #{tpu_custom_call.1} parent=1 // pred_fallthru
      _
    // Predicated region
    $region14: #{tpu_custom_call.1} parent=1 // pred_check
      _
    $region15: #{tpu_custom_call.1} parent=1 // pred_check_branch
      %17 = sbr.rel (0) target = $region17
    $region16: #{tpu_custom_call.1} parent=1 // pred_region
      _
    $region17: #{tpu_custom_call.1} parent=1 // pred_fallthru
      _
    %vm18 = vcmask 31744
    %19 = vst.msk [vmem:[#allocation2] sm:$0xff] %vm18, 0.0
    %20 = vst.msk [vmem:[#allocation2 + $0x8] sm:$0xff] %vm18, 0.0
    %vm21 = vcmask 25600
    %22 = vst.msk [vmem:[#allocation2 + $0x10] sm:$0x3] %vm21, 0.0
    %23 = vst.msk [vmem:[#allocation2 + $0x18] sm:$0xff] %vm18, 0.0
    %24 = vst.msk [vmem:[#allocation2 + $0x20] sm:$0xff] %vm18, 0.0
    %25 = vst.msk [vmem:[#allocation2 + $0x28] sm:$0x3] %vm21, 0.0
    %26 = vst.msk [vmem:[#allocation2 + $0x30] sm:$0xff] %vm18, 0.0
    %27 = vst.msk [vmem:[#allocation2 + $0x38] sm:$0xff] %vm18, 0.0
    %28 = vst.msk [vmem:[#allocation2 + $0x40] sm:$0x3] %vm21, 0.0
    %29 = vst.msk [vmem:[#allocation2 + $0x48] sm:$0xff] %vm18, 0.0
    %30 = vst.msk [vmem:[#allocation2 + $0x50] sm:$0xff] %vm18, 0.0
    %31 = vst.msk [vmem:[#allocation2 + $0x58] sm:$0x3] %vm21, 0.0
    %32 = vst.msk [vmem:[#allocation2 + $0x60] sm:$0xff] %vm18, 0.0
    %33 = vst.msk [vmem:[#allocation2 + $0x68] sm:$0xff] %vm18, 0.0
    %34 = vst.msk [vmem:[#allocation2 + $0x70] sm:$0x3] %vm21, 0.0
    %35 = vst.msk [vmem:[#allocation2 + $0x78] sm:$0xff] %vm18, 0.0
    %36 = vst.msk [vmem:[#allocation2 + $0x80] sm:$0xff] %vm18, 0.0
    %37 = vst.msk [vmem:[#allocation2 + $0x88] sm:$0x3] %vm21, 0.0
    %38 = vst.msk [vmem:[#allocation2 + $0x90] sm:$0xff] %vm18, 0.0
    %39 = vst.msk [vmem:[#allocation2 + $0x98] sm:$0xff] %vm18, 0.0
    %40 = vst.msk [vmem:[#allocation2 + $0xa0] sm:$0x3] %vm21, 0.0
    %41 = vst.msk [vmem:[#allocation2 + $0xa8] sm:$0xff] %vm18, 0.0
    %42 = vst.msk [vmem:[#allocation2 + $0xb0] sm:$0xff] %vm18, 0.0
    %43 = vst.msk [vmem:[#allocation2 + $0xb8] sm:$0x3] %vm21, 0.0
    %44 = vst.msk [vmem:[#allocation2 + $0xc0] sm:$0xff] %vm18, 0.0
    %45 = vst.msk [vmem:[#allocation2 + $0xc8] sm:$0xff] %vm18, 0.0
    %46 = vst.msk [vmem:[#allocation2 + $0xd0] sm:$0x3] %vm21, 0.0
    %47 = vst.msk [vmem:[#allocation2 + $0xd8] sm:$0xff] %vm18, 0.0
    %48 = vst.msk [vmem:[#allocation2 + $0xe0] sm:$0xff] %vm18, 0.0
    %49 = vst.msk [vmem:[#allocation2 + $0xe8] sm:$0x3] %vm21, 0.0
    %50 = vst.msk [vmem:[#allocation2 + $0xf0] sm:$0xff] %vm18, 0.0
    %51 = vst.msk [vmem:[#allocation2 + $0xf8] sm:$0xff] %vm18, 0.0
    %52 = vst.msk [vmem:[#allocation2 + $0x100] sm:$0x3] %vm21, 0.0
    %53 = vst.msk [vmem:[#allocation2 + $0x108] sm:$0xff] %vm18, 0.0
    %54 = vst.msk [vmem:[#allocation2 + $0x110] sm:$0xff] %vm18, 0.0
    %55 = vst.msk [vmem:[#allocation2 + $0x118] sm:$0x3] %vm21, 0.0
    %56 = vst.msk [vmem:[#allocation2 + $0x120] sm:$0xff] %vm18, 0.0
    %57 = vst.msk [vmem:[#allocation2 + $0x128] sm:$0xff] %vm18, 0.0
    %58 = vst.msk [vmem:[#allocation2 + $0x130] sm:$0x3] %vm21, 0.0
    %59 = vst.msk [vmem:[#allocation2 + $0x138] sm:$0xff] %vm18, 0.0
    %60 = vst.msk [vmem:[#allocation2 + $0x140] sm:$0xff] %vm18, 0.0
    %61 = vst.msk [vmem:[#allocation2 + $0x148] sm:$0x3] %vm21, 0.0
    %62 = vst.msk [vmem:[#allocation2 + $0x150] sm:$0xff] %vm18, 0.0
    %63 = vst.msk [vmem:[#allocation2 + $0x158] sm:$0xff] %vm18, 0.0
    %64 = vst.msk [vmem:[#allocation2 + $0x160] sm:$0x3] %vm21, 0.0
    %65 = vst.msk [vmem:[#allocation2 + $0x168] sm:$0xff] %vm18, 0.0
    %66 = vst.msk [vmem:[#allocation2 + $0x170] sm:$0xff] %vm18, 0.0
    %67 = vst.msk [vmem:[#allocation2 + $0x178] sm:$0x3] %vm21, 0.0
    %68 = vst.msk [vmem:[#allocation2 + $0x180] sm:$0xff] %vm18, 0.0
    %69 = vst.msk [vmem:[#allocation2 + $0x188] sm:$0xff] %vm18, 0.0
    %70 = vst.msk [vmem:[#allocation2 + $0x190] sm:$0x3] %vm21, 0.0
    %71 = vst.msk [vmem:[#allocation2 + $0x198] sm:$0xff] %vm18, 0.0
    %72 = vst.msk [vmem:[#allocation2 + $0x1a0] sm:$0xff] %vm18, 0.0
    %73 = vst.msk [vmem:[#allocation2 + $0x1a8] sm:$0x3] %vm21, 0.0
    %74 = vst.msk [vmem:[#allocation2 + $0x1b0] sm:$0xff] %vm18, 0.0
    %75 = vst.msk [vmem:[#allocation2 + $0x1b8] sm:$0xff] %vm18, 0.0
    %76 = vst.msk [vmem:[#allocation2 + $0x1c0] sm:$0x3] %vm21, 0.0
    %77 = vst.msk [vmem:[#allocation2 + $0x1c8] sm:$0xff] %vm18, 0.0
    %78 = vst.msk [vmem:[#allocation2 + $0x1d0] sm:$0xff] %vm18, 0.0
    %79 = vst.msk [vmem:[#allocation2 + $0x1d8] sm:$0x3] %vm21, 0.0
    %80 = vst.msk [vmem:[#allocation2 + $0x1e0] sm:$0xff] %vm18, 0.0
    %81 = vst.msk [vmem:[#allocation2 + $0x1e8] sm:$0xff] %vm18, 0.0
    %82 = vst.msk [vmem:[#allocation2 + $0x1f0] sm:$0x3] %vm21, 0.0
    %83 = vst.msk [vmem:[#allocation2 + $0x1f8] sm:$0xff] %vm18, 0.0
    %84 = vst.msk [vmem:[#allocation2 + $0x200] sm:$0xff] %vm18, 0.0
    %85 = vst.msk [vmem:[#allocation2 + $0x208] sm:$0x3] %vm21, 0.0
    %86 = vst.msk [vmem:[#allocation2 + $0x210] sm:$0xff] %vm18, 0.0
    %87 = vst.msk [vmem:[#allocation2 + $0x218] sm:$0xff] %vm18, 0.0
    %88 = vst.msk [vmem:[#allocation2 + $0x220] sm:$0x3] %vm21, 0.0
    %89 = vst.msk [vmem:[#allocation2 + $0x228] sm:$0xff] %vm18, 0.0
    %90 = vst.msk [vmem:[#allocation2 + $0x230] sm:$0xff] %vm18, 0.0
    %91 = vst.msk [vmem:[#allocation2 + $0x238] sm:$0x3] %vm21, 0.0
    %92 = vst.msk [vmem:[#allocation2 + $0x240] sm:$0xff] %vm18, 0.0
    %93 = vst.msk [vmem:[#allocation2 + $0x248] sm:$0xff] %vm18, 0.0
    %94 = vst.msk [vmem:[#allocation2 + $0x250] sm:$0x3] %vm21, 0.0
    %95 = vst.msk [vmem:[#allocation2 + $0x258] sm:$0xff] %vm18, 0.0
    %96 = vst.msk [vmem:[#allocation2 + $0x260] sm:$0xff] %vm18, 0.0
    %97 = vst.msk [vmem:[#allocation2 + $0x268] sm:$0x3] %vm21, 0.0
    %98 = vst.msk [vmem:[#allocation2 + $0x270] sm:$0xff] %vm18, 0.0
    %99 = vst.msk [vmem:[#allocation2 + $0x278] sm:$0xff] %vm18, 0.0
    %100 = vst.msk [vmem:[#allocation2 + $0x280] sm:$0x3] %vm21, 0.0
    %101 = vst.msk [vmem:[#allocation2 + $0x288] sm:$0xff] %vm18, 0.0
    %102 = vst.msk [vmem:[#allocation2 + $0x290] sm:$0xff] %vm18, 0.0
    %103 = vst.msk [vmem:[#allocation2 + $0x298] sm:$0x3] %vm21, 0.0
    %104 = vst.msk [vmem:[#allocation2 + $0x2a0] sm:$0xff] %vm18, 0.0
    %105 = vst.msk [vmem:[#allocation2 + $0x2a8] sm:$0xff] %vm18, 0.0
    %106 = vst.msk [vmem:[#allocation2 + $0x2b0] sm:$0x3] %vm21, 0.0
    %107 = vst.msk [vmem:[#allocation2 + $0x2b8] sm:$0xff] %vm18, 0.0
    %108 = vst.msk [vmem:[#allocation2 + $0x2c0] sm:$0xff] %vm18, 0.0
    %109 = vst.msk [vmem:[#allocation2 + $0x2c8] sm:$0x3] %vm21, 0.0
    %110 = vst.msk [vmem:[#allocation2 + $0x2d0] sm:$0xff] %vm18, 0.0
    %111 = vst.msk [vmem:[#allocation2 + $0x2d8] sm:$0xff] %vm18, 0.0
    %112 = vst.msk [vmem:[#allocation2 + $0x2e0] sm:$0x3] %vm21, 0.0
    %113 = vst.msk [vmem:[#allocation2 + $0x2e8] sm:$0xff] %vm18, 0.0
    %114 = vst.msk [vmem:[#allocation2 + $0x2f0] sm:$0xff] %vm18, 0.0
    %115 = vst.msk [vmem:[#allocation2 + $0x2f8] sm:$0x3] %vm21, 0.0
    %116 = vst.msk [vmem:[#allocation2 + $0x300] sm:$0xff] %vm18, 0.0
    %117 = vst.msk [vmem:[#allocation2 + $0x308] sm:$0xff] %vm18, 0.0
    %118 = vst.msk [vmem:[#allocation2 + $0x310] sm:$0x3] %vm21, 0.0
    %119 = vst.msk [vmem:[#allocation2 + $0x318] sm:$0xff] %vm18, 0.0
    %120 = vst.msk [vmem:[#allocation2 + $0x320] sm:$0xff] %vm18, 0.0
    %121 = vst.msk [vmem:[#allocation2 + $0x328] sm:$0x3] %vm21, 0.0
    %122 = vst.msk [vmem:[#allocation2 + $0x330] sm:$0xff] %vm18, 0.0
    %123 = vst.msk [vmem:[#allocation2 + $0x338] sm:$0xff] %vm18, 0.0
    %124 = vst.msk [vmem:[#allocation2 + $0x340] sm:$0x3] %vm21, 0.0
    %125 = vst.msk [vmem:[#allocation2 + $0x348] sm:$0xff] %vm18, 0.0
    %126 = vst.msk [vmem:[#allocation2 + $0x350] sm:$0xff] %vm18, 0.0
    %127 = vst.msk [vmem:[#allocation2 + $0x358] sm:$0x3] %vm21, 0.0
    %v128 = vld [vmem:[%s0] sm:$0xff]
    %v129 = vld [vmem:[%s0 + $0x8] sm:$0xff]
    %v130 = vld [vmem:[%s0 + $0x10] sm:$0xff]
    %v131 = vld [vmem:[%s0 + $0x18] sm:$0xff]
    %v132 = vld [vmem:[%s0 + $0x20] sm:$0xff]
    %v133 = vld [vmem:[%s0 + $0x28] sm:$0xff]
    %v134 = vld [vmem:[%s0 + $0x30] sm:$0xff]
    %v135 = vld [vmem:[%s0 + $0x38] sm:$0xff]
    %v136 = vld [vmem:[%s0 + $0x40] sm:$0xff]
    %v137 = vld [vmem:[%s0 + $0x48] sm:$0xff]
    %v138 = vld [vmem:[%s0 + $0x50] sm:$0xff]
    %v139 = vld [vmem:[%s0 + $0x58] sm:$0xff]
    %v140 = vld [vmem:[%s0 + $0x60] sm:$0xff]
    %v141 = vld [vmem:[%s0 + $0x68] sm:$0xff]
    %v142 = vld [vmem:[%s0 + $0x70] sm:$0xff]
    %v143 = vld [vmem:[%s0 + $0x78] sm:$0xff]
    %v144 = vld [vmem:[%s0 + $0x80] sm:$0xff]
    %v145 = vld [vmem:[%s0 + $0x88] sm:$0xff]
    %v146 = vld [vmem:[%s0 + $0x90] sm:$0xff]
    %v147 = vld [vmem:[%s0 + $0x98] sm:$0xff]
    %v148 = vld [vmem:[%s0 + $0xa0] sm:$0xff]
    %v149 = vld [vmem:[%s0 + $0xa8] sm:$0xff]
    %v150 = vld [vmem:[%s0 + $0xb0] sm:$0xff]
    %v151 = vld [vmem:[%s0 + $0xb8] sm:$0xff]
    %v152 = vld [vmem:[%s0 + $0xc0] sm:$0xff]
    %v153 = vld [vmem:[%s0 + $0xc8] sm:$0xff]
    %v154 = vld [vmem:[%s0 + $0xd0] sm:$0xff]
    %v155 = vld [vmem:[%s0 + $0xd8] sm:$0xff]
    %v156 = vld [vmem:[%s0 + $0xe0] sm:$0xff]
    %v157 = vld [vmem:[%s0 + $0xe8] sm:$0xff]
    %v158 = vld [vmem:[%s0 + $0xf0] sm:$0xff]
    %v159 = vld [vmem:[%s0 + $0xf8] sm:$0xff]
    %v160 = vld [vmem:[%s0 + $0x100] sm:$0xff]
    %v161 = vld [vmem:[%s0 + $0x108] sm:$0xff]
    %v162 = vld [vmem:[%s0 + $0x110] sm:$0xff]
    %v163 = vld [vmem:[%s0 + $0x118] sm:$0xff]
    %v164 = vld [vmem:[%s0 + $0x120] sm:$0xff]
    %v165 = vld [vmem:[%s0 + $0x128] sm:$0xff]
    %v166 = vld [vmem:[%s0 + $0x130] sm:$0xff]
    %v167 = vld [vmem:[%s0 + $0x138] sm:$0xff]
    %v168 = vld [vmem:[%s0 + $0x140] sm:$0xff]
    %v169 = vld [vmem:[%s0 + $0x148] sm:$0xff]
    %v170 = vld [vmem:[%s0 + $0x150] sm:$0xff]
    %v171 = vld [vmem:[%s0 + $0x158] sm:$0xff]
    %v172 = vld [vmem:[%s0 + $0x160] sm:$0xff]
    %v173 = vld [vmem:[%s0 + $0x168] sm:$0xff]
    %v174 = vld [vmem:[%s0 + $0x170] sm:$0xff]
    %v175 = vld [vmem:[%s0 + $0x178] sm:$0xff]
    %v176 = vld [vmem:[%s0 + $0x180] sm:$0xff]
    %v177 = vld [vmem:[%s0 + $0x188] sm:$0xff]
    %v178 = vld [vmem:[%s0 + $0x190] sm:$0xff]
    %v179 = vld [vmem:[%s0 + $0x198] sm:$0xff]
    %v180 = vld [vmem:[%s0 + $0x1a0] sm:$0xff]
    %v181 = vld [vmem:[%s0 + $0x1a8] sm:$0xff]
    %v182 = vld [vmem:[%s0 + $0x1b0] sm:$0xff]
    %v183 = vld [vmem:[%s0 + $0x1b8] sm:$0xff]
    %v184 = vld [vmem:[%s0 + $0x1c0] sm:$0xff]
    %v185 = vld [vmem:[%s0 + $0x1c8] sm:$0xff]
    %v186 = vld [vmem:[%s0 + $0x1d0] sm:$0xff]
    %v187 = vld [vmem:[%s0 + $0x1d8] sm:$0xff]
    %v188 = vld [vmem:[%s0 + $0x1e0] sm:$0xff]
    %v189 = vld [vmem:[%s0 + $0x1e8] sm:$0xff]
    %v190 = vld [vmem:[%s0 + $0x1f0] sm:$0xff]
    %v191 = vld [vmem:[%s0 + $0x1f8] sm:$0xff]
    %s192 = scalar_lea.vmem [#allocation2], 24
    %193 = vst.msk [vmem:[%s192 + $0x1] sm:$0xff] %vm18, %v128
    %194 = vst.msk [vmem:[%s192 + $0x9] sm:$0xff] %vm18, %v129
    %195 = vst.msk [vmem:[%s192 + $0x19] sm:$0xff] %vm18, %v130
    %196 = vst.msk [vmem:[%s192 + $0x21] sm:$0xff] %vm18, %v131
    %197 = vst.msk [vmem:[%s192 + $0x31] sm:$0xff] %vm18, %v132
    %198 = vst.msk [vmem:[%s192 + $0x39] sm:$0xff] %vm18, %v133
    %199 = vst.msk [vmem:[%s192 + $0x49] sm:$0xff] %vm18, %v134
    %200 = vst.msk [vmem:[%s192 + $0x51] sm:$0xff] %vm18, %v135
    %201 = vst.msk [vmem:[%s192 + $0x61] sm:$0xff] %vm18, %v136
    %202 = vst.msk [vmem:[%s192 + $0x69] sm:$0xff] %vm18, %v137
    %203 = vst.msk [vmem:[%s192 + $0x79] sm:$0xff] %vm18, %v138
    %204 = vst.msk [vmem:[%s192 + $0x81] sm:$0xff] %vm18, %v139
    %205 = vst.msk [vmem:[%s192 + $0x91] sm:$0xff] %vm18, %v140
    %206 = vst.msk [vmem:[%s192 + $0x99] sm:$0xff] %vm18, %v141
    %207 = vst.msk [vmem:[%s192 + $0xa9] sm:$0xff] %vm18, %v142
    %208 = vst.msk [vmem:[%s192 + $0xb1] sm:$0xff] %vm18, %v143
    %209 = vst.msk [vmem:[%s192 + $0xc1] sm:$0xff] %vm18, %v144
    %210 = vst.msk [vmem:[%s192 + $0xc9] sm:$0xff] %vm18, %v145
    %211 = vst.msk [vmem:[%s192 + $0xd9] sm:$0xff] %vm18, %v146
    %212 = vst.msk [vmem:[%s192 + $0xe1] sm:$0xff] %vm18, %v147
    %213 = vst.msk [vmem:[%s192 + $0xf1] sm:$0xff] %vm18, %v148
    %214 = vst.msk [vmem:[%s192 + $0xf9] sm:$0xff] %vm18, %v149
    %215 = vst.msk [vmem:[%s192 + $0x109] sm:$0xff] %vm18, %v150
    %216 = vst.msk [vmem:[%s192 + $0x111] sm:$0xff] %vm18, %v151
    %217 = vst.msk [vmem:[%s192 + $0x121] sm:$0xff] %vm18, %v152
    %218 = vst.msk [vmem:[%s192 + $0x129] sm:$0xff] %vm18, %v153
    %219 = vst.msk [vmem:[%s192 + $0x139] sm:$0xff] %vm18, %v154
    %220 = vst.msk [vmem:[%s192 + $0x141] sm:$0xff] %vm18, %v155
    %221 = vst.msk [vmem:[%s192 + $0x151] sm:$0xff] %vm18, %v156
    %222 = vst.msk [vmem:[%s192 + $0x159] sm:$0xff] %vm18, %v157
    %223 = vst.msk [vmem:[%s192 + $0x169] sm:$0xff] %vm18, %v158
    %224 = vst.msk [vmem:[%s192 + $0x171] sm:$0xff] %vm18, %v159
    %225 = vst.msk [vmem:[%s192 + $0x1b1] sm:$0xff] %vm18, %v160
    %226 = vst.msk [vmem:[%s192 + $0x1b9] sm:$0xff] %vm18, %v161
    %227 = vst.msk [vmem:[%s192 + $0x1c9] sm:$0xff] %vm18, %v162
    %228 = vst.msk [vmem:[%s192 + $0x1d1] sm:$0xff] %vm18, %v163
    %229 = vst.msk [vmem:[%s192 + $0x1e1] sm:$0xff] %vm18, %v164
    %230 = vst.msk [vmem:[%s192 + $0x1e9] sm:$0xff] %vm18, %v165
    %231 = vst.msk [vmem:[%s192 + $0x1f9] sm:$0xff] %vm18, %v166
    %232 = vst.msk [vmem:[%s192 + $0x201] sm:$0xff] %vm18, %v167
    %233 = vst.msk [vmem:[%s192 + $0x211] sm:$0xff] %vm18, %v168
    %234 = vst.msk [vmem:[%s192 + $0x219] sm:$0xff] %vm18, %v169
    %235 = vst.msk [vmem:[%s192 + $0x229] sm:$0xff] %vm18, %v170
    %236 = vst.msk [vmem:[%s192 + $0x231] sm:$0xff] %vm18, %v171
    %237 = vst.msk [vmem:[%s192 + $0x241] sm:$0xff] %vm18, %v172
    %238 = vst.msk [vmem:[%s192 + $0x249] sm:$0xff] %vm18, %v173
    %239 = vst.msk [vmem:[%s192 + $0x259] sm:$0xff] %vm18, %v174
    %240 = vst.msk [vmem:[%s192 + $0x261] sm:$0xff] %vm18, %v175
    %241 = vst.msk [vmem:[%s192 + $0x271] sm:$0xff] %vm18, %v176
    %242 = vst.msk [vmem:[%s192 + $0x279] sm:$0xff] %vm18, %v177
    %243 = vst.msk [vmem:[%s192 + $0x289] sm:$0xff] %vm18, %v178
    %244 = vst.msk [vmem:[%s192 + $0x291] sm:$0xff] %vm18, %v179
    %245 = vst.msk [vmem:[%s192 + $0x2a1] sm:$0xff] %vm18, %v180
    %246 = vst.msk [vmem:[%s192 + $0x2a9] sm:$0xff] %vm18, %v181
    %247 = vst.msk [vmem:[%s192 + $0x2b9] sm:$0xff] %vm18, %v182
    %248 = vst.msk [vmem:[%s192 + $0x2c1] sm:$0xff] %vm18, %v183
    %249 = vst.msk [vmem:[%s192 + $0x2d1] sm:$0xff] %vm18, %v184
    %250 = vst.msk [vmem:[%s192 + $0x2d9] sm:$0xff] %vm18, %v185
    %251 = vst.msk [vmem:[%s192 + $0x2e9] sm:$0xff] %vm18, %v186
    %252 = vst.msk [vmem:[%s192 + $0x2f1] sm:$0xff] %vm18, %v187
    %253 = vst.msk [vmem:[%s192 + $0x301] sm:$0xff] %vm18, %v188
    %254 = vst.msk [vmem:[%s192 + $0x309] sm:$0xff] %vm18, %v189
    %255 = vst.msk [vmem:[%s192 + $0x319] sm:$0xff] %vm18, %v190
    %256 = vst.msk [vmem:[%s192 + $0x321] sm:$0xff] %vm18, %v191
    %v257 = vld [vmem:[#allocation2] sm:$0xff]
    %v258 = vld [vmem:[#allocation2 + $0x8] sm:$0xff]
    %v259 = vld [vmem:[#allocation2 + $0x18] sm:$0xff]
    %v260 = vld [vmem:[#allocation2 + $0x20] sm:$0xff]
    %v261 = vld [vmem:[#allocation2 + $0x30] sm:$0xff]
    %v262 = vld [vmem:[#allocation2 + $0x38] sm:$0xff]
    %v263 = vld [vmem:[#allocation2 + $0x48] sm:$0xff]
    %v264 = vld [vmem:[#allocation2 + $0x50] sm:$0xff]
    %v265 = vld [vmem:[#allocation2 + $0x60] sm:$0xff]
    %v266 = vld [vmem:[#allocation2 + $0x68] sm:$0xff]
    %v267 = vld [vmem:[#allocation2 + $0x78] sm:$0xff]
    %v268 = vld [vmem:[#allocation2 + $0x80] sm:$0xff]
    %v269 = vld [vmem:[#allocation2 + $0x90] sm:$0xff]
    %v270 = vld [vmem:[#allocation2 + $0x98] sm:$0xff]
    %v271 = vld [vmem:[#allocation2 + $0xa8] sm:$0xff]
    %v272 = vld [vmem:[#allocation2 + $0xb0] sm:$0xff]
    %v273 = vld [vmem:[#allocation2 + $0xc0] sm:$0xff]
    %v274 = vld [vmem:[#allocation2 + $0xc8] sm:$0xff]
    %v275 = vld [vmem:[#allocation2 + $0xd8] sm:$0xff]
    %v276 = vld [vmem:[#allocation2 + $0xe0] sm:$0xff]
    %v277 = vld [vmem:[#allocation2 + $0xf0] sm:$0xff]
    %v278 = vld [vmem:[#allocation2 + $0xf8] sm:$0xff]
    %v279 = vld [vmem:[#allocation2 + $0x108] sm:$0xff]
    %v280 = vld [vmem:[#allocation2 + $0x110] sm:$0xff]
    %v281 = vld [vmem:[#allocation2 + $0x120] sm:$0xff]
    %v282 = vld [vmem:[#allocation2 + $0x128] sm:$0xff]
    %v283 = vld [vmem:[#allocation2 + $0x138] sm:$0xff]
    %v284 = vld [vmem:[#allocation2 + $0x140] sm:$0xff]
    %v285 = vld [vmem:[#allocation2 + $0x150] sm:$0xff]
    %v286 = vld [vmem:[#allocation2 + $0x158] sm:$0xff]
    %v287 = vld [vmem:[#allocation2 + $0x168] sm:$0xff]
    %v288 = vld [vmem:[#allocation2 + $0x170] sm:$0xff]
    %v289 = vld [vmem:[#allocation2 + $0x1] sm:$0xff]
    %v290 = vld [vmem:[#allocation2 + $0x9] sm:$0xff]
    %v291 = vld [vmem:[#allocation2 + $0x19] sm:$0xff]
    %v292 = vld [vmem:[#allocation2 + $0x21] sm:$0xff]
    %v293 = vld [vmem:[#allocation2 + $0x31] sm:$0xff]
    %v294 = vld [vmem:[#allocation2 + $0x39] sm:$0xff]
    %v295 = vld [vmem:[#allocation2 + $0x49] sm:$0xff]
    %v296 = vld [vmem:[#allocation2 + $0x51] sm:$0xff]
    %v297 = vld [vmem:[#allocation2 + $0x61] sm:$0xff]
    %v298 = vld [vmem:[#allocation2 + $0x69] sm:$0xff]
    %v299 = vld [vmem:[#allocation2 + $0x79] sm:$0xff]
    %v300 = vld [vmem:[#allocation2 + $0x81] sm:$0xff]
    %v301 = vld [vmem:[#allocation2 + $0x91] sm:$0xff]
    %v302 = vld [vmem:[#allocation2 + $0x99] sm:$0xff]
    %v303 = vld [vmem:[#allocation2 + $0xa9] sm:$0xff]
    %v304 = vld [vmem:[#allocation2 + $0xb1] sm:$0xff]
    %v305 = vld [vmem:[#allocation2 + $0xc1] sm:$0xff]
    %v306 = vld [vmem:[#allocation2 + $0xc9] sm:$0xff]
    %v307 = vld [vmem:[#allocation2 + $0xd9] sm:$0xff]
    %v308 = vld [vmem:[#allocation2 + $0xe1] sm:$0xff]
    %v309 = vld [vmem:[#allocation2 + $0xf1] sm:$0xff]
    %v310 = vld [vmem:[#allocation2 + $0xf9] sm:$0xff]
    %v311 = vld [vmem:[#allocation2 + $0x109] sm:$0xff]
    %v312 = vld [vmem:[#allocation2 + $0x111] sm:$0xff]
    %v313 = vld [vmem:[#allocation2 + $0x121] sm:$0xff]
    %v314 = vld [vmem:[#allocation2 + $0x129] sm:$0xff]
    %v315 = vld [vmem:[#allocation2 + $0x139] sm:$0xff]
    %v316 = vld [vmem:[#allocation2 + $0x141] sm:$0xff]
    %v317 = vld [vmem:[#allocation2 + $0x151] sm:$0xff]
    %v318 = vld [vmem:[#allocation2 + $0x159] sm:$0xff]
    %v319 = vld [vmem:[#allocation2 + $0x169] sm:$0xff]
    %v320 = vld [vmem:[#allocation2 + $0x171] sm:$0xff]
    %v321 = vld [vmem:[#allocation2 + $0x2] sm:$0xff]
    %v322 = vld [vmem:[#allocation2 + $0xa] sm:$0xff]
    %v323 = vld [vmem:[#allocation2 + $0x1a] sm:$0xff]
    %v324 = vld [vmem:[#allocation2 + $0x22] sm:$0xff]
    %v325 = vld [vmem:[#allocation2 + $0x32] sm:$0xff]
    %v326 = vld [vmem:[#allocation2 + $0x3a] sm:$0xff]
    %v327 = vld [vmem:[#allocation2 + $0x4a] sm:$0xff]
    %v328 = vld [vmem:[#allocation2 + $0x52] sm:$0xff]
    %v329 = vld [vmem:[#allocation2 + $0x62] sm:$0xff]
    %v330 = vld [vmem:[#allocation2 + $0x6a] sm:$0xff]
    %v331 = vld [vmem:[#allocation2 + $0x7a] sm:$0xff]
    %v332 = vld [vmem:[#allocation2 + $0x82] sm:$0xff]
    %v333 = vld [vmem:[#allocation2 + $0x92] sm:$0xff]
    %v334 = vld [vmem:[#allocation2 + $0x9a] sm:$0xff]
    %v335 = vld [vmem:[#allocation2 + $0xaa] sm:$0xff]
    %v336 = vld [vmem:[#allocation2 + $0xb2] sm:$0xff]
    %v337 = vld [vmem:[#allocation2 + $0xc2] sm:$0xff]
    %v338 = vld [vmem:[#allocation2 + $0xca] sm:$0xff]
    %v339 = vld [vmem:[#allocation2 + $0xda] sm:$0xff]
    %v340 = vld [vmem:[#allocation2 + $0xe2] sm:$0xff]
    %v341 = vld [vmem:[#allocation2 + $0xf2] sm:$0xff]
    %v342 = vld [vmem:[#allocation2 + $0xfa] sm:$0xff]
    %v343 = vld [vmem:[#allocation2 + $0x10a] sm:$0xff]
    %v344 = vld [vmem:[#allocation2 + $0x112] sm:$0xff]
    %v345 = vld [vmem:[#allocation2 + $0x122] sm:$0xff]
    %v346 = vld [vmem:[#allocation2 + $0x12a] sm:$0xff]
    %v347 = vld [vmem:[#allocation2 + $0x13a] sm:$0xff]
    %v348 = vld [vmem:[#allocation2 + $0x142] sm:$0xff]
    %v349 = vld [vmem:[#allocation2 + $0x152] sm:$0xff]
    %v350 = vld [vmem:[#allocation2 + $0x15a] sm:$0xff]
    %v351 = vld [vmem:[#allocation2 + $0x16a] sm:$0xff]
    %v352 = vld [vmem:[#allocation2 + $0x172] sm:$0xff]
    %v353 = vld [vmem:[%s192] sm:$0xff]
    %v354 = vld [vmem:[%s192 + $0x8] sm:$0xff]
    %v355 = vld [vmem:[%s192 + $0x18] sm:$0xff]
    %v356 = vld [vmem:[%s192 + $0x20] sm:$0xff]
    %v357 = vld [vmem:[%s192 + $0x30] sm:$0xff]
    %v358 = vld [vmem:[%s192 + $0x38] sm:$0xff]
    %v359 = vld [vmem:[%s192 + $0x48] sm:$0xff]
    %v360 = vld [vmem:[%s192 + $0x50] sm:$0xff]
    %v361 = vld [vmem:[%s192 + $0x60] sm:$0xff]
    %v362 = vld [vmem:[%s192 + $0x68] sm:$0xff]
    %v363 = vld [vmem:[%s192 + $0x78] sm:$0xff]
    %v364 = vld [vmem:[%s192 + $0x80] sm:$0xff]
    %v365 = vld [vmem:[%s192 + $0x90] sm:$0xff]
    %v366 = vld [vmem:[%s192 + $0x98] sm:$0xff]
    %v367 = vld [vmem:[%s192 + $0xa8] sm:$0xff]
    %v368 = vld [vmem:[%s192 + $0xb0] sm:$0xff]
    %v369 = vld [vmem:[%s192 + $0xc0] sm:$0xff]
    %v370 = vld [vmem:[%s192 + $0xc8] sm:$0xff]
    %v371 = vld [vmem:[%s192 + $0xd8] sm:$0xff]
    %v372 = vld [vmem:[%s192 + $0xe0] sm:$0xff]
    %v373 = vld [vmem:[%s192 + $0xf0] sm:$0xff]
    %v374 = vld [vmem:[%s192 + $0xf8] sm:$0xff]
    %v375 = vld [vmem:[%s192 + $0x108] sm:$0xff]
    %v376 = vld [vmem:[%s192 + $0x110] sm:$0xff]
    %v377 = vld [vmem:[%s192 + $0x120] sm:$0xff]
    %v378 = vld [vmem:[%s192 + $0x128] sm:$0xff]
    %v379 = vld [vmem:[%s192 + $0x138] sm:$0xff]
    %v380 = vld [vmem:[%s192 + $0x140] sm:$0xff]
    %v381 = vld [vmem:[%s192 + $0x150] sm:$0xff]
    %v382 = vld [vmem:[%s192 + $0x158] sm:$0xff]
    %v383 = vld [vmem:[%s192 + $0x168] sm:$0xff]
    %v384 = vld [vmem:[%s192 + $0x170] sm:$0xff]
    %v385 = vld [vmem:[%s192 + $0x1] sm:$0xff]
    %v386 = vld [vmem:[%s192 + $0x9] sm:$0xff]
    %v387 = vld [vmem:[%s192 + $0x19] sm:$0xff]
    %v388 = vld [vmem:[%s192 + $0x21] sm:$0xff]
    %v389 = vld [vmem:[%s192 + $0x31] sm:$0xff]
    %v390 = vld [vmem:[%s192 + $0x39] sm:$0xff]
    %v391 = vld [vmem:[%s192 + $0x49] sm:$0xff]
    %v392 = vld [vmem:[%s192 + $0x51] sm:$0xff]
    %v393 = vld [vmem:[%s192 + $0x61] sm:$0xff]
    %v394 = vld [vmem:[%s192 + $0x69] sm:$0xff]
    %v395 = vld [vmem:[%s192 + $0x79] sm:$0xff]
    %v396 = vld [vmem:[%s192 + $0x81] sm:$0xff]
    %v397 = vld [vmem:[%s192 + $0x91] sm:$0xff]
    %v398 = vld [vmem:[%s192 + $0x99] sm:$0xff]
    %v399 = vld [vmem:[%s192 + $0xa9] sm:$0xff]
    %v400 = vld [vmem:[%s192 + $0xb1] sm:$0xff]
    %v401 = vld [vmem:[%s192 + $0xc1] sm:$0xff]
    %v402 = vld [vmem:[%s192 + $0xc9] sm:$0xff]
    %v403 = vld [vmem:[%s192 + $0xd9] sm:$0xff]
    %v404 = vld [vmem:[%s192 + $0xe1] sm:$0xff]
    %v405 = vld [vmem:[%s192 + $0xf1] sm:$0xff]
    %v406 = vld [vmem:[%s192 + $0xf9] sm:$0xff]
    %v407 = vld [vmem:[%s192 + $0x109] sm:$0xff]
    %v408 = vld [vmem:[%s192 + $0x111] sm:$0xff]
    %v409 = vld [vmem:[%s192 + $0x121] sm:$0xff]
    %v410 = vld [vmem:[%s192 + $0x129] sm:$0xff]
    %v411 = vld [vmem:[%s192 + $0x139] sm:$0xff]
    %v412 = vld [vmem:[%s192 + $0x141] sm:$0xff]
    %v413 = vld [vmem:[%s192 + $0x151] sm:$0xff]
    %v414 = vld [vmem:[%s192 + $0x159] sm:$0xff]
    %v415 = vld [vmem:[%s192 + $0x169] sm:$0xff]
    %v416 = vld [vmem:[%s192 + $0x171] sm:$0xff]
    %v417 = vld [vmem:[%s192 + $0x2] sm:$0xff]
    %v418 = vld [vmem:[%s192 + $0xa] sm:$0xff]
    %v419 = vld [vmem:[%s192 + $0x1a] sm:$0xff]
    %v420 = vld [vmem:[%s192 + $0x22] sm:$0xff]
    %v421 = vld [vmem:[%s192 + $0x32] sm:$0xff]
    %v422 = vld [vmem:[%s192 + $0x3a] sm:$0xff]
    %v423 = vld [vmem:[%s192 + $0x4a] sm:$0xff]
    %v424 = vld [vmem:[%s192 + $0x52] sm:$0xff]
    %v425 = vld [vmem:[%s192 + $0x62] sm:$0xff]
    %v426 = vld [vmem:[%s192 + $0x6a] sm:$0xff]
    %v427 = vld [vmem:[%s192 + $0x7a] sm:$0xff]
    %v428 = vld [vmem:[%s192 + $0x82] sm:$0xff]
    %v429 = vld [vmem:[%s192 + $0x92] sm:$0xff]
    %v430 = vld [vmem:[%s192 + $0x9a] sm:$0xff]
    %v431 = vld [vmem:[%s192 + $0xaa] sm:$0xff]
    %v432 = vld [vmem:[%s192 + $0xb2] sm:$0xff]
    %v433 = vld [vmem:[%s192 + $0xc2] sm:$0xff]
    %v434 = vld [vmem:[%s192 + $0xca] sm:$0xff]
    %v435 = vld [vmem:[%s192 + $0xda] sm:$0xff]
    %v436 = vld [vmem:[%s192 + $0xe2] sm:$0xff]
    %v437 = vld [vmem:[%s192 + $0xf2] sm:$0xff]
    %v438 = vld [vmem:[%s192 + $0xfa] sm:$0xff]
    %v439 = vld [vmem:[%s192 + $0x10a] sm:$0xff]
    %v440 = vld [vmem:[%s192 + $0x112] sm:$0xff]
    %v441 = vld [vmem:[%s192 + $0x122] sm:$0xff]
    %v442 = vld [vmem:[%s192 + $0x12a] sm:$0xff]
    %v443 = vld [vmem:[%s192 + $0x13a] sm:$0xff]
    %v444 = vld [vmem:[%s192 + $0x142] sm:$0xff]
    %v445 = vld [vmem:[%s192 + $0x152] sm:$0xff]
    %v446 = vld [vmem:[%s192 + $0x15a] sm:$0xff]
    %v447 = vld [vmem:[%s192 + $0x16a] sm:$0xff]
    %v448 = vld [vmem:[%s192 + $0x172] sm:$0xff]
    %s449 = scalar_lea.vmem [#allocation2], 48
    %v450 = vld [vmem:[%s449] sm:$0xff]
    %v451 = vld [vmem:[%s449 + $0x8] sm:$0xff]
    %v452 = vld [vmem:[%s449 + $0x18] sm:$0xff]
    %v453 = vld [vmem:[%s449 + $0x20] sm:$0xff]
    %v454 = vld [vmem:[%s449 + $0x30] sm:$0xff]
    %v455 = vld [vmem:[%s449 + $0x38] sm:$0xff]
    %v456 = vld [vmem:[%s449 + $0x48] sm:$0xff]
    %v457 = vld [vmem:[%s449 + $0x50] sm:$0xff]
    %v458 = vld [vmem:[%s449 + $0x60] sm:$0xff]
    %v459 = vld [vmem:[%s449 + $0x68] sm:$0xff]
    %v460 = vld [vmem:[%s449 + $0x78] sm:$0xff]
    %v461 = vld [vmem:[%s449 + $0x80] sm:$0xff]
    %v462 = vld [vmem:[%s449 + $0x90] sm:$0xff]
    %v463 = vld [vmem:[%s449 + $0x98] sm:$0xff]
    %v464 = vld [vmem:[%s449 + $0xa8] sm:$0xff]
    %v465 = vld [vmem:[%s449 + $0xb0] sm:$0xff]
    %v466 = vld [vmem:[%s449 + $0xc0] sm:$0xff]
    %v467 = vld [vmem:[%s449 + $0xc8] sm:$0xff]
    %v468 = vld [vmem:[%s449 + $0xd8] sm:$0xff]
    %v469 = vld [vmem:[%s449 + $0xe0] sm:$0xff]
    %v470 = vld [vmem:[%s449 + $0xf0] sm:$0xff]
    %v471 = vld [vmem:[%s449 + $0xf8] sm:$0xff]
    %v472 = vld [vmem:[%s449 + $0x108] sm:$0xff]
    %v473 = vld [vmem:[%s449 + $0x110] sm:$0xff]
    %v474 = vld [vmem:[%s449 + $0x120] sm:$0xff]
    %v475 = vld [vmem:[%s449 + $0x128] sm:$0xff]
    %v476 = vld [vmem:[%s449 + $0x138] sm:$0xff]
    %v477 = vld [vmem:[%s449 + $0x140] sm:$0xff]
    %v478 = vld [vmem:[%s449 + $0x150] sm:$0xff]
    %v479 = vld [vmem:[%s449 + $0x158] sm:$0xff]
    %v480 = vld [vmem:[%s449 + $0x168] sm:$0xff]
    %v481 = vld [vmem:[%s449 + $0x170] sm:$0xff]
    %v482 = vld [vmem:[%s449 + $0x1] sm:$0xff]
    %v483 = vld [vmem:[%s449 + $0x9] sm:$0xff]
    %v484 = vld [vmem:[%s449 + $0x19] sm:$0xff]
    %v485 = vld [vmem:[%s449 + $0x21] sm:$0xff]
    %v486 = vld [vmem:[%s449 + $0x31] sm:$0xff]
    %v487 = vld [vmem:[%s449 + $0x39] sm:$0xff]
    %v488 = vld [vmem:[%s449 + $0x49] sm:$0xff]
    %v489 = vld [vmem:[%s449 + $0x51] sm:$0xff]
    %v490 = vld [vmem:[%s449 + $0x61] sm:$0xff]
    %v491 = vld [vmem:[%s449 + $0x69] sm:$0xff]
    %v492 = vld [vmem:[%s449 + $0x79] sm:$0xff]
    %v493 = vld [vmem:[%s449 + $0x81] sm:$0xff]
    %v494 = vld [vmem:[%s449 + $0x91] sm:$0xff]
    %v495 = vld [vmem:[%s449 + $0x99] sm:$0xff]
    %v496 = vld [vmem:[%s449 + $0xa9] sm:$0xff]
    %v497 = vld [vmem:[%s449 + $0xb1] sm:$0xff]
    %v498 = vld [vmem:[%s449 + $0xc1] sm:$0xff]
    %v499 = vld [vmem:[%s449 + $0xc9] sm:$0xff]
    %v500 = vld [vmem:[%s449 + $0xd9] sm:$0xff]
    %v501 = vld [vmem:[%s449 + $0xe1] sm:$0xff]
    %v502 = vld [vmem:[%s449 + $0xf1] sm:$0xff]
    %v503 = vld [vmem:[%s449 + $0xf9] sm:$0xff]
    %v504 = vld [vmem:[%s449 + $0x109] sm:$0xff]
    %v505 = vld [vmem:[%s449 + $0x111] sm:$0xff]
    %v506 = vld [vmem:[%s449 + $0x121] sm:$0xff]
    %v507 = vld [vmem:[%s449 + $0x129] sm:$0xff]
    %v508 = vld [vmem:[%s449 + $0x139] sm:$0xff]
    %v509 = vld [vmem:[%s449 + $0x141] sm:$0xff]
    %v510 = vld [vmem:[%s449 + $0x151] sm:$0xff]
    %v511 = vld [vmem:[%s449 + $0x159] sm:$0xff]
    %v512 = vld [vmem:[%s449 + $0x169] sm:$0xff]
    %v513 = vld [vmem:[%s449 + $0x171] sm:$0xff]
    %v514 = vld [vmem:[%s449 + $0x2] sm:$0xff]
    %v515 = vld [vmem:[%s449 + $0xa] sm:$0xff]
    %v516 = vld [vmem:[%s449 + $0x1a] sm:$0xff]
    %v517 = vld [vmem:[%s449 + $0x22] sm:$0xff]
    %v518 = vld [vmem:[%s449 + $0x32] sm:$0xff]
    %v519 = vld [vmem:[%s449 + $0x3a] sm:$0xff]
    %v520 = vld [vmem:[%s449 + $0x4a] sm:$0xff]
    %v521 = vld [vmem:[%s449 + $0x52] sm:$0xff]
    %v522 = vld [vmem:[%s449 + $0x62] sm:$0xff]
    %v523 = vld [vmem:[%s449 + $0x6a] sm:$0xff]
    %v524 = vld [vmem:[%s449 + $0x7a] sm:$0xff]
    %v525 = vld [vmem:[%s449 + $0x82] sm:$0xff]
    %v526 = vld [vmem:[%s449 + $0x92] sm:$0xff]
    %v527 = vld [vmem:[%s449 + $0x9a] sm:$0xff]
    %v528 = vld [vmem:[%s449 + $0xaa] sm:$0xff]
    %v529 = vld [vmem:[%s449 + $0xb2] sm:$0xff]
    %v530 = vld [vmem:[%s449 + $0xc2] sm:$0xff]
    %v531 = vld [vmem:[%s449 + $0xca] sm:$0xff]
    %v532 = vld [vmem:[%s449 + $0xda] sm:$0xff]
    %v533 = vld [vmem:[%s449 + $0xe2] sm:$0xff]
    %v534 = vld [vmem:[%s449 + $0xf2] sm:$0xff]
    %v535 = vld [vmem:[%s449 + $0xfa] sm:$0xff]
    %v536 = vld [vmem:[%s449 + $0x10a] sm:$0xff]
    %v537 = vld [vmem:[%s449 + $0x112] sm:$0xff]
    %v538 = vld [vmem:[%s449 + $0x122] sm:$0xff]
    %v539 = vld [vmem:[%s449 + $0x12a] sm:$0xff]
    %v540 = vld [vmem:[%s449 + $0x13a] sm:$0xff]
    %v541 = vld [vmem:[%s449 + $0x142] sm:$0xff]
    %v542 = vld [vmem:[%s449 + $0x152] sm:$0xff]
    %v543 = vld [vmem:[%s449 + $0x15a] sm:$0xff]
    %v544 = vld [vmem:[%s449 + $0x16a] sm:$0xff]
    %v545 = vld [vmem:[%s449 + $0x172] sm:$0xff]
    %578 = vrot.lane.b32.xlu0 %v289, 4
    %v579 = vpop.permute.xlu0 %578
    %580 = vrot.lane.b32.xlu0 %v290, 4
    %v581 = vpop.permute.xlu0 %580
    %582 = vrot.lane.b32.xlu0 %v291, 4
    %v583 = vpop.permute.xlu0 %582
    %584 = vrot.lane.b32.xlu0 %v292, 4
    %v585 = vpop.permute.xlu0 %584
    %586 = vrot.lane.b32.xlu0 %v293, 4
    %v587 = vpop.permute.xlu0 %586
    %588 = vrot.lane.b32.xlu0 %v294, 4
    %v589 = vpop.permute.xlu0 %588
    %590 = vrot.lane.b32.xlu0 %v295, 4
    %v591 = vpop.permute.xlu0 %590
    %592 = vrot.lane.b32.xlu0 %v296, 4
    %v593 = vpop.permute.xlu0 %592
    %594 = vrot.lane.b32.xlu0 %v297, 4
    %v595 = vpop.permute.xlu0 %594
    %596 = vrot.lane.b32.xlu0 %v298, 4
    %v597 = vpop.permute.xlu0 %596
    %598 = vrot.lane.b32.xlu0 %v299, 4
    %v599 = vpop.permute.xlu0 %598
    %600 = vrot.lane.b32.xlu0 %v300, 4
    %v601 = vpop.permute.xlu0 %600
    %602 = vrot.lane.b32.xlu0 %v301, 4
    %v603 = vpop.permute.xlu0 %602
    %604 = vrot.lane.b32.xlu0 %v302, 4
    %v605 = vpop.permute.xlu0 %604
    %606 = vrot.lane.b32.xlu0 %v303, 4
    %v607 = vpop.permute.xlu0 %606
    %608 = vrot.lane.b32.xlu0 %v304, 4
    %v609 = vpop.permute.xlu0 %608
    %610 = vrot.lane.b32.xlu0 %v305, 4
    %v611 = vpop.permute.xlu0 %610
    %612 = vrot.lane.b32.xlu0 %v306, 4
    %v613 = vpop.permute.xlu0 %612
    %614 = vrot.lane.b32.xlu0 %v307, 4
    %v615 = vpop.permute.xlu0 %614
    %616 = vrot.lane.b32.xlu0 %v308, 4
    %v617 = vpop.permute.xlu0 %616
    %618 = vrot.lane.b32.xlu0 %v309, 4
    %v619 = vpop.permute.xlu0 %618
    %620 = vrot.lane.b32.xlu0 %v310, 4
    %v621 = vpop.permute.xlu0 %620
    %622 = vrot.lane.b32.xlu0 %v311, 4
    %v623 = vpop.permute.xlu0 %622
    %624 = vrot.lane.b32.xlu0 %v312, 4
    %v625 = vpop.permute.xlu0 %624
    %626 = vrot.lane.b32.xlu0 %v313, 4
    %v627 = vpop.permute.xlu0 %626
    %628 = vrot.lane.b32.xlu0 %v314, 4
    %v629 = vpop.permute.xlu0 %628
    %630 = vrot.lane.b32.xlu0 %v315, 4
    %v631 = vpop.permute.xlu0 %630
    %632 = vrot.lane.b32.xlu0 %v316, 4
    %v633 = vpop.permute.xlu0 %632
    %634 = vrot.lane.b32.xlu0 %v317, 4
    %v635 = vpop.permute.xlu0 %634
    %636 = vrot.lane.b32.xlu0 %v318, 4
    %v637 = vpop.permute.xlu0 %636
    %638 = vrot.lane.b32.xlu0 %v319, 4
    %v639 = vpop.permute.xlu0 %638
    %640 = vrot.lane.b32.xlu0 %v320, 4
    %v641 = vpop.permute.xlu0 %640
    %706 = vrot.lane.b32.xlu0 %v321, 8
    %v707 = vpop.permute.xlu0 %706
    %708 = vrot.lane.b32.xlu0 %v322, 8
    %v709 = vpop.permute.xlu0 %708
    %710 = vrot.lane.b32.xlu0 %v323, 8
    %v711 = vpop.permute.xlu0 %710
    %712 = vrot.lane.b32.xlu0 %v324, 8
    %v713 = vpop.permute.xlu0 %712
    %714 = vrot.lane.b32.xlu0 %v325, 8
    %v715 = vpop.permute.xlu0 %714
    %716 = vrot.lane.b32.xlu0 %v326, 8
    %v717 = vpop.permute.xlu0 %716
    %718 = vrot.lane.b32.xlu0 %v327, 8
    %v719 = vpop.permute.xlu0 %718
    %720 = vrot.lane.b32.xlu0 %v328, 8
    %v721 = vpop.permute.xlu0 %720
    %722 = vrot.lane.b32.xlu0 %v329, 8
    %v723 = vpop.permute.xlu0 %722
    %724 = vrot.lane.b32.xlu0 %v330, 8
    %v725 = vpop.permute.xlu0 %724
    %726 = vrot.lane.b32.xlu0 %v331, 8
    %v727 = vpop.permute.xlu0 %726
    %728 = vrot.lane.b32.xlu0 %v332, 8
    %v729 = vpop.permute.xlu0 %728
    %730 = vrot.lane.b32.xlu0 %v333, 8
    %v731 = vpop.permute.xlu0 %730
    %732 = vrot.lane.b32.xlu0 %v334, 8
    %v733 = vpop.permute.xlu0 %732
    %734 = vrot.lane.b32.xlu0 %v335, 8
    %v735 = vpop.permute.xlu0 %734
    %736 = vrot.lane.b32.xlu0 %v336, 8
    %v737 = vpop.permute.xlu0 %736
    %738 = vrot.lane.b32.xlu0 %v337, 8
    %v739 = vpop.permute.xlu0 %738
    %740 = vrot.lane.b32.xlu0 %v338, 8
    %v741 = vpop.permute.xlu0 %740
    %742 = vrot.lane.b32.xlu0 %v339, 8
    %v743 = vpop.permute.xlu0 %742
    %744 = vrot.lane.b32.xlu0 %v340, 8
    %v745 = vpop.permute.xlu0 %744
    %746 = vrot.lane.b32.xlu0 %v341, 8
    %v747 = vpop.permute.xlu0 %746
    %748 = vrot.lane.b32.xlu0 %v342, 8
    %v749 = vpop.permute.xlu0 %748
    %750 = vrot.lane.b32.xlu0 %v343, 8
    %v751 = vpop.permute.xlu0 %750
    %752 = vrot.lane.b32.xlu0 %v344, 8
    %v753 = vpop.permute.xlu0 %752
    %754 = vrot.lane.b32.xlu0 %v345, 8
    %v755 = vpop.permute.xlu0 %754
    %756 = vrot.lane.b32.xlu0 %v346, 8
    %v757 = vpop.permute.xlu0 %756
    %758 = vrot.lane.b32.xlu0 %v347, 8
    %v759 = vpop.permute.xlu0 %758
    %760 = vrot.lane.b32.xlu0 %v348, 8
    %v761 = vpop.permute.xlu0 %760
    %762 = vrot.lane.b32.xlu0 %v349, 8
    %v763 = vpop.permute.xlu0 %762
    %764 = vrot.lane.b32.xlu0 %v350, 8
    %v765 = vpop.permute.xlu0 %764
    %766 = vrot.lane.b32.xlu0 %v351, 8
    %v767 = vpop.permute.xlu0 %766
    %768 = vrot.lane.b32.xlu0 %v352, 8
    %v769 = vpop.permute.xlu0 %768
    %834 = vrot.lane.b32.xlu0 %v353, 12
    %v835 = vpop.permute.xlu0 %834
    %836 = vrot.lane.b32.xlu0 %v354, 12
    %v837 = vpop.permute.xlu0 %836
    %838 = vrot.lane.b32.xlu0 %v355, 12
    %v839 = vpop.permute.xlu0 %838
    %840 = vrot.lane.b32.xlu0 %v356, 12
    %v841 = vpop.permute.xlu0 %840
    %842 = vrot.lane.b32.xlu0 %v357, 12
    %v843 = vpop.permute.xlu0 %842
    %844 = vrot.lane.b32.xlu0 %v358, 12
    %v845 = vpop.permute.xlu0 %844
    %846 = vrot.lane.b32.xlu0 %v359, 12
    %v847 = vpop.permute.xlu0 %846
    %848 = vrot.lane.b32.xlu0 %v360, 12
    %v849 = vpop.permute.xlu0 %848
    %850 = vrot.lane.b32.xlu0 %v361, 12
    %v851 = vpop.permute.xlu0 %850
    %852 = vrot.lane.b32.xlu0 %v362, 12
    %v853 = vpop.permute.xlu0 %852
    %854 = vrot.lane.b32.xlu0 %v363, 12
    %v855 = vpop.permute.xlu0 %854
    %856 = vrot.lane.b32.xlu0 %v364, 12
    %v857 = vpop.permute.xlu0 %856
    %858 = vrot.lane.b32.xlu0 %v365, 12
    %v859 = vpop.permute.xlu0 %858
    %860 = vrot.lane.b32.xlu0 %v366, 12
    %v861 = vpop.permute.xlu0 %860
    %862 = vrot.lane.b32.xlu0 %v367, 12
    %v863 = vpop.permute.xlu0 %862
    %864 = vrot.lane.b32.xlu0 %v368, 12
    %v865 = vpop.permute.xlu0 %864
    %866 = vrot.lane.b32.xlu0 %v369, 12
    %v867 = vpop.permute.xlu0 %866
    %868 = vrot.lane.b32.xlu0 %v370, 12
    %v869 = vpop.permute.xlu0 %868
    %870 = vrot.lane.b32.xlu0 %v371, 12
    %v871 = vpop.permute.xlu0 %870
    %872 = vrot.lane.b32.xlu0 %v372, 12
    %v873 = vpop.permute.xlu0 %872
    %874 = vrot.lane.b32.xlu0 %v373, 12
    %v875 = vpop.permute.xlu0 %874
    %876 = vrot.lane.b32.xlu0 %v374, 12
    %v877 = vpop.permute.xlu0 %876
    %878 = vrot.lane.b32.xlu0 %v375, 12
    %v879 = vpop.permute.xlu0 %878
    %880 = vrot.lane.b32.xlu0 %v376, 12
    %v881 = vpop.permute.xlu0 %880
    %882 = vrot.lane.b32.xlu0 %v377, 12
    %v883 = vpop.permute.xlu0 %882
    %884 = vrot.lane.b32.xlu0 %v378, 12
    %v885 = vpop.permute.xlu0 %884
    %886 = vrot.lane.b32.xlu0 %v379, 12
    %v887 = vpop.permute.xlu0 %886
    %888 = vrot.lane.b32.xlu0 %v380, 12
    %v889 = vpop.permute.xlu0 %888
    %890 = vrot.lane.b32.xlu0 %v381, 12
    %v891 = vpop.permute.xlu0 %890
    %892 = vrot.lane.b32.xlu0 %v382, 12
    %v893 = vpop.permute.xlu0 %892
    %894 = vrot.lane.b32.xlu0 %v383, 12
    %v895 = vpop.permute.xlu0 %894
    %896 = vrot.lane.b32.xlu0 %v384, 12
    %v897 = vpop.permute.xlu0 %896
    %962 = vrot.lane.b32.xlu0 %v385, 16
    %v963 = vpop.permute.xlu0 %962
    %964 = vrot.lane.b32.xlu0 %v386, 16
    %v965 = vpop.permute.xlu0 %964
    %966 = vrot.lane.b32.xlu0 %v387, 16
    %v967 = vpop.permute.xlu0 %966
    %968 = vrot.lane.b32.xlu0 %v388, 16
    %v969 = vpop.permute.xlu0 %968
    %970 = vrot.lane.b32.xlu0 %v389, 16
    %v971 = vpop.permute.xlu0 %970
    %972 = vrot.lane.b32.xlu0 %v390, 16
    %v973 = vpop.permute.xlu0 %972
    %974 = vrot.lane.b32.xlu0 %v391, 16
    %v975 = vpop.permute.xlu0 %974
    %976 = vrot.lane.b32.xlu0 %v392, 16
    %v977 = vpop.permute.xlu0 %976
    %978 = vrot.lane.b32.xlu0 %v393, 16
    %v979 = vpop.permute.xlu0 %978
    %980 = vrot.lane.b32.xlu0 %v394, 16
    %v981 = vpop.permute.xlu0 %980
    %982 = vrot.lane.b32.xlu0 %v395, 16
    %v983 = vpop.permute.xlu0 %982
    %984 = vrot.lane.b32.xlu0 %v396, 16
    %v985 = vpop.permute.xlu0 %984
    %986 = vrot.lane.b32.xlu0 %v397, 16
    %v987 = vpop.permute.xlu0 %986
    %988 = vrot.lane.b32.xlu0 %v398, 16
    %v989 = vpop.permute.xlu0 %988
    %990 = vrot.lane.b32.xlu0 %v399, 16
    %v991 = vpop.permute.xlu0 %990
    %992 = vrot.lane.b32.xlu0 %v400, 16
    %v993 = vpop.permute.xlu0 %992
    %994 = vrot.lane.b32.xlu0 %v401, 16
    %v995 = vpop.permute.xlu0 %994
    %996 = vrot.lane.b32.xlu0 %v402, 16
    %v997 = vpop.permute.xlu0 %996
    %998 = vrot.lane.b32.xlu0 %v403, 16
    %v999 = vpop.permute.xlu0 %998
    %1000 = vrot.lane.b32.xlu0 %v404, 16
    %v1001 = vpop.permute.xlu0 %1000
    %1002 = vrot.lane.b32.xlu0 %v405, 16
    %v1003 = vpop.permute.xlu0 %1002
    %1004 = vrot.lane.b32.xlu0 %v406, 16
    %v1005 = vpop.permute.xlu0 %1004
    %1006 = vrot.lane.b32.xlu0 %v407, 16
    %v1007 = vpop.permute.xlu0 %1006
    %1008 = vrot.lane.b32.xlu0 %v408, 16
    %v1009 = vpop.permute.xlu0 %1008
    %1010 = vrot.lane.b32.xlu0 %v409, 16
    %v1011 = vpop.permute.xlu0 %1010
    %1012 = vrot.lane.b32.xlu0 %v410, 16
    %v1013 = vpop.permute.xlu0 %1012
    %1014 = vrot.lane.b32.xlu0 %v411, 16
    %v1015 = vpop.permute.xlu0 %1014
    %1016 = vrot.lane.b32.xlu0 %v412, 16
    %v1017 = vpop.permute.xlu0 %1016
    %1018 = vrot.lane.b32.xlu0 %v413, 16
    %v1019 = vpop.permute.xlu0 %1018
    %1020 = vrot.lane.b32.xlu0 %v414, 16
    %v1021 = vpop.permute.xlu0 %1020
    %1022 = vrot.lane.b32.xlu0 %v415, 16
    %v1023 = vpop.permute.xlu0 %1022
    %1024 = vrot.lane.b32.xlu0 %v416, 16
    %v1025 = vpop.permute.xlu0 %1024
    %1090 = vrot.lane.b32.xlu0 %v417, 20
    %v1091 = vpop.permute.xlu0 %1090
    %1092 = vrot.lane.b32.xlu0 %v418, 20
    %v1093 = vpop.permute.xlu0 %1092
    %1094 = vrot.lane.b32.xlu0 %v419, 20
    %v1095 = vpop.permute.xlu0 %1094
    %1096 = vrot.lane.b32.xlu0 %v420, 20
    %v1097 = vpop.permute.xlu0 %1096
    %1098 = vrot.lane.b32.xlu0 %v421, 20
    %v1099 = vpop.permute.xlu0 %1098
    %1100 = vrot.lane.b32.xlu0 %v422, 20
    %v1101 = vpop.permute.xlu0 %1100
    %1102 = vrot.lane.b32.xlu0 %v423, 20
    %v1103 = vpop.permute.xlu0 %1102
    %1104 = vrot.lane.b32.xlu0 %v424, 20
    %v1105 = vpop.permute.xlu0 %1104
    %1106 = vrot.lane.b32.xlu0 %v425, 20
    %v1107 = vpop.permute.xlu0 %1106
    %1108 = vrot.lane.b32.xlu0 %v426, 20
    %v1109 = vpop.permute.xlu0 %1108
    %1110 = vrot.lane.b32.xlu0 %v427, 20
    %v1111 = vpop.permute.xlu0 %1110
    %1112 = vrot.lane.b32.xlu0 %v428, 20
    %v1113 = vpop.permute.xlu0 %1112
    %1114 = vrot.lane.b32.xlu0 %v429, 20
    %v1115 = vpop.permute.xlu0 %1114
    %1116 = vrot.lane.b32.xlu0 %v430, 20
    %v1117 = vpop.permute.xlu0 %1116
    %1118 = vrot.lane.b32.xlu0 %v431, 20
    %v1119 = vpop.permute.xlu0 %1118
    %1120 = vrot.lane.b32.xlu0 %v432, 20
    %v1121 = vpop.permute.xlu0 %1120
    %1122 = vrot.lane.b32.xlu0 %v433, 20
    %v1123 = vpop.permute.xlu0 %1122
    %1124 = vrot.lane.b32.xlu0 %v434, 20
    %v1125 = vpop.permute.xlu0 %1124
    %1126 = vrot.lane.b32.xlu0 %v435, 20
    %v1127 = vpop.permute.xlu0 %1126
    %1128 = vrot.lane.b32.xlu0 %v436, 20
    %v1129 = vpop.permute.xlu0 %1128
    %1130 = vrot.lane.b32.xlu0 %v437, 20
    %v1131 = vpop.permute.xlu0 %1130
    %1132 = vrot.lane.b32.xlu0 %v438, 20
    %v1133 = vpop.permute.xlu0 %1132
    %1134 = vrot.lane.b32.xlu0 %v439, 20
    %v1135 = vpop.permute.xlu0 %1134
    %1136 = vrot.lane.b32.xlu0 %v440, 20
    %v1137 = vpop.permute.xlu0 %1136
    %1138 = vrot.lane.b32.xlu0 %v441, 20
    %v1139 = vpop.permute.xlu0 %1138
    %1140 = vrot.lane.b32.xlu0 %v442, 20
    %v1141 = vpop.permute.xlu0 %1140
    %1142 = vrot.lane.b32.xlu0 %v443, 20
    %v1143 = vpop.permute.xlu0 %1142
    %1144 = vrot.lane.b32.xlu0 %v444, 20
    %v1145 = vpop.permute.xlu0 %1144
    %1146 = vrot.lane.b32.xlu0 %v445, 20
    %v1147 = vpop.permute.xlu0 %1146
    %1148 = vrot.lane.b32.xlu0 %v446, 20
    %v1149 = vpop.permute.xlu0 %1148
    %1150 = vrot.lane.b32.xlu0 %v447, 20
    %v1151 = vpop.permute.xlu0 %1150
    %1152 = vrot.lane.b32.xlu0 %v448, 20
    %v1153 = vpop.permute.xlu0 %1152
    %1218 = vrot.lane.b32.xlu0 %v450, 24
    %v1219 = vpop.permute.xlu0 %1218
    %1220 = vrot.lane.b32.xlu0 %v451, 24
    %v1221 = vpop.permute.xlu0 %1220
    %1222 = vrot.lane.b32.xlu0 %v452, 24
    %v1223 = vpop.permute.xlu0 %1222
    %1224 = vrot.lane.b32.xlu0 %v453, 24
    %v1225 = vpop.permute.xlu0 %1224
    %1226 = vrot.lane.b32.xlu0 %v454, 24
    %v1227 = vpop.permute.xlu0 %1226
    %1228 = vrot.lane.b32.xlu0 %v455, 24
    %v1229 = vpop.permute.xlu0 %1228
    %1230 = vrot.lane.b32.xlu0 %v456, 24
    %v1231 = vpop.permute.xlu0 %1230
    %1232 = vrot.lane.b32.xlu0 %v457, 24
    %v1233 = vpop.permute.xlu0 %1232
    %1234 = vrot.lane.b32.xlu0 %v458, 24
    %v1235 = vpop.permute.xlu0 %1234
    %1236 = vrot.lane.b32.xlu0 %v459, 24
    %v1237 = vpop.permute.xlu0 %1236
    %1238 = vrot.lane.b32.xlu0 %v460, 24
    %v1239 = vpop.permute.xlu0 %1238
    %1240 = vrot.lane.b32.xlu0 %v461, 24
    %v1241 = vpop.permute.xlu0 %1240
    %1242 = vrot.lane.b32.xlu0 %v462, 24
    %v1243 = vpop.permute.xlu0 %1242
    %1244 = vrot.lane.b32.xlu0 %v463, 24
    %v1245 = vpop.permute.xlu0 %1244
    %1246 = vrot.lane.b32.xlu0 %v464, 24
    %v1247 = vpop.permute.xlu0 %1246
    %1248 = vrot.lane.b32.xlu0 %v465, 24
    %v1249 = vpop.permute.xlu0 %1248
    %1250 = vrot.lane.b32.xlu0 %v466, 24
    %v1251 = vpop.permute.xlu0 %1250
    %1252 = vrot.lane.b32.xlu0 %v467, 24
    %v1253 = vpop.permute.xlu0 %1252
    %1254 = vrot.lane.b32.xlu0 %v468, 24
    %v1255 = vpop.permute.xlu0 %1254
    %1256 = vrot.lane.b32.xlu0 %v469, 24
    %v1257 = vpop.permute.xlu0 %1256
    %1258 = vrot.lane.b32.xlu0 %v470, 24
    %v1259 = vpop.permute.xlu0 %1258
    %1260 = vrot.lane.b32.xlu0 %v471, 24
    %v1261 = vpop.permute.xlu0 %1260
    %1262 = vrot.lane.b32.xlu0 %v472, 24
    %v1263 = vpop.permute.xlu0 %1262
    %1264 = vrot.lane.b32.xlu0 %v473, 24
    %v1265 = vpop.permute.xlu0 %1264
    %1266 = vrot.lane.b32.xlu0 %v474, 24
    %v1267 = vpop.permute.xlu0 %1266
    %1268 = vrot.lane.b32.xlu0 %v475, 24
    %v1269 = vpop.permute.xlu0 %1268
    %1270 = vrot.lane.b32.xlu0 %v476, 24
    %v1271 = vpop.permute.xlu0 %1270
    %1272 = vrot.lane.b32.xlu0 %v477, 24
    %v1273 = vpop.permute.xlu0 %1272
    %1274 = vrot.lane.b32.xlu0 %v478, 24
    %v1275 = vpop.permute.xlu0 %1274
    %1276 = vrot.lane.b32.xlu0 %v479, 24
    %v1277 = vpop.permute.xlu0 %1276
    %1278 = vrot.lane.b32.xlu0 %v480, 24
    %v1279 = vpop.permute.xlu0 %1278
    %1280 = vrot.lane.b32.xlu0 %v481, 24
    %v1281 = vpop.permute.xlu0 %1280
    %1346 = vrot.lane.b32.xlu0 %v482, 28
    %v1347 = vpop.permute.xlu0 %1346
    %1348 = vrot.lane.b32.xlu0 %v483, 28
    %v1349 = vpop.permute.xlu0 %1348
    %1350 = vrot.lane.b32.xlu0 %v484, 28
    %v1351 = vpop.permute.xlu0 %1350
    %1352 = vrot.lane.b32.xlu0 %v485, 28
    %v1353 = vpop.permute.xlu0 %1352
    %1354 = vrot.lane.b32.xlu0 %v486, 28
    %v1355 = vpop.permute.xlu0 %1354
    %1356 = vrot.lane.b32.xlu0 %v487, 28
    %v1357 = vpop.permute.xlu0 %1356
    %1358 = vrot.lane.b32.xlu0 %v488, 28
    %v1359 = vpop.permute.xlu0 %1358
    %1360 = vrot.lane.b32.xlu0 %v489, 28
    %v1361 = vpop.permute.xlu0 %1360
    %1362 = vrot.lane.b32.xlu0 %v490, 28
    %v1363 = vpop.permute.xlu0 %1362
    %1364 = vrot.lane.b32.xlu0 %v491, 28
    %v1365 = vpop.permute.xlu0 %1364
    %1366 = vrot.lane.b32.xlu0 %v492, 28
    %v1367 = vpop.permute.xlu0 %1366
    %1368 = vrot.lane.b32.xlu0 %v493, 28
    %v1369 = vpop.permute.xlu0 %1368
    %1370 = vrot.lane.b32.xlu0 %v494, 28
    %v1371 = vpop.permute.xlu0 %1370
    %1372 = vrot.lane.b32.xlu0 %v495, 28
    %v1373 = vpop.permute.xlu0 %1372
    %1374 = vrot.lane.b32.xlu0 %v496, 28
    %v1375 = vpop.permute.xlu0 %1374
    %1376 = vrot.lane.b32.xlu0 %v497, 28
    %v1377 = vpop.permute.xlu0 %1376
    %1378 = vrot.lane.b32.xlu0 %v498, 28
    %v1379 = vpop.permute.xlu0 %1378
    %1380 = vrot.lane.b32.xlu0 %v499, 28
    %v1381 = vpop.permute.xlu0 %1380
    %1382 = vrot.lane.b32.xlu0 %v500, 28
    %v1383 = vpop.permute.xlu0 %1382
    %1384 = vrot.lane.b32.xlu0 %v501, 28
    %v1385 = vpop.permute.xlu0 %1384
    %1386 = vrot.lane.b32.xlu0 %v502, 28
    %v1387 = vpop.permute.xlu0 %1386
    %1388 = vrot.lane.b32.xlu0 %v503, 28
    %v1389 = vpop.permute.xlu0 %1388
    %1390 = vrot.lane.b32.xlu0 %v504, 28
    %v1391 = vpop.permute.xlu0 %1390
    %1392 = vrot.lane.b32.xlu0 %v505, 28
    %v1393 = vpop.permute.xlu0 %1392
    %1394 = vrot.lane.b32.xlu0 %v506, 28
    %v1395 = vpop.permute.xlu0 %1394
    %1396 = vrot.lane.b32.xlu0 %v507, 28
    %v1397 = vpop.permute.xlu0 %1396
    %1398 = vrot.lane.b32.xlu0 %v508, 28
    %v1399 = vpop.permute.xlu0 %1398
    %1400 = vrot.lane.b32.xlu0 %v509, 28
    %v1401 = vpop.permute.xlu0 %1400
    %1402 = vrot.lane.b32.xlu0 %v510, 28
    %v1403 = vpop.permute.xlu0 %1402
    %1404 = vrot.lane.b32.xlu0 %v511, 28
    %v1405 = vpop.permute.xlu0 %1404
    %1406 = vrot.lane.b32.xlu0 %v512, 28
    %v1407 = vpop.permute.xlu0 %1406
    %1408 = vrot.lane.b32.xlu0 %v513, 28
    %v1409 = vpop.permute.xlu0 %1408
    %1474 = vrot.lane.b32.xlu0 %v514, 32
    %v1475 = vpop.permute.xlu0 %1474
    %1476 = vrot.lane.b32.xlu0 %v515, 32
    %v1477 = vpop.permute.xlu0 %1476
    %1478 = vrot.lane.b32.xlu0 %v516, 32
    %v1479 = vpop.permute.xlu0 %1478
    %1480 = vrot.lane.b32.xlu0 %v517, 32
    %v1481 = vpop.permute.xlu0 %1480
    %1482 = vrot.lane.b32.xlu0 %v518, 32
    %v1483 = vpop.permute.xlu0 %1482
    %1484 = vrot.lane.b32.xlu0 %v519, 32
    %v1485 = vpop.permute.xlu0 %1484
    %1486 = vrot.lane.b32.xlu0 %v520, 32
    %v1487 = vpop.permute.xlu0 %1486
    %1488 = vrot.lane.b32.xlu0 %v521, 32
    %v1489 = vpop.permute.xlu0 %1488
    %1490 = vrot.lane.b32.xlu0 %v522, 32
    %v1491 = vpop.permute.xlu0 %1490
    %1492 = vrot.lane.b32.xlu0 %v523, 32
    %v1493 = vpop.permute.xlu0 %1492
    %1494 = vrot.lane.b32.xlu0 %v524, 32
    %v1495 = vpop.permute.xlu0 %1494
    %1496 = vrot.lane.b32.xlu0 %v525, 32
    %v1497 = vpop.permute.xlu0 %1496
    %1498 = vrot.lane.b32.xlu0 %v526, 32
    %v1499 = vpop.permute.xlu0 %1498
    %1500 = vrot.lane.b32.xlu0 %v527, 32
    %v1501 = vpop.permute.xlu0 %1500
    %1502 = vrot.lane.b32.xlu0 %v528, 32
    %v1503 = vpop.permute.xlu0 %1502
    %1504 = vrot.lane.b32.xlu0 %v529, 32
    %v1505 = vpop.permute.xlu0 %1504
    %1506 = vrot.lane.b32.xlu0 %v530, 32
    %v1507 = vpop.permute.xlu0 %1506
    %1508 = vrot.lane.b32.xlu0 %v531, 32
    %v1509 = vpop.permute.xlu0 %1508
    %1510 = vrot.lane.b32.xlu0 %v532, 32
    %v1511 = vpop.permute.xlu0 %1510
    %1512 = vrot.lane.b32.xlu0 %v533, 32
    %v1513 = vpop.permute.xlu0 %1512
    %1514 = vrot.lane.b32.xlu0 %v534, 32
    %v1515 = vpop.permute.xlu0 %1514
    %1516 = vrot.lane.b32.xlu0 %v535, 32
    %v1517 = vpop.permute.xlu0 %1516
    %1518 = vrot.lane.b32.xlu0 %v536, 32
    %v1519 = vpop.permute.xlu0 %1518
    %1520 = vrot.lane.b32.xlu0 %v537, 32
    %v1521 = vpop.permute.xlu0 %1520
    %1522 = vrot.lane.b32.xlu0 %v538, 32
    %v1523 = vpop.permute.xlu0 %1522
    %1524 = vrot.lane.b32.xlu0 %v539, 32
    %v1525 = vpop.permute.xlu0 %1524
    %1526 = vrot.lane.b32.xlu0 %v540, 32
    %v1527 = vpop.permute.xlu0 %1526
    %1528 = vrot.lane.b32.xlu0 %v541, 32
    %v1529 = vpop.permute.xlu0 %1528
    %1530 = vrot.lane.b32.xlu0 %v542, 32
    %v1531 = vpop.permute.xlu0 %1530
    %1532 = vrot.lane.b32.xlu0 %v543, 32
    %v1533 = vpop.permute.xlu0 %1532
    %1534 = vrot.lane.b32.xlu0 %v544, 32
    %v1535 = vpop.permute.xlu0 %1534
    %1536 = vrot.lane.b32.xlu0 %v545, 32
    %v1537 = vpop.permute.xlu0 %1536
    %v1570 = vsel %vm18, %v257, %v579
    %v1571 = vsel %vm18, %v258, %v581
    %v1572 = vsel %vm18, %v259, %v583
    %v1573 = vsel %vm18, %v260, %v585
    %v1574 = vsel %vm18, %v261, %v587
    %v1575 = vsel %vm18, %v262, %v589
    %v1576 = vsel %vm18, %v263, %v591
    %v1577 = vsel %vm18, %v264, %v593
    %v1578 = vsel %vm18, %v265, %v595
    %v1579 = vsel %vm18, %v266, %v597
    %v1580 = vsel %vm18, %v267, %v599
    %v1581 = vsel %vm18, %v268, %v601
    %v1582 = vsel %vm18, %v269, %v603
    %v1583 = vsel %vm18, %v270, %v605
    %v1584 = vsel %vm18, %v271, %v607
    %v1585 = vsel %vm18, %v272, %v609
    %v1586 = vsel %vm18, %v273, %v611
    %v1587 = vsel %vm18, %v274, %v613
    %v1588 = vsel %vm18, %v275, %v615
    %v1589 = vsel %vm18, %v276, %v617
    %v1590 = vsel %vm18, %v277, %v619
    %v1591 = vsel %vm18, %v278, %v621
    %v1592 = vsel %vm18, %v279, %v623
    %v1593 = vsel %vm18, %v280, %v625
    %v1594 = vsel %vm18, %v281, %v627
    %v1595 = vsel %vm18, %v282, %v629
    %v1596 = vsel %vm18, %v283, %v631
    %v1597 = vsel %vm18, %v284, %v633
    %v1598 = vsel %vm18, %v285, %v635
    %v1599 = vsel %vm18, %v286, %v637
    %v1600 = vsel %vm18, %v287, %v639
    %v1601 = vsel %vm18, %v288, %v641
    %vm1602 = vcmask 64512
    %v1603 = vsel %vm1602, %v1570, %v707
    %v1604 = vsel %vm1602, %v1571, %v709
    %v1605 = vsel %vm1602, %v1572, %v711
    %v1606 = vsel %vm1602, %v1573, %v713
    %v1607 = vsel %vm1602, %v1574, %v715
    %v1608 = vsel %vm1602, %v1575, %v717
    %v1609 = vsel %vm1602, %v1576, %v719
    %v1610 = vsel %vm1602, %v1577, %v721
    %v1611 = vsel %vm1602, %v1578, %v723
    %v1612 = vsel %vm1602, %v1579, %v725
    %v1613 = vsel %vm1602, %v1580, %v727
    %v1614 = vsel %vm1602, %v1581, %v729
    %v1615 = vsel %vm1602, %v1582, %v731
    %v1616 = vsel %vm1602, %v1583, %v733
    %v1617 = vsel %vm1602, %v1584, %v735
    %v1618 = vsel %vm1602, %v1585, %v737
    %v1619 = vsel %vm1602, %v1586, %v739
    %v1620 = vsel %vm1602, %v1587, %v741
    %v1621 = vsel %vm1602, %v1588, %v743
    %v1622 = vsel %vm1602, %v1589, %v745
    %v1623 = vsel %vm1602, %v1590, %v747
    %v1624 = vsel %vm1602, %v1591, %v749
    %v1625 = vsel %vm1602, %v1592, %v751
    %v1626 = vsel %vm1602, %v1593, %v753
    %v1627 = vsel %vm1602, %v1594, %v755
    %v1628 = vsel %vm1602, %v1595, %v757
    %v1629 = vsel %vm1602, %v1596, %v759
    %v1630 = vsel %vm1602, %v1597, %v761
    %v1631 = vsel %vm1602, %v1598, %v763
    %v1632 = vsel %vm1602, %v1599, %v765
    %v1633 = vsel %vm1602, %v1600, %v767
    %v1634 = vsel %vm1602, %v1601, %v769
    %vm1635 = vcmask 97280
    %v1636 = vsel %vm1635, %v1603, %v835
    %v1637 = vsel %vm1635, %v1604, %v837
    %v1638 = vsel %vm1635, %v1605, %v839
    %v1639 = vsel %vm1635, %v1606, %v841
    %v1640 = vsel %vm1635, %v1607, %v843
    %v1641 = vsel %vm1635, %v1608, %v845
    %v1642 = vsel %vm1635, %v1609, %v847
    %v1643 = vsel %vm1635, %v1610, %v849
    %v1644 = vsel %vm1635, %v1611, %v851
    %v1645 = vsel %vm1635, %v1612, %v853
    %v1646 = vsel %vm1635, %v1613, %v855
    %v1647 = vsel %vm1635, %v1614, %v857
    %v1648 = vsel %vm1635, %v1615, %v859
    %v1649 = vsel %vm1635, %v1616, %v861
    %v1650 = vsel %vm1635, %v1617, %v863
    %v1651 = vsel %vm1635, %v1618, %v865
    %v1652 = vsel %vm1635, %v1619, %v867
    %v1653 = vsel %vm1635, %v1620, %v869
    %v1654 = vsel %vm1635, %v1621, %v871
    %v1655 = vsel %vm1635, %v1622, %v873
    %v1656 = vsel %vm1635, %v1623, %v875
    %v1657 = vsel %vm1635, %v1624, %v877
    %v1658 = vsel %vm1635, %v1625, %v879
    %v1659 = vsel %vm1635, %v1626, %v881
    %v1660 = vsel %vm1635, %v1627, %v883
    %v1661 = vsel %vm1635, %v1628, %v885
    %v1662 = vsel %vm1635, %v1629, %v887
    %v1663 = vsel %vm1635, %v1630, %v889
    %v1664 = vsel %vm1635, %v1631, %v891
    %v1665 = vsel %vm1635, %v1632, %v893
    %v1666 = vsel %vm1635, %v1633, %v895
    %v1667 = vsel %vm1635, %v1634, %v897
    %vm1668 = vcmask 130048
    %v1669 = vsel %vm1668, %v1636, %v963
    %v1670 = vsel %vm1668, %v1637, %v965
    %v1671 = vsel %vm1668, %v1638, %v967
    %v1672 = vsel %vm1668, %v1639, %v969
    %v1673 = vsel %vm1668, %v1640, %v971
    %v1674 = vsel %vm1668, %v1641, %v973
    %v1675 = vsel %vm1668, %v1642, %v975
    %v1676 = vsel %vm1668, %v1643, %v977
    %v1677 = vsel %vm1668, %v1644, %v979
    %v1678 = vsel %vm1668, %v1645, %v981
    %v1679 = vsel %vm1668, %v1646, %v983
    %v1680 = vsel %vm1668, %v1647, %v985
    %v1681 = vsel %vm1668, %v1648, %v987
    %v1682 = vsel %vm1668, %v1649, %v989
    %v1683 = vsel %vm1668, %v1650, %v991
    %v1684 = vsel %vm1668, %v1651, %v993
    %v1685 = vsel %vm1668, %v1652, %v995
    %v1686 = vsel %vm1668, %v1653, %v997
    %v1687 = vsel %vm1668, %v1654, %v999
    %v1688 = vsel %vm1668, %v1655, %v1001
    %v1689 = vsel %vm1668, %v1656, %v1003
    %v1690 = vsel %vm1668, %v1657, %v1005
    %v1691 = vsel %vm1668, %v1658, %v1007
    %v1692 = vsel %vm1668, %v1659, %v1009
    %v1693 = vsel %vm1668, %v1660, %v1011
    %v1694 = vsel %vm1668, %v1661, %v1013
    %v1695 = vsel %vm1668, %v1662, %v1015
    %v1696 = vsel %vm1668, %v1663, %v1017
    %v1697 = vsel %vm1668, %v1664, %v1019
    %v1698 = vsel %vm1668, %v1665, %v1021
    %v1699 = vsel %vm1668, %v1666, %v1023
    %v1700 = vsel %vm1668, %v1667, %v1025
    %vm1701 = vcmask 162816
    %v1702 = vsel %vm1701, %v1669, %v1091
    %v1703 = vsel %vm1701, %v1670, %v1093
    %v1704 = vsel %vm1701, %v1671, %v1095
    %v1705 = vsel %vm1701, %v1672, %v1097
    %v1706 = vsel %vm1701, %v1673, %v1099
    %v1707 = vsel %vm1701, %v1674, %v1101
    %v1708 = vsel %vm1701, %v1675, %v1103
    %v1709 = vsel %vm1701, %v1676, %v1105
    %v1710 = vsel %vm1701, %v1677, %v1107
    %v1711 = vsel %vm1701, %v1678, %v1109
    %v1712 = vsel %vm1701, %v1679, %v1111
    %v1713 = vsel %vm1701, %v1680, %v1113
    %v1714 = vsel %vm1701, %v1681, %v1115
    %v1715 = vsel %vm1701, %v1682, %v1117
    %v1716 = vsel %vm1701, %v1683, %v1119
    %v1717 = vsel %vm1701, %v1684, %v1121
    %v1718 = vsel %vm1701, %v1685, %v1123
    %v1719 = vsel %vm1701, %v1686, %v1125
    %v1720 = vsel %vm1701, %v1687, %v1127
    %v1721 = vsel %vm1701, %v1688, %v1129
    %v1722 = vsel %vm1701, %v1689, %v1131
    %v1723 = vsel %vm1701, %v1690, %v1133
    %v1724 = vsel %vm1701, %v1691, %v1135
    %v1725 = vsel %vm1701, %v1692, %v1137
    %v1726 = vsel %vm1701, %v1693, %v1139
    %v1727 = vsel %vm1701, %v1694, %v1141
    %v1728 = vsel %vm1701, %v1695, %v1143
    %v1729 = vsel %vm1701, %v1696, %v1145
    %v1730 = vsel %vm1701, %v1697, %v1147
    %v1731 = vsel %vm1701, %v1698, %v1149
    %v1732 = vsel %vm1701, %v1699, %v1151
    %v1733 = vsel %vm1701, %v1700, %v1153
    %vm1734 = vcmask 195584
    %v1735 = vsel %vm1734, %v1702, %v1219
    %v1736 = vsel %vm1734, %v1703, %v1221
    %v1737 = vsel %vm1734, %v1704, %v1223
    %v1738 = vsel %vm1734, %v1705, %v1225
    %v1739 = vsel %vm1734, %v1706, %v1227
    %v1740 = vsel %vm1734, %v1707, %v1229
    %v1741 = vsel %vm1734, %v1708, %v1231
    %v1742 = vsel %vm1734, %v1709, %v1233
    %v1743 = vsel %vm1734, %v1710, %v1235
    %v1744 = vsel %vm1734, %v1711, %v1237
    %v1745 = vsel %vm1734, %v1712, %v1239
    %v1746 = vsel %vm1734, %v1713, %v1241
    %v1747 = vsel %vm1734, %v1714, %v1243
    %v1748 = vsel %vm1734, %v1715, %v1245
    %v1749 = vsel %vm1734, %v1716, %v1247
    %v1750 = vsel %vm1734, %v1717, %v1249
    %v1751 = vsel %vm1734, %v1718, %v1251
    %v1752 = vsel %vm1734, %v1719, %v1253
    %v1753 = vsel %vm1734, %v1720, %v1255
    %v1754 = vsel %vm1734, %v1721, %v1257
    %v1755 = vsel %vm1734, %v1722, %v1259
    %v1756 = vsel %vm1734, %v1723, %v1261
    %v1757 = vsel %vm1734, %v1724, %v1263
    %v1758 = vsel %vm1734, %v1725, %v1265
    %v1759 = vsel %vm1734, %v1726, %v1267
    %v1760 = vsel %vm1734, %v1727, %v1269
    %v1761 = vsel %vm1734, %v1728, %v1271
    %v1762 = vsel %vm1734, %v1729, %v1273
    %v1763 = vsel %vm1734, %v1730, %v1275
    %v1764 = vsel %vm1734, %v1731, %v1277
    %v1765 = vsel %vm1734, %v1732, %v1279
    %v1766 = vsel %vm1734, %v1733, %v1281
    %vm1767 = vcmask 228352
    %v1768 = vsel %vm1767, %v1735, %v1347
    %v1769 = vsel %vm1767, %v1736, %v1349
    %v1770 = vsel %vm1767, %v1737, %v1351
    %v1771 = vsel %vm1767, %v1738, %v1353
    %v1772 = vsel %vm1767, %v1739, %v1355
    %v1773 = vsel %vm1767, %v1740, %v1357
    %v1774 = vsel %vm1767, %v1741, %v1359
    %v1775 = vsel %vm1767, %v1742, %v1361
    %v1776 = vsel %vm1767, %v1743, %v1363
    %v1777 = vsel %vm1767, %v1744, %v1365
    %v1778 = vsel %vm1767, %v1745, %v1367
    %v1779 = vsel %vm1767, %v1746, %v1369
    %v1780 = vsel %vm1767, %v1747, %v1371
    %v1781 = vsel %vm1767, %v1748, %v1373
    %v1782 = vsel %vm1767, %v1749, %v1375
    %v1783 = vsel %vm1767, %v1750, %v1377
    %v1784 = vsel %vm1767, %v1751, %v1379
    %v1785 = vsel %vm1767, %v1752, %v1381
    %v1786 = vsel %vm1767, %v1753, %v1383
    %v1787 = vsel %vm1767, %v1754, %v1385
    %v1788 = vsel %vm1767, %v1755, %v1387
    %v1789 = vsel %vm1767, %v1756, %v1389
    %v1790 = vsel %vm1767, %v1757, %v1391
    %v1791 = vsel %vm1767, %v1758, %v1393
    %v1792 = vsel %vm1767, %v1759, %v1395
    %v1793 = vsel %vm1767, %v1760, %v1397
    %v1794 = vsel %vm1767, %v1761, %v1399
    %v1795 = vsel %vm1767, %v1762, %v1401
    %v1796 = vsel %vm1767, %v1763, %v1403
    %v1797 = vsel %vm1767, %v1764, %v1405
    %v1798 = vsel %vm1767, %v1765, %v1407
    %v1799 = vsel %vm1767, %v1766, %v1409
    %vm1800 = vcmask 261120
    %v1801 = vsel %vm1800, %v1768, %v1475
    %v1802 = vsel %vm1800, %v1769, %v1477
    %v1803 = vsel %vm1800, %v1770, %v1479
    %v1804 = vsel %vm1800, %v1771, %v1481
    %v1805 = vsel %vm1800, %v1772, %v1483
    %v1806 = vsel %vm1800, %v1773, %v1485
    %v1807 = vsel %vm1800, %v1774, %v1487
    %v1808 = vsel %vm1800, %v1775, %v1489
    %v1809 = vsel %vm1800, %v1776, %v1491
    %v1810 = vsel %vm1800, %v1777, %v1493
    %v1811 = vsel %vm1800, %v1778, %v1495
    %v1812 = vsel %vm1800, %v1779, %v1497
    %v1813 = vsel %vm1800, %v1780, %v1499
    %v1814 = vsel %vm1800, %v1781, %v1501
    %v1815 = vsel %vm1800, %v1782, %v1503
    %v1816 = vsel %vm1800, %v1783, %v1505
    %v1817 = vsel %vm1800, %v1784, %v1507
    %v1818 = vsel %vm1800, %v1785, %v1509
    %v1819 = vsel %vm1800, %v1786, %v1511
    %v1820 = vsel %vm1800, %v1787, %v1513
    %v1821 = vsel %vm1800, %v1788, %v1515
    %v1822 = vsel %vm1800, %v1789, %v1517
    %v1823 = vsel %vm1800, %v1790, %v1519
    %v1824 = vsel %vm1800, %v1791, %v1521
    %v1825 = vsel %vm1800, %v1792, %v1523
    %v1826 = vsel %vm1800, %v1793, %v1525
    %v1827 = vsel %vm1800, %v1794, %v1527
    %v1828 = vsel %vm1800, %v1795, %v1529
    %v1829 = vsel %vm1800, %v1796, %v1531
    %v1830 = vsel %vm1800, %v1797, %v1533
    %v1831 = vsel %vm1800, %v1798, %v1535
    %v1832 = vsel %vm1800, %v1799, %v1537
    %s1833 = scalar_lea.vmem [#allocation2], 432
    %v1834 = vld [vmem:[%s1833] sm:$0xff]
    %v1835 = vld [vmem:[%s1833 + $0x8] sm:$0xff]
    %v1836 = vld [vmem:[%s1833 + $0x18] sm:$0xff]
    %v1837 = vld [vmem:[%s1833 + $0x20] sm:$0xff]
    %v1838 = vld [vmem:[%s1833 + $0x30] sm:$0xff]
    %v1839 = vld [vmem:[%s1833 + $0x38] sm:$0xff]
    %v1840 = vld [vmem:[%s1833 + $0x48] sm:$0xff]
    %v1841 = vld [vmem:[%s1833 + $0x50] sm:$0xff]
    %v1842 = vld [vmem:[%s1833 + $0x60] sm:$0xff]
    %v1843 = vld [vmem:[%s1833 + $0x68] sm:$0xff]
    %v1844 = vld [vmem:[%s1833 + $0x78] sm:$0xff]
    %v1845 = vld [vmem:[%s1833 + $0x80] sm:$0xff]
    %v1846 = vld [vmem:[%s1833 + $0x90] sm:$0xff]
    %v1847 = vld [vmem:[%s1833 + $0x98] sm:$0xff]
    %v1848 = vld [vmem:[%s1833 + $0xa8] sm:$0xff]
    %v1849 = vld [vmem:[%s1833 + $0xb0] sm:$0xff]
    %v1850 = vld [vmem:[%s1833 + $0xc0] sm:$0xff]
    %v1851 = vld [vmem:[%s1833 + $0xc8] sm:$0xff]
    %v1852 = vld [vmem:[%s1833 + $0xd8] sm:$0xff]
    %v1853 = vld [vmem:[%s1833 + $0xe0] sm:$0xff]
    %v1854 = vld [vmem:[%s1833 + $0xf0] sm:$0xff]
    %v1855 = vld [vmem:[%s1833 + $0xf8] sm:$0xff]
    %v1856 = vld [vmem:[%s1833 + $0x108] sm:$0xff]
    %v1857 = vld [vmem:[%s1833 + $0x110] sm:$0xff]
    %v1858 = vld [vmem:[%s1833 + $0x120] sm:$0xff]
    %v1859 = vld [vmem:[%s1833 + $0x128] sm:$0xff]
    %v1860 = vld [vmem:[%s1833 + $0x138] sm:$0xff]
    %v1861 = vld [vmem:[%s1833 + $0x140] sm:$0xff]
    %v1862 = vld [vmem:[%s1833 + $0x150] sm:$0xff]
    %v1863 = vld [vmem:[%s1833 + $0x158] sm:$0xff]
    %v1864 = vld [vmem:[%s1833 + $0x168] sm:$0xff]
    %v1865 = vld [vmem:[%s1833 + $0x170] sm:$0xff]
    %v1866 = vld [vmem:[%s1833 + $0x1] sm:$0xff]
    %v1867 = vld [vmem:[%s1833 + $0x9] sm:$0xff]
    %v1868 = vld [vmem:[%s1833 + $0x19] sm:$0xff]
    %v1869 = vld [vmem:[%s1833 + $0x21] sm:$0xff]
    %v1870 = vld [vmem:[%s1833 + $0x31] sm:$0xff]
    %v1871 = vld [vmem:[%s1833 + $0x39] sm:$0xff]
    %v1872 = vld [vmem:[%s1833 + $0x49] sm:$0xff]
    %v1873 = vld [vmem:[%s1833 + $0x51] sm:$0xff]
    %v1874 = vld [vmem:[%s1833 + $0x61] sm:$0xff]
    %v1875 = vld [vmem:[%s1833 + $0x69] sm:$0xff]
    %v1876 = vld [vmem:[%s1833 + $0x79] sm:$0xff]
    %v1877 = vld [vmem:[%s1833 + $0x81] sm:$0xff]
    %v1878 = vld [vmem:[%s1833 + $0x91] sm:$0xff]
    %v1879 = vld [vmem:[%s1833 + $0x99] sm:$0xff]
    %v1880 = vld [vmem:[%s1833 + $0xa9] sm:$0xff]
    %v1881 = vld [vmem:[%s1833 + $0xb1] sm:$0xff]
    %v1882 = vld [vmem:[%s1833 + $0xc1] sm:$0xff]
    %v1883 = vld [vmem:[%s1833 + $0xc9] sm:$0xff]
    %v1884 = vld [vmem:[%s1833 + $0xd9] sm:$0xff]
    %v1885 = vld [vmem:[%s1833 + $0xe1] sm:$0xff]
    %v1886 = vld [vmem:[%s1833 + $0xf1] sm:$0xff]
    %v1887 = vld [vmem:[%s1833 + $0xf9] sm:$0xff]
    %v1888 = vld [vmem:[%s1833 + $0x109] sm:$0xff]
    %v1889 = vld [vmem:[%s1833 + $0x111] sm:$0xff]
    %v1890 = vld [vmem:[%s1833 + $0x121] sm:$0xff]
    %v1891 = vld [vmem:[%s1833 + $0x129] sm:$0xff]
    %v1892 = vld [vmem:[%s1833 + $0x139] sm:$0xff]
    %v1893 = vld [vmem:[%s1833 + $0x141] sm:$0xff]
    %v1894 = vld [vmem:[%s1833 + $0x151] sm:$0xff]
    %v1895 = vld [vmem:[%s1833 + $0x159] sm:$0xff]
    %v1896 = vld [vmem:[%s1833 + $0x169] sm:$0xff]
    %v1897 = vld [vmem:[%s1833 + $0x171] sm:$0xff]
    %v1898 = vld [vmem:[%s1833 + $0x2] sm:$0xff]
    %v1899 = vld [vmem:[%s1833 + $0xa] sm:$0xff]
    %v1900 = vld [vmem:[%s1833 + $0x1a] sm:$0xff]
    %v1901 = vld [vmem:[%s1833 + $0x22] sm:$0xff]
    %v1902 = vld [vmem:[%s1833 + $0x32] sm:$0xff]
    %v1903 = vld [vmem:[%s1833 + $0x3a] sm:$0xff]
    %v1904 = vld [vmem:[%s1833 + $0x4a] sm:$0xff]
    %v1905 = vld [vmem:[%s1833 + $0x52] sm:$0xff]
    %v1906 = vld [vmem:[%s1833 + $0x62] sm:$0xff]
    %v1907 = vld [vmem:[%s1833 + $0x6a] sm:$0xff]
    %v1908 = vld [vmem:[%s1833 + $0x7a] sm:$0xff]
    %v1909 = vld [vmem:[%s1833 + $0x82] sm:$0xff]
    %v1910 = vld [vmem:[%s1833 + $0x92] sm:$0xff]
    %v1911 = vld [vmem:[%s1833 + $0x9a] sm:$0xff]
    %v1912 = vld [vmem:[%s1833 + $0xaa] sm:$0xff]
    %v1913 = vld [vmem:[%s1833 + $0xb2] sm:$0xff]
    %v1914 = vld [vmem:[%s1833 + $0xc2] sm:$0xff]
    %v1915 = vld [vmem:[%s1833 + $0xca] sm:$0xff]
    %v1916 = vld [vmem:[%s1833 + $0xda] sm:$0xff]
    %v1917 = vld [vmem:[%s1833 + $0xe2] sm:$0xff]
    %v1918 = vld [vmem:[%s1833 + $0xf2] sm:$0xff]
    %v1919 = vld [vmem:[%s1833 + $0xfa] sm:$0xff]
    %v1920 = vld [vmem:[%s1833 + $0x10a] sm:$0xff]
    %v1921 = vld [vmem:[%s1833 + $0x112] sm:$0xff]
    %v1922 = vld [vmem:[%s1833 + $0x122] sm:$0xff]
    %v1923 = vld [vmem:[%s1833 + $0x12a] sm:$0xff]
    %v1924 = vld [vmem:[%s1833 + $0x13a] sm:$0xff]
    %v1925 = vld [vmem:[%s1833 + $0x142] sm:$0xff]
    %v1926 = vld [vmem:[%s1833 + $0x152] sm:$0xff]
    %v1927 = vld [vmem:[%s1833 + $0x15a] sm:$0xff]
    %v1928 = vld [vmem:[%s1833 + $0x16a] sm:$0xff]
    %v1929 = vld [vmem:[%s1833 + $0x172] sm:$0xff]
    %s1930 = scalar_lea.vmem [#allocation2], 456
    %v1931 = vld [vmem:[%s1930] sm:$0xff]
    %v1932 = vld [vmem:[%s1930 + $0x8] sm:$0xff]
    %v1933 = vld [vmem:[%s1930 + $0x18] sm:$0xff]
    %v1934 = vld [vmem:[%s1930 + $0x20] sm:$0xff]
    %v1935 = vld [vmem:[%s1930 + $0x30] sm:$0xff]
    %v1936 = vld [vmem:[%s1930 + $0x38] sm:$0xff]
    %v1937 = vld [vmem:[%s1930 + $0x48] sm:$0xff]
    %v1938 = vld [vmem:[%s1930 + $0x50] sm:$0xff]
    %v1939 = vld [vmem:[%s1930 + $0x60] sm:$0xff]
    %v1940 = vld [vmem:[%s1930 + $0x68] sm:$0xff]
    %v1941 = vld [vmem:[%s1930 + $0x78] sm:$0xff]
    %v1942 = vld [vmem:[%s1930 + $0x80] sm:$0xff]
    %v1943 = vld [vmem:[%s1930 + $0x90] sm:$0xff]
    %v1944 = vld [vmem:[%s1930 + $0x98] sm:$0xff]
    %v1945 = vld [vmem:[%s1930 + $0xa8] sm:$0xff]
    %v1946 = vld [vmem:[%s1930 + $0xb0] sm:$0xff]
    %v1947 = vld [vmem:[%s1930 + $0xc0] sm:$0xff]
    %v1948 = vld [vmem:[%s1930 + $0xc8] sm:$0xff]
    %v1949 = vld [vmem:[%s1930 + $0xd8] sm:$0xff]
    %v1950 = vld [vmem:[%s1930 + $0xe0] sm:$0xff]
    %v1951 = vld [vmem:[%s1930 + $0xf0] sm:$0xff]
    %v1952 = vld [vmem:[%s1930 + $0xf8] sm:$0xff]
    %v1953 = vld [vmem:[%s1930 + $0x108] sm:$0xff]
    %v1954 = vld [vmem:[%s1930 + $0x110] sm:$0xff]
    %v1955 = vld [vmem:[%s1930 + $0x120] sm:$0xff]
    %v1956 = vld [vmem:[%s1930 + $0x128] sm:$0xff]
    %v1957 = vld [vmem:[%s1930 + $0x138] sm:$0xff]
    %v1958 = vld [vmem:[%s1930 + $0x140] sm:$0xff]
    %v1959 = vld [vmem:[%s1930 + $0x150] sm:$0xff]
    %v1960 = vld [vmem:[%s1930 + $0x158] sm:$0xff]
    %v1961 = vld [vmem:[%s1930 + $0x168] sm:$0xff]
    %v1962 = vld [vmem:[%s1930 + $0x170] sm:$0xff]
    %v1963 = vld [vmem:[%s1930 + $0x1] sm:$0xff]
    %v1964 = vld [vmem:[%s1930 + $0x9] sm:$0xff]
    %v1965 = vld [vmem:[%s1930 + $0x19] sm:$0xff]
    %v1966 = vld [vmem:[%s1930 + $0x21] sm:$0xff]
    %v1967 = vld [vmem:[%s1930 + $0x31] sm:$0xff]
    %v1968 = vld [vmem:[%s1930 + $0x39] sm:$0xff]
    %v1969 = vld [vmem:[%s1930 + $0x49] sm:$0xff]
    %v1970 = vld [vmem:[%s1930 + $0x51] sm:$0xff]
    %v1971 = vld [vmem:[%s1930 + $0x61] sm:$0xff]
    %v1972 = vld [vmem:[%s1930 + $0x69] sm:$0xff]
    %v1973 = vld [vmem:[%s1930 + $0x79] sm:$0xff]
    %v1974 = vld [vmem:[%s1930 + $0x81] sm:$0xff]
    %v1975 = vld [vmem:[%s1930 + $0x91] sm:$0xff]
    %v1976 = vld [vmem:[%s1930 + $0x99] sm:$0xff]
    %v1977 = vld [vmem:[%s1930 + $0xa9] sm:$0xff]
    %v1978 = vld [vmem:[%s1930 + $0xb1] sm:$0xff]
    %v1979 = vld [vmem:[%s1930 + $0xc1] sm:$0xff]
    %v1980 = vld [vmem:[%s1930 + $0xc9] sm:$0xff]
    %v1981 = vld [vmem:[%s1930 + $0xd9] sm:$0xff]
    %v1982 = vld [vmem:[%s1930 + $0xe1] sm:$0xff]
    %v1983 = vld [vmem:[%s1930 + $0xf1] sm:$0xff]
    %v1984 = vld [vmem:[%s1930 + $0xf9] sm:$0xff]
    %v1985 = vld [vmem:[%s1930 + $0x109] sm:$0xff]
    %v1986 = vld [vmem:[%s1930 + $0x111] sm:$0xff]
    %v1987 = vld [vmem:[%s1930 + $0x121] sm:$0xff]
    %v1988 = vld [vmem:[%s1930 + $0x129] sm:$0xff]
    %v1989 = vld [vmem:[%s1930 + $0x139] sm:$0xff]
    %v1990 = vld [vmem:[%s1930 + $0x141] sm:$0xff]
    %v1991 = vld [vmem:[%s1930 + $0x151] sm:$0xff]
    %v1992 = vld [vmem:[%s1930 + $0x159] sm:$0xff]
    %v1993 = vld [vmem:[%s1930 + $0x169] sm:$0xff]
    %v1994 = vld [vmem:[%s1930 + $0x171] sm:$0xff]
    %v1995 = vld [vmem:[%s1930 + $0x2] sm:$0xff]
    %v1996 = vld [vmem:[%s1930 + $0xa] sm:$0xff]
    %v1997 = vld [vmem:[%s1930 + $0x1a] sm:$0xff]
    %v1998 = vld [vmem:[%s1930 + $0x22] sm:$0xff]
    %v1999 = vld [vmem:[%s1930 + $0x32] sm:$0xff]
    %v2000 = vld [vmem:[%s1930 + $0x3a] sm:$0xff]
    %v2001 = vld [vmem:[%s1930 + $0x4a] sm:$0xff]
    %v2002 = vld [vmem:[%s1930 + $0x52] sm:$0xff]
    %v2003 = vld [vmem:[%s1930 + $0x62] sm:$0xff]
    %v2004 = vld [vmem:[%s1930 + $0x6a] sm:$0xff]
    %v2005 = vld [vmem:[%s1930 + $0x7a] sm:$0xff]
    %v2006 = vld [vmem:[%s1930 + $0x82] sm:$0xff]
    %v2007 = vld [vmem:[%s1930 + $0x92] sm:$0xff]
    %v2008 = vld [vmem:[%s1930 + $0x9a] sm:$0xff]
    %v2009 = vld [vmem:[%s1930 + $0xaa] sm:$0xff]
    %v2010 = vld [vmem:[%s1930 + $0xb2] sm:$0xff]
    %v2011 = vld [vmem:[%s1930 + $0xc2] sm:$0xff]
    %v2012 = vld [vmem:[%s1930 + $0xca] sm:$0xff]
    %v2013 = vld [vmem:[%s1930 + $0xda] sm:$0xff]
    %v2014 = vld [vmem:[%s1930 + $0xe2] sm:$0xff]
    %v2015 = vld [vmem:[%s1930 + $0xf2] sm:$0xff]
    %v2016 = vld [vmem:[%s1930 + $0xfa] sm:$0xff]
    %v2017 = vld [vmem:[%s1930 + $0x10a] sm:$0xff]
    %v2018 = vld [vmem:[%s1930 + $0x112] sm:$0xff]
    %v2019 = vld [vmem:[%s1930 + $0x122] sm:$0xff]
    %v2020 = vld [vmem:[%s1930 + $0x12a] sm:$0xff]
    %v2021 = vld [vmem:[%s1930 + $0x13a] sm:$0xff]
    %v2022 = vld [vmem:[%s1930 + $0x142] sm:$0xff]
    %v2023 = vld [vmem:[%s1930 + $0x152] sm:$0xff]
    %v2024 = vld [vmem:[%s1930 + $0x15a] sm:$0xff]
    %v2025 = vld [vmem:[%s1930 + $0x16a] sm:$0xff]
    %v2026 = vld [vmem:[%s1930 + $0x172] sm:$0xff]
    %s2027 = scalar_lea.vmem [#allocation2], 480
    %v2028 = vld [vmem:[%s2027] sm:$0xff]
    %v2029 = vld [vmem:[%s2027 + $0x8] sm:$0xff]
    %v2030 = vld [vmem:[%s2027 + $0x18] sm:$0xff]
    %v2031 = vld [vmem:[%s2027 + $0x20] sm:$0xff]
    %v2032 = vld [vmem:[%s2027 + $0x30] sm:$0xff]
    %v2033 = vld [vmem:[%s2027 + $0x38] sm:$0xff]
    %v2034 = vld [vmem:[%s2027 + $0x48] sm:$0xff]
    %v2035 = vld [vmem:[%s2027 + $0x50] sm:$0xff]
    %v2036 = vld [vmem:[%s2027 + $0x60] sm:$0xff]
    %v2037 = vld [vmem:[%s2027 + $0x68] sm:$0xff]
    %v2038 = vld [vmem:[%s2027 + $0x78] sm:$0xff]
    %v2039 = vld [vmem:[%s2027 + $0x80] sm:$0xff]
    %v2040 = vld [vmem:[%s2027 + $0x90] sm:$0xff]
    %v2041 = vld [vmem:[%s2027 + $0x98] sm:$0xff]
    %v2042 = vld [vmem:[%s2027 + $0xa8] sm:$0xff]
    %v2043 = vld [vmem:[%s2027 + $0xb0] sm:$0xff]
    %v2044 = vld [vmem:[%s2027 + $0xc0] sm:$0xff]
    %v2045 = vld [vmem:[%s2027 + $0xc8] sm:$0xff]
    %v2046 = vld [vmem:[%s2027 + $0xd8] sm:$0xff]
    %v2047 = vld [vmem:[%s2027 + $0xe0] sm:$0xff]
    %v2048 = vld [vmem:[%s2027 + $0xf0] sm:$0xff]
    %v2049 = vld [vmem:[%s2027 + $0xf8] sm:$0xff]
    %v2050 = vld [vmem:[%s2027 + $0x108] sm:$0xff]
    %v2051 = vld [vmem:[%s2027 + $0x110] sm:$0xff]
    %v2052 = vld [vmem:[%s2027 + $0x120] sm:$0xff]
    %v2053 = vld [vmem:[%s2027 + $0x128] sm:$0xff]
    %v2054 = vld [vmem:[%s2027 + $0x138] sm:$0xff]
    %v2055 = vld [vmem:[%s2027 + $0x140] sm:$0xff]
    %v2056 = vld [vmem:[%s2027 + $0x150] sm:$0xff]
    %v2057 = vld [vmem:[%s2027 + $0x158] sm:$0xff]
    %v2058 = vld [vmem:[%s2027 + $0x168] sm:$0xff]
    %v2059 = vld [vmem:[%s2027 + $0x170] sm:$0xff]
    %v2060 = vld [vmem:[%s2027 + $0x1] sm:$0xff]
    %v2061 = vld [vmem:[%s2027 + $0x9] sm:$0xff]
    %v2062 = vld [vmem:[%s2027 + $0x19] sm:$0xff]
    %v2063 = vld [vmem:[%s2027 + $0x21] sm:$0xff]
    %v2064 = vld [vmem:[%s2027 + $0x31] sm:$0xff]
    %v2065 = vld [vmem:[%s2027 + $0x39] sm:$0xff]
    %v2066 = vld [vmem:[%s2027 + $0x49] sm:$0xff]
    %v2067 = vld [vmem:[%s2027 + $0x51] sm:$0xff]
    %v2068 = vld [vmem:[%s2027 + $0x61] sm:$0xff]
    %v2069 = vld [vmem:[%s2027 + $0x69] sm:$0xff]
    %v2070 = vld [vmem:[%s2027 + $0x79] sm:$0xff]
    %v2071 = vld [vmem:[%s2027 + $0x81] sm:$0xff]
    %v2072 = vld [vmem:[%s2027 + $0x91] sm:$0xff]
    %v2073 = vld [vmem:[%s2027 + $0x99] sm:$0xff]
    %v2074 = vld [vmem:[%s2027 + $0xa9] sm:$0xff]
    %v2075 = vld [vmem:[%s2027 + $0xb1] sm:$0xff]
    %v2076 = vld [vmem:[%s2027 + $0xc1] sm:$0xff]
    %v2077 = vld [vmem:[%s2027 + $0xc9] sm:$0xff]
    %v2078 = vld [vmem:[%s2027 + $0xd9] sm:$0xff]
    %v2079 = vld [vmem:[%s2027 + $0xe1] sm:$0xff]
    %v2080 = vld [vmem:[%s2027 + $0xf1] sm:$0xff]
    %v2081 = vld [vmem:[%s2027 + $0xf9] sm:$0xff]
    %v2082 = vld [vmem:[%s2027 + $0x109] sm:$0xff]
    %v2083 = vld [vmem:[%s2027 + $0x111] sm:$0xff]
    %v2084 = vld [vmem:[%s2027 + $0x121] sm:$0xff]
    %v2085 = vld [vmem:[%s2027 + $0x129] sm:$0xff]
    %v2086 = vld [vmem:[%s2027 + $0x139] sm:$0xff]
    %v2087 = vld [vmem:[%s2027 + $0x141] sm:$0xff]
    %v2088 = vld [vmem:[%s2027 + $0x151] sm:$0xff]
    %v2089 = vld [vmem:[%s2027 + $0x159] sm:$0xff]
    %v2090 = vld [vmem:[%s2027 + $0x169] sm:$0xff]
    %v2091 = vld [vmem:[%s2027 + $0x171] sm:$0xff]
    %v2092 = vld [vmem:[%s2027 + $0x2] sm:$0xff]
    %v2093 = vld [vmem:[%s2027 + $0xa] sm:$0xff]
    %v2094 = vld [vmem:[%s2027 + $0x1a] sm:$0xff]
    %v2095 = vld [vmem:[%s2027 + $0x22] sm:$0xff]
    %v2096 = vld [vmem:[%s2027 + $0x32] sm:$0xff]
    %v2097 = vld [vmem:[%s2027 + $0x3a] sm:$0xff]
    %v2098 = vld [vmem:[%s2027 + $0x4a] sm:$0xff]
    %v2099 = vld [vmem:[%s2027 + $0x52] sm:$0xff]
    %v2100 = vld [vmem:[%s2027 + $0x62] sm:$0xff]
    %v2101 = vld [vmem:[%s2027 + $0x6a] sm:$0xff]
    %v2102 = vld [vmem:[%s2027 + $0x7a] sm:$0xff]
    %v2103 = vld [vmem:[%s2027 + $0x82] sm:$0xff]
    %v2104 = vld [vmem:[%s2027 + $0x92] sm:$0xff]
    %v2105 = vld [vmem:[%s2027 + $0x9a] sm:$0xff]
    %v2106 = vld [vmem:[%s2027 + $0xaa] sm:$0xff]
    %v2107 = vld [vmem:[%s2027 + $0xb2] sm:$0xff]
    %v2108 = vld [vmem:[%s2027 + $0xc2] sm:$0xff]
    %v2109 = vld [vmem:[%s2027 + $0xca] sm:$0xff]
    %v2110 = vld [vmem:[%s2027 + $0xda] sm:$0xff]
    %v2111 = vld [vmem:[%s2027 + $0xe2] sm:$0xff]
    %v2112 = vld [vmem:[%s2027 + $0xf2] sm:$0xff]
    %v2113 = vld [vmem:[%s2027 + $0xfa] sm:$0xff]
    %v2114 = vld [vmem:[%s2027 + $0x10a] sm:$0xff]
    %v2115 = vld [vmem:[%s2027 + $0x112] sm:$0xff]
    %v2116 = vld [vmem:[%s2027 + $0x122] sm:$0xff]
    %v2117 = vld [vmem:[%s2027 + $0x12a] sm:$0xff]
    %v2118 = vld [vmem:[%s2027 + $0x13a] sm:$0xff]
    %v2119 = vld [vmem:[%s2027 + $0x142] sm:$0xff]
    %v2120 = vld [vmem:[%s2027 + $0x152] sm:$0xff]
    %v2121 = vld [vmem:[%s2027 + $0x15a] sm:$0xff]
    %v2122 = vld [vmem:[%s2027 + $0x16a] sm:$0xff]
    %v2123 = vld [vmem:[%s2027 + $0x172] sm:$0xff]
    %2156 = vrot.lane.b32.xlu0 %v1866, 4
    %v2157 = vpop.permute.xlu0 %2156
    %2158 = vrot.lane.b32.xlu0 %v1867, 4
    %v2159 = vpop.permute.xlu0 %2158
    %2160 = vrot.lane.b32.xlu0 %v1868, 4
    %v2161 = vpop.permute.xlu0 %2160
    %2162 = vrot.lane.b32.xlu0 %v1869, 4
    %v2163 = vpop.permute.xlu0 %2162
    %2164 = vrot.lane.b32.xlu0 %v1870, 4
    %v2165 = vpop.permute.xlu0 %2164
    %2166 = vrot.lane.b32.xlu0 %v1871, 4
    %v2167 = vpop.permute.xlu0 %2166
    %2168 = vrot.lane.b32.xlu0 %v1872, 4
    %v2169 = vpop.permute.xlu0 %2168
    %2170 = vrot.lane.b32.xlu0 %v1873, 4
    %v2171 = vpop.permute.xlu0 %2170
    %2172 = vrot.lane.b32.xlu0 %v1874, 4
    %v2173 = vpop.permute.xlu0 %2172
    %2174 = vrot.lane.b32.xlu0 %v1875, 4
    %v2175 = vpop.permute.xlu0 %2174
    %2176 = vrot.lane.b32.xlu0 %v1876, 4
    %v2177 = vpop.permute.xlu0 %2176
    %2178 = vrot.lane.b32.xlu0 %v1877, 4
    %v2179 = vpop.permute.xlu0 %2178
    %2180 = vrot.lane.b32.xlu0 %v1878, 4
    %v2181 = vpop.permute.xlu0 %2180
    %2182 = vrot.lane.b32.xlu0 %v1879, 4
    %v2183 = vpop.permute.xlu0 %2182
    %2184 = vrot.lane.b32.xlu0 %v1880, 4
    %v2185 = vpop.permute.xlu0 %2184
    %2186 = vrot.lane.b32.xlu0 %v1881, 4
    %v2187 = vpop.permute.xlu0 %2186
    %2188 = vrot.lane.b32.xlu0 %v1882, 4
    %v2189 = vpop.permute.xlu0 %2188
    %2190 = vrot.lane.b32.xlu0 %v1883, 4
    %v2191 = vpop.permute.xlu0 %2190
    %2192 = vrot.lane.b32.xlu0 %v1884, 4
    %v2193 = vpop.permute.xlu0 %2192
    %2194 = vrot.lane.b32.xlu0 %v1885, 4
    %v2195 = vpop.permute.xlu0 %2194
    %2196 = vrot.lane.b32.xlu0 %v1886, 4
    %v2197 = vpop.permute.xlu0 %2196
    %2198 = vrot.lane.b32.xlu0 %v1887, 4
    %v2199 = vpop.permute.xlu0 %2198
    %2200 = vrot.lane.b32.xlu0 %v1888, 4
    %v2201 = vpop.permute.xlu0 %2200
    %2202 = vrot.lane.b32.xlu0 %v1889, 4
    %v2203 = vpop.permute.xlu0 %2202
    %2204 = vrot.lane.b32.xlu0 %v1890, 4
    %v2205 = vpop.permute.xlu0 %2204
    %2206 = vrot.lane.b32.xlu0 %v1891, 4
    %v2207 = vpop.permute.xlu0 %2206
    %2208 = vrot.lane.b32.xlu0 %v1892, 4
    %v2209 = vpop.permute.xlu0 %2208
    %2210 = vrot.lane.b32.xlu0 %v1893, 4
    %v2211 = vpop.permute.xlu0 %2210
    %2212 = vrot.lane.b32.xlu0 %v1894, 4
    %v2213 = vpop.permute.xlu0 %2212
    %2214 = vrot.lane.b32.xlu0 %v1895, 4
    %v2215 = vpop.permute.xlu0 %2214
    %2216 = vrot.lane.b32.xlu0 %v1896, 4
    %v2217 = vpop.permute.xlu0 %2216
    %2218 = vrot.lane.b32.xlu0 %v1897, 4
    %v2219 = vpop.permute.xlu0 %2218
    %2284 = vrot.lane.b32.xlu0 %v1898, 8
    %v2285 = vpop.permute.xlu0 %2284
    %2286 = vrot.lane.b32.xlu0 %v1899, 8
    %v2287 = vpop.permute.xlu0 %2286
    %2288 = vrot.lane.b32.xlu0 %v1900, 8
    %v2289 = vpop.permute.xlu0 %2288
    %2290 = vrot.lane.b32.xlu0 %v1901, 8
    %v2291 = vpop.permute.xlu0 %2290
    %2292 = vrot.lane.b32.xlu0 %v1902, 8
    %v2293 = vpop.permute.xlu0 %2292
    %2294 = vrot.lane.b32.xlu0 %v1903, 8
    %v2295 = vpop.permute.xlu0 %2294
    %2296 = vrot.lane.b32.xlu0 %v1904, 8
    %v2297 = vpop.permute.xlu0 %2296
    %2298 = vrot.lane.b32.xlu0 %v1905, 8
    %v2299 = vpop.permute.xlu0 %2298
    %2300 = vrot.lane.b32.xlu0 %v1906, 8
    %v2301 = vpop.permute.xlu0 %2300
    %2302 = vrot.lane.b32.xlu0 %v1907, 8
    %v2303 = vpop.permute.xlu0 %2302
    %2304 = vrot.lane.b32.xlu0 %v1908, 8
    %v2305 = vpop.permute.xlu0 %2304
    %2306 = vrot.lane.b32.xlu0 %v1909, 8
    %v2307 = vpop.permute.xlu0 %2306
    %2308 = vrot.lane.b32.xlu0 %v1910, 8
    %v2309 = vpop.permute.xlu0 %2308
    %2310 = vrot.lane.b32.xlu0 %v1911, 8
    %v2311 = vpop.permute.xlu0 %2310
    %2312 = vrot.lane.b32.xlu0 %v1912, 8
    %v2313 = vpop.permute.xlu0 %2312
    %2314 = vrot.lane.b32.xlu0 %v1913, 8
    %v2315 = vpop.permute.xlu0 %2314
    %2316 = vrot.lane.b32.xlu0 %v1914, 8
    %v2317 = vpop.permute.xlu0 %2316
    %2318 = vrot.lane.b32.xlu0 %v1915, 8
    %v2319 = vpop.permute.xlu0 %2318
    %2320 = vrot.lane.b32.xlu0 %v1916, 8
    %v2321 = vpop.permute.xlu0 %2320
    %2322 = vrot.lane.b32.xlu0 %v1917, 8
    %v2323 = vpop.permute.xlu0 %2322
    %2324 = vrot.lane.b32.xlu0 %v1918, 8
    %v2325 = vpop.permute.xlu0 %2324
    %2326 = vrot.lane.b32.xlu0 %v1919, 8
    %v2327 = vpop.permute.xlu0 %2326
    %2328 = vrot.lane.b32.xlu0 %v1920, 8
    %v2329 = vpop.permute.xlu0 %2328
    %2330 = vrot.lane.b32.xlu0 %v1921, 8
    %v2331 = vpop.permute.xlu0 %2330
    %2332 = vrot.lane.b32.xlu0 %v1922, 8
    %v2333 = vpop.permute.xlu0 %2332
    %2334 = vrot.lane.b32.xlu0 %v1923, 8
    %v2335 = vpop.permute.xlu0 %2334
    %2336 = vrot.lane.b32.xlu0 %v1924, 8
    %v2337 = vpop.permute.xlu0 %2336
    %2338 = vrot.lane.b32.xlu0 %v1925, 8
    %v2339 = vpop.permute.xlu0 %2338
    %2340 = vrot.lane.b32.xlu0 %v1926, 8
    %v2341 = vpop.permute.xlu0 %2340
    %2342 = vrot.lane.b32.xlu0 %v1927, 8
    %v2343 = vpop.permute.xlu0 %2342
    %2344 = vrot.lane.b32.xlu0 %v1928, 8
    %v2345 = vpop.permute.xlu0 %2344
    %2346 = vrot.lane.b32.xlu0 %v1929, 8
    %v2347 = vpop.permute.xlu0 %2346
    %2412 = vrot.lane.b32.xlu0 %v1931, 12
    %v2413 = vpop.permute.xlu0 %2412
    %2414 = vrot.lane.b32.xlu0 %v1932, 12
    %v2415 = vpop.permute.xlu0 %2414
    %2416 = vrot.lane.b32.xlu0 %v1933, 12
    %v2417 = vpop.permute.xlu0 %2416
    %2418 = vrot.lane.b32.xlu0 %v1934, 12
    %v2419 = vpop.permute.xlu0 %2418
    %2420 = vrot.lane.b32.xlu0 %v1935, 12
    %v2421 = vpop.permute.xlu0 %2420
    %2422 = vrot.lane.b32.xlu0 %v1936, 12
    %v2423 = vpop.permute.xlu0 %2422
    %2424 = vrot.lane.b32.xlu0 %v1937, 12
    %v2425 = vpop.permute.xlu0 %2424
    %2426 = vrot.lane.b32.xlu0 %v1938, 12
    %v2427 = vpop.permute.xlu0 %2426
    %2428 = vrot.lane.b32.xlu0 %v1939, 12
    %v2429 = vpop.permute.xlu0 %2428
    %2430 = vrot.lane.b32.xlu0 %v1940, 12
    %v2431 = vpop.permute.xlu0 %2430
    %2432 = vrot.lane.b32.xlu0 %v1941, 12
    %v2433 = vpop.permute.xlu0 %2432
    %2434 = vrot.lane.b32.xlu0 %v1942, 12
    %v2435 = vpop.permute.xlu0 %2434
    %2436 = vrot.lane.b32.xlu0 %v1943, 12
    %v2437 = vpop.permute.xlu0 %2436
    %2438 = vrot.lane.b32.xlu0 %v1944, 12
    %v2439 = vpop.permute.xlu0 %2438
    %2440 = vrot.lane.b32.xlu0 %v1945, 12
    %v2441 = vpop.permute.xlu0 %2440
    %2442 = vrot.lane.b32.xlu0 %v1946, 12
    %v2443 = vpop.permute.xlu0 %2442
    %2444 = vrot.lane.b32.xlu0 %v1947, 12
    %v2445 = vpop.permute.xlu0 %2444
    %2446 = vrot.lane.b32.xlu0 %v1948, 12
    %v2447 = vpop.permute.xlu0 %2446
    %2448 = vrot.lane.b32.xlu0 %v1949, 12
    %v2449 = vpop.permute.xlu0 %2448
    %2450 = vrot.lane.b32.xlu0 %v1950, 12
    %v2451 = vpop.permute.xlu0 %2450
    %2452 = vrot.lane.b32.xlu0 %v1951, 12
    %v2453 = vpop.permute.xlu0 %2452
    %2454 = vrot.lane.b32.xlu0 %v1952, 12
    %v2455 = vpop.permute.xlu0 %2454
    %2456 = vrot.lane.b32.xlu0 %v1953, 12
    %v2457 = vpop.permute.xlu0 %2456
    %2458 = vrot.lane.b32.xlu0 %v1954, 12
    %v2459 = vpop.permute.xlu0 %2458
    %2460 = vrot.lane.b32.xlu0 %v1955, 12
    %v2461 = vpop.permute.xlu0 %2460
    %2462 = vrot.lane.b32.xlu0 %v1956, 12
    %v2463 = vpop.permute.xlu0 %2462
    %2464 = vrot.lane.b32.xlu0 %v1957, 12
    %v2465 = vpop.permute.xlu0 %2464
    %2466 = vrot.lane.b32.xlu0 %v1958, 12
    %v2467 = vpop.permute.xlu0 %2466
    %2468 = vrot.lane.b32.xlu0 %v1959, 12
    %v2469 = vpop.permute.xlu0 %2468
    %2470 = vrot.lane.b32.xlu0 %v1960, 12
    %v2471 = vpop.permute.xlu0 %2470
    %2472 = vrot.lane.b32.xlu0 %v1961, 12
    %v2473 = vpop.permute.xlu0 %2472
    %2474 = vrot.lane.b32.xlu0 %v1962, 12
    %v2475 = vpop.permute.xlu0 %2474
    %2540 = vrot.lane.b32.xlu0 %v1963, 16
    %v2541 = vpop.permute.xlu0 %2540
    %2542 = vrot.lane.b32.xlu0 %v1964, 16
    %v2543 = vpop.permute.xlu0 %2542
    %2544 = vrot.lane.b32.xlu0 %v1965, 16
    %v2545 = vpop.permute.xlu0 %2544
    %2546 = vrot.lane.b32.xlu0 %v1966, 16
    %v2547 = vpop.permute.xlu0 %2546
    %2548 = vrot.lane.b32.xlu0 %v1967, 16
    %v2549 = vpop.permute.xlu0 %2548
    %2550 = vrot.lane.b32.xlu0 %v1968, 16
    %v2551 = vpop.permute.xlu0 %2550
    %2552 = vrot.lane.b32.xlu0 %v1969, 16
    %v2553 = vpop.permute.xlu0 %2552
    %2554 = vrot.lane.b32.xlu0 %v1970, 16
    %v2555 = vpop.permute.xlu0 %2554
    %2556 = vrot.lane.b32.xlu0 %v1971, 16
    %v2557 = vpop.permute.xlu0 %2556
    %2558 = vrot.lane.b32.xlu0 %v1972, 16
    %v2559 = vpop.permute.xlu0 %2558
    %2560 = vrot.lane.b32.xlu0 %v1973, 16
    %v2561 = vpop.permute.xlu0 %2560
    %2562 = vrot.lane.b32.xlu0 %v1974, 16
    %v2563 = vpop.permute.xlu0 %2562
    %2564 = vrot.lane.b32.xlu0 %v1975, 16
    %v2565 = vpop.permute.xlu0 %2564
    %2566 = vrot.lane.b32.xlu0 %v1976, 16
    %v2567 = vpop.permute.xlu0 %2566
    %2568 = vrot.lane.b32.xlu0 %v1977, 16
    %v2569 = vpop.permute.xlu0 %2568
    %2570 = vrot.lane.b32.xlu0 %v1978, 16
    %v2571 = vpop.permute.xlu0 %2570
    %2572 = vrot.lane.b32.xlu0 %v1979, 16
    %v2573 = vpop.permute.xlu0 %2572
    %2574 = vrot.lane.b32.xlu0 %v1980, 16
    %v2575 = vpop.permute.xlu0 %2574
    %2576 = vrot.lane.b32.xlu0 %v1981, 16
    %v2577 = vpop.permute.xlu0 %2576
    %2578 = vrot.lane.b32.xlu0 %v1982, 16
    %v2579 = vpop.permute.xlu0 %2578
    %2580 = vrot.lane.b32.xlu0 %v1983, 16
    %v2581 = vpop.permute.xlu0 %2580
    %2582 = vrot.lane.b32.xlu0 %v1984, 16
    %v2583 = vpop.permute.xlu0 %2582
    %2584 = vrot.lane.b32.xlu0 %v1985, 16
    %v2585 = vpop.permute.xlu0 %2584
    %2586 = vrot.lane.b32.xlu0 %v1986, 16
    %v2587 = vpop.permute.xlu0 %2586
    %2588 = vrot.lane.b32.xlu0 %v1987, 16
    %v2589 = vpop.permute.xlu0 %2588
    %2590 = vrot.lane.b32.xlu0 %v1988, 16
    %v2591 = vpop.permute.xlu0 %2590
    %2592 = vrot.lane.b32.xlu0 %v1989, 16
    %v2593 = vpop.permute.xlu0 %2592
    %2594 = vrot.lane.b32.xlu0 %v1990, 16
    %v2595 = vpop.permute.xlu0 %2594
    %2596 = vrot.lane.b32.xlu0 %v1991, 16
    %v2597 = vpop.permute.xlu0 %2596
    %2598 = vrot.lane.b32.xlu0 %v1992, 16
    %v2599 = vpop.permute.xlu0 %2598
    %2600 = vrot.lane.b32.xlu0 %v1993, 16
    %v2601 = vpop.permute.xlu0 %2600
    %2602 = vrot.lane.b32.xlu0 %v1994, 16
    %v2603 = vpop.permute.xlu0 %2602
    %2668 = vrot.lane.b32.xlu0 %v1995, 20
    %v2669 = vpop.permute.xlu0 %2668
    %2670 = vrot.lane.b32.xlu0 %v1996, 20
    %v2671 = vpop.permute.xlu0 %2670
    %2672 = vrot.lane.b32.xlu0 %v1997, 20
    %v2673 = vpop.permute.xlu0 %2672
    %2674 = vrot.lane.b32.xlu0 %v1998, 20
    %v2675 = vpop.permute.xlu0 %2674
    %2676 = vrot.lane.b32.xlu0 %v1999, 20
    %v2677 = vpop.permute.xlu0 %2676
    %2678 = vrot.lane.b32.xlu0 %v2000, 20
    %v2679 = vpop.permute.xlu0 %2678
    %2680 = vrot.lane.b32.xlu0 %v2001, 20
    %v2681 = vpop.permute.xlu0 %2680
    %2682 = vrot.lane.b32.xlu0 %v2002, 20
    %v2683 = vpop.permute.xlu0 %2682
    %2684 = vrot.lane.b32.xlu0 %v2003, 20
    %v2685 = vpop.permute.xlu0 %2684
    %2686 = vrot.lane.b32.xlu0 %v2004, 20
    %v2687 = vpop.permute.xlu0 %2686
    %2688 = vrot.lane.b32.xlu0 %v2005, 20
    %v2689 = vpop.permute.xlu0 %2688
    %2690 = vrot.lane.b32.xlu0 %v2006, 20
    %v2691 = vpop.permute.xlu0 %2690
    %2692 = vrot.lane.b32.xlu0 %v2007, 20
    %v2693 = vpop.permute.xlu0 %2692
    %2694 = vrot.lane.b32.xlu0 %v2008, 20
    %v2695 = vpop.permute.xlu0 %2694
    %2696 = vrot.lane.b32.xlu0 %v2009, 20
    %v2697 = vpop.permute.xlu0 %2696
    %2698 = vrot.lane.b32.xlu0 %v2010, 20
    %v2699 = vpop.permute.xlu0 %2698
    %2700 = vrot.lane.b32.xlu0 %v2011, 20
    %v2701 = vpop.permute.xlu0 %2700
    %2702 = vrot.lane.b32.xlu0 %v2012, 20
    %v2703 = vpop.permute.xlu0 %2702
    %2704 = vrot.lane.b32.xlu0 %v2013, 20
    %v2705 = vpop.permute.xlu0 %2704
    %2706 = vrot.lane.b32.xlu0 %v2014, 20
    %v2707 = vpop.permute.xlu0 %2706
    %2708 = vrot.lane.b32.xlu0 %v2015, 20
    %v2709 = vpop.permute.xlu0 %2708
    %2710 = vrot.lane.b32.xlu0 %v2016, 20
    %v2711 = vpop.permute.xlu0 %2710
    %2712 = vrot.lane.b32.xlu0 %v2017, 20
    %v2713 = vpop.permute.xlu0 %2712
    %2714 = vrot.lane.b32.xlu0 %v2018, 20
    %v2715 = vpop.permute.xlu0 %2714
    %2716 = vrot.lane.b32.xlu0 %v2019, 20
    %v2717 = vpop.permute.xlu0 %2716
    %2718 = vrot.lane.b32.xlu0 %v2020, 20
    %v2719 = vpop.permute.xlu0 %2718
    %2720 = vrot.lane.b32.xlu0 %v2021, 20
    %v2721 = vpop.permute.xlu0 %2720
    %2722 = vrot.lane.b32.xlu0 %v2022, 20
    %v2723 = vpop.permute.xlu0 %2722
    %2724 = vrot.lane.b32.xlu0 %v2023, 20
    %v2725 = vpop.permute.xlu0 %2724
    %2726 = vrot.lane.b32.xlu0 %v2024, 20
    %v2727 = vpop.permute.xlu0 %2726
    %2728 = vrot.lane.b32.xlu0 %v2025, 20
    %v2729 = vpop.permute.xlu0 %2728
    %2730 = vrot.lane.b32.xlu0 %v2026, 20
    %v2731 = vpop.permute.xlu0 %2730
    %2796 = vrot.lane.b32.xlu0 %v2028, 24
    %v2797 = vpop.permute.xlu0 %2796
    %2798 = vrot.lane.b32.xlu0 %v2029, 24
    %v2799 = vpop.permute.xlu0 %2798
    %2800 = vrot.lane.b32.xlu0 %v2030, 24
    %v2801 = vpop.permute.xlu0 %2800
    %2802 = vrot.lane.b32.xlu0 %v2031, 24
    %v2803 = vpop.permute.xlu0 %2802
    %2804 = vrot.lane.b32.xlu0 %v2032, 24
    %v2805 = vpop.permute.xlu0 %2804
    %2806 = vrot.lane.b32.xlu0 %v2033, 24
    %v2807 = vpop.permute.xlu0 %2806
    %2808 = vrot.lane.b32.xlu0 %v2034, 24
    %v2809 = vpop.permute.xlu0 %2808
    %2810 = vrot.lane.b32.xlu0 %v2035, 24
    %v2811 = vpop.permute.xlu0 %2810
    %2812 = vrot.lane.b32.xlu0 %v2036, 24
    %v2813 = vpop.permute.xlu0 %2812
    %2814 = vrot.lane.b32.xlu0 %v2037, 24
    %v2815 = vpop.permute.xlu0 %2814
    %2816 = vrot.lane.b32.xlu0 %v2038, 24
    %v2817 = vpop.permute.xlu0 %2816
    %2818 = vrot.lane.b32.xlu0 %v2039, 24
    %v2819 = vpop.permute.xlu0 %2818
    %2820 = vrot.lane.b32.xlu0 %v2040, 24
    %v2821 = vpop.permute.xlu0 %2820
    %2822 = vrot.lane.b32.xlu0 %v2041, 24
    %v2823 = vpop.permute.xlu0 %2822
    %2824 = vrot.lane.b32.xlu0 %v2042, 24
    %v2825 = vpop.permute.xlu0 %2824
    %2826 = vrot.lane.b32.xlu0 %v2043, 24
    %v2827 = vpop.permute.xlu0 %2826
    %2828 = vrot.lane.b32.xlu0 %v2044, 24
    %v2829 = vpop.permute.xlu0 %2828
    %2830 = vrot.lane.b32.xlu0 %v2045, 24
    %v2831 = vpop.permute.xlu0 %2830
    %2832 = vrot.lane.b32.xlu0 %v2046, 24
    %v2833 = vpop.permute.xlu0 %2832
    %2834 = vrot.lane.b32.xlu0 %v2047, 24
    %v2835 = vpop.permute.xlu0 %2834
    %2836 = vrot.lane.b32.xlu0 %v2048, 24
    %v2837 = vpop.permute.xlu0 %2836
    %2838 = vrot.lane.b32.xlu0 %v2049, 24
    %v2839 = vpop.permute.xlu0 %2838
    %2840 = vrot.lane.b32.xlu0 %v2050, 24
    %v2841 = vpop.permute.xlu0 %2840
    %2842 = vrot.lane.b32.xlu0 %v2051, 24
    %v2843 = vpop.permute.xlu0 %2842
    %2844 = vrot.lane.b32.xlu0 %v2052, 24
    %v2845 = vpop.permute.xlu0 %2844
    %2846 = vrot.lane.b32.xlu0 %v2053, 24
    %v2847 = vpop.permute.xlu0 %2846
    %2848 = vrot.lane.b32.xlu0 %v2054, 24
    %v2849 = vpop.permute.xlu0 %2848
    %2850 = vrot.lane.b32.xlu0 %v2055, 24
    %v2851 = vpop.permute.xlu0 %2850
    %2852 = vrot.lane.b32.xlu0 %v2056, 24
    %v2853 = vpop.permute.xlu0 %2852
    %2854 = vrot.lane.b32.xlu0 %v2057, 24
    %v2855 = vpop.permute.xlu0 %2854
    %2856 = vrot.lane.b32.xlu0 %v2058, 24
    %v2857 = vpop.permute.xlu0 %2856
    %2858 = vrot.lane.b32.xlu0 %v2059, 24
    %v2859 = vpop.permute.xlu0 %2858
    %2924 = vrot.lane.b32.xlu0 %v2060, 28
    %v2925 = vpop.permute.xlu0 %2924
    %2926 = vrot.lane.b32.xlu0 %v2061, 28
    %v2927 = vpop.permute.xlu0 %2926
    %2928 = vrot.lane.b32.xlu0 %v2062, 28
    %v2929 = vpop.permute.xlu0 %2928
    %2930 = vrot.lane.b32.xlu0 %v2063, 28
    %v2931 = vpop.permute.xlu0 %2930
    %2932 = vrot.lane.b32.xlu0 %v2064, 28
    %v2933 = vpop.permute.xlu0 %2932
    %2934 = vrot.lane.b32.xlu0 %v2065, 28
    %v2935 = vpop.permute.xlu0 %2934
    %2936 = vrot.lane.b32.xlu0 %v2066, 28
    %v2937 = vpop.permute.xlu0 %2936
    %2938 = vrot.lane.b32.xlu0 %v2067, 28
    %v2939 = vpop.permute.xlu0 %2938
    %2940 = vrot.lane.b32.xlu0 %v2068, 28
    %v2941 = vpop.permute.xlu0 %2940
    %2942 = vrot.lane.b32.xlu0 %v2069, 28
    %v2943 = vpop.permute.xlu0 %2942
    %2944 = vrot.lane.b32.xlu0 %v2070, 28
    %v2945 = vpop.permute.xlu0 %2944
    %2946 = vrot.lane.b32.xlu0 %v2071, 28
    %v2947 = vpop.permute.xlu0 %2946
    %2948 = vrot.lane.b32.xlu0 %v2072, 28
    %v2949 = vpop.permute.xlu0 %2948
    %2950 = vrot.lane.b32.xlu0 %v2073, 28
    %v2951 = vpop.permute.xlu0 %2950
    %2952 = vrot.lane.b32.xlu0 %v2074, 28
    %v2953 = vpop.permute.xlu0 %2952
    %2954 = vrot.lane.b32.xlu0 %v2075, 28
    %v2955 = vpop.permute.xlu0 %2954
    %2956 = vrot.lane.b32.xlu0 %v2076, 28
    %v2957 = vpop.permute.xlu0 %2956
    %2958 = vrot.lane.b32.xlu0 %v2077, 28
    %v2959 = vpop.permute.xlu0 %2958
    %2960 = vrot.lane.b32.xlu0 %v2078, 28
    %v2961 = vpop.permute.xlu0 %2960
    %2962 = vrot.lane.b32.xlu0 %v2079, 28
    %v2963 = vpop.permute.xlu0 %2962
    %2964 = vrot.lane.b32.xlu0 %v2080, 28
    %v2965 = vpop.permute.xlu0 %2964
    %2966 = vrot.lane.b32.xlu0 %v2081, 28
    %v2967 = vpop.permute.xlu0 %2966
    %2968 = vrot.lane.b32.xlu0 %v2082, 28
    %v2969 = vpop.permute.xlu0 %2968
    %2970 = vrot.lane.b32.xlu0 %v2083, 28
    %v2971 = vpop.permute.xlu0 %2970
    %2972 = vrot.lane.b32.xlu0 %v2084, 28
    %v2973 = vpop.permute.xlu0 %2972
    %2974 = vrot.lane.b32.xlu0 %v2085, 28
    %v2975 = vpop.permute.xlu0 %2974
    %2976 = vrot.lane.b32.xlu0 %v2086, 28
    %v2977 = vpop.permute.xlu0 %2976
    %2978 = vrot.lane.b32.xlu0 %v2087, 28
    %v2979 = vpop.permute.xlu0 %2978
    %2980 = vrot.lane.b32.xlu0 %v2088, 28
    %v2981 = vpop.permute.xlu0 %2980
    %2982 = vrot.lane.b32.xlu0 %v2089, 28
    %v2983 = vpop.permute.xlu0 %2982
    %2984 = vrot.lane.b32.xlu0 %v2090, 28
    %v2985 = vpop.permute.xlu0 %2984
    %2986 = vrot.lane.b32.xlu0 %v2091, 28
    %v2987 = vpop.permute.xlu0 %2986
    %3052 = vrot.lane.b32.xlu0 %v2092, 32
    %v3053 = vpop.permute.xlu0 %3052
    %3054 = vrot.lane.b32.xlu0 %v2093, 32
    %v3055 = vpop.permute.xlu0 %3054
    %3056 = vrot.lane.b32.xlu0 %v2094, 32
    %v3057 = vpop.permute.xlu0 %3056
    %3058 = vrot.lane.b32.xlu0 %v2095, 32
    %v3059 = vpop.permute.xlu0 %3058
    %3060 = vrot.lane.b32.xlu0 %v2096, 32
    %v3061 = vpop.permute.xlu0 %3060
    %3062 = vrot.lane.b32.xlu0 %v2097, 32
    %v3063 = vpop.permute.xlu0 %3062
    %3064 = vrot.lane.b32.xlu0 %v2098, 32
    %v3065 = vpop.permute.xlu0 %3064
    %3066 = vrot.lane.b32.xlu0 %v2099, 32
    %v3067 = vpop.permute.xlu0 %3066
    %3068 = vrot.lane.b32.xlu0 %v2100, 32
    %v3069 = vpop.permute.xlu0 %3068
    %3070 = vrot.lane.b32.xlu0 %v2101, 32
    %v3071 = vpop.permute.xlu0 %3070
    %3072 = vrot.lane.b32.xlu0 %v2102, 32
    %v3073 = vpop.permute.xlu0 %3072
    %3074 = vrot.lane.b32.xlu0 %v2103, 32
    %v3075 = vpop.permute.xlu0 %3074
    %3076 = vrot.lane.b32.xlu0 %v2104, 32
    %v3077 = vpop.permute.xlu0 %3076
    %3078 = vrot.lane.b32.xlu0 %v2105, 32
    %v3079 = vpop.permute.xlu0 %3078
    %3080 = vrot.lane.b32.xlu0 %v2106, 32
    %v3081 = vpop.permute.xlu0 %3080
    %3082 = vrot.lane.b32.xlu0 %v2107, 32
    %v3083 = vpop.permute.xlu0 %3082
    %3084 = vrot.lane.b32.xlu0 %v2108, 32
    %v3085 = vpop.permute.xlu0 %3084
    %3086 = vrot.lane.b32.xlu0 %v2109, 32
    %v3087 = vpop.permute.xlu0 %3086
    %3088 = vrot.lane.b32.xlu0 %v2110, 32
    %v3089 = vpop.permute.xlu0 %3088
    %3090 = vrot.lane.b32.xlu0 %v2111, 32
    %v3091 = vpop.permute.xlu0 %3090
    %3092 = vrot.lane.b32.xlu0 %v2112, 32
    %v3093 = vpop.permute.xlu0 %3092
    %3094 = vrot.lane.b32.xlu0 %v2113, 32
    %v3095 = vpop.permute.xlu0 %3094
    %3096 = vrot.lane.b32.xlu0 %v2114, 32
    %v3097 = vpop.permute.xlu0 %3096
    %3098 = vrot.lane.b32.xlu0 %v2115, 32
    %v3099 = vpop.permute.xlu0 %3098
    %3100 = vrot.lane.b32.xlu0 %v2116, 32
    %v3101 = vpop.permute.xlu0 %3100
    %3102 = vrot.lane.b32.xlu0 %v2117, 32
    %v3103 = vpop.permute.xlu0 %3102
    %3104 = vrot.lane.b32.xlu0 %v2118, 32
    %v3105 = vpop.permute.xlu0 %3104
    %3106 = vrot.lane.b32.xlu0 %v2119, 32
    %v3107 = vpop.permute.xlu0 %3106
    %3108 = vrot.lane.b32.xlu0 %v2120, 32
    %v3109 = vpop.permute.xlu0 %3108
    %3110 = vrot.lane.b32.xlu0 %v2121, 32
    %v3111 = vpop.permute.xlu0 %3110
    %3112 = vrot.lane.b32.xlu0 %v2122, 32
    %v3113 = vpop.permute.xlu0 %3112
    %3114 = vrot.lane.b32.xlu0 %v2123, 32
    %v3115 = vpop.permute.xlu0 %3114
    %v3148 = vsel %vm18, %v1834, %v2157
    %v3149 = vsel %vm18, %v1835, %v2159
    %v3150 = vsel %vm18, %v1836, %v2161
    %v3151 = vsel %vm18, %v1837, %v2163
    %v3152 = vsel %vm18, %v1838, %v2165
    %v3153 = vsel %vm18, %v1839, %v2167
    %v3154 = vsel %vm18, %v1840, %v2169
    %v3155 = vsel %vm18, %v1841, %v2171
    %v3156 = vsel %vm18, %v1842, %v2173
    %v3157 = vsel %vm18, %v1843, %v2175
    %v3158 = vsel %vm18, %v1844, %v2177
    %v3159 = vsel %vm18, %v1845, %v2179
    %v3160 = vsel %vm18, %v1846, %v2181
    %v3161 = vsel %vm18, %v1847, %v2183
    %v3162 = vsel %vm18, %v1848, %v2185
    %v3163 = vsel %vm18, %v1849, %v2187
    %v3164 = vsel %vm18, %v1850, %v2189
    %v3165 = vsel %vm18, %v1851, %v2191
    %v3166 = vsel %vm18, %v1852, %v2193
    %v3167 = vsel %vm18, %v1853, %v2195
    %v3168 = vsel %vm18, %v1854, %v2197
    %v3169 = vsel %vm18, %v1855, %v2199
    %v3170 = vsel %vm18, %v1856, %v2201
    %v3171 = vsel %vm18, %v1857, %v2203
    %v3172 = vsel %vm18, %v1858, %v2205
    %v3173 = vsel %vm18, %v1859, %v2207
    %v3174 = vsel %vm18, %v1860, %v2209
    %v3175 = vsel %vm18, %v1861, %v2211
    %v3176 = vsel %vm18, %v1862, %v2213
    %v3177 = vsel %vm18, %v1863, %v2215
    %v3178 = vsel %vm18, %v1864, %v2217
    %v3179 = vsel %vm18, %v1865, %v2219
    %v3180 = vsel %vm1602, %v3148, %v2285
    %v3181 = vsel %vm1602, %v3149, %v2287
    %v3182 = vsel %vm1602, %v3150, %v2289
    %v3183 = vsel %vm1602, %v3151, %v2291
    %v3184 = vsel %vm1602, %v3152, %v2293
    %v3185 = vsel %vm1602, %v3153, %v2295
    %v3186 = vsel %vm1602, %v3154, %v2297
    %v3187 = vsel %vm1602, %v3155, %v2299
    %v3188 = vsel %vm1602, %v3156, %v2301
    %v3189 = vsel %vm1602, %v3157, %v2303
    %v3190 = vsel %vm1602, %v3158, %v2305
    %v3191 = vsel %vm1602, %v3159, %v2307
    %v3192 = vsel %vm1602, %v3160, %v2309
    %v3193 = vsel %vm1602, %v3161, %v2311
    %v3194 = vsel %vm1602, %v3162, %v2313
    %v3195 = vsel %vm1602, %v3163, %v2315
    %v3196 = vsel %vm1602, %v3164, %v2317
    %v3197 = vsel %vm1602, %v3165, %v2319
    %v3198 = vsel %vm1602, %v3166, %v2321
    %v3199 = vsel %vm1602, %v3167, %v2323
    %v3200 = vsel %vm1602, %v3168, %v2325
    %v3201 = vsel %vm1602, %v3169, %v2327
    %v3202 = vsel %vm1602, %v3170, %v2329
    %v3203 = vsel %vm1602, %v3171, %v2331
    %v3204 = vsel %vm1602, %v3172, %v2333
    %v3205 = vsel %vm1602, %v3173, %v2335
    %v3206 = vsel %vm1602, %v3174, %v2337
    %v3207 = vsel %vm1602, %v3175, %v2339
    %v3208 = vsel %vm1602, %v3176, %v2341
    %v3209 = vsel %vm1602, %v3177, %v2343
    %v3210 = vsel %vm1602, %v3178, %v2345
    %v3211 = vsel %vm1602, %v3179, %v2347
    %v3212 = vsel %vm1635, %v3180, %v2413
    %v3213 = vsel %vm1635, %v3181, %v2415
    %v3214 = vsel %vm1635, %v3182, %v2417
    %v3215 = vsel %vm1635, %v3183, %v2419
    %v3216 = vsel %vm1635, %v3184, %v2421
    %v3217 = vsel %vm1635, %v3185, %v2423
    %v3218 = vsel %vm1635, %v3186, %v2425
    %v3219 = vsel %vm1635, %v3187, %v2427
    %v3220 = vsel %vm1635, %v3188, %v2429
    %v3221 = vsel %vm1635, %v3189, %v2431
    %v3222 = vsel %vm1635, %v3190, %v2433
    %v3223 = vsel %vm1635, %v3191, %v2435
    %v3224 = vsel %vm1635, %v3192, %v2437
    %v3225 = vsel %vm1635, %v3193, %v2439
    %v3226 = vsel %vm1635, %v3194, %v2441
    %v3227 = vsel %vm1635, %v3195, %v2443
    %v3228 = vsel %vm1635, %v3196, %v2445
    %v3229 = vsel %vm1635, %v3197, %v2447
    %v3230 = vsel %vm1635, %v3198, %v2449
    %v3231 = vsel %vm1635, %v3199, %v2451
    %v3232 = vsel %vm1635, %v3200, %v2453
    %v3233 = vsel %vm1635, %v3201, %v2455
    %v3234 = vsel %vm1635, %v3202, %v2457
    %v3235 = vsel %vm1635, %v3203, %v2459
    %v3236 = vsel %vm1635, %v3204, %v2461
    %v3237 = vsel %vm1635, %v3205, %v2463
    %v3238 = vsel %vm1635, %v3206, %v2465
    %v3239 = vsel %vm1635, %v3207, %v2467
    %v3240 = vsel %vm1635, %v3208, %v2469
    %v3241 = vsel %vm1635, %v3209, %v2471
    %v3242 = vsel %vm1635, %v3210, %v2473
    %v3243 = vsel %vm1635, %v3211, %v2475
    %v3244 = vsel %vm1668, %v3212, %v2541
    %v3245 = vsel %vm1668, %v3213, %v2543
    %v3246 = vsel %vm1668, %v3214, %v2545
    %v3247 = vsel %vm1668, %v3215, %v2547
    %v3248 = vsel %vm1668, %v3216, %v2549
    %v3249 = vsel %vm1668, %v3217, %v2551
    %v3250 = vsel %vm1668, %v3218, %v2553
    %v3251 = vsel %vm1668, %v3219, %v2555
    %v3252 = vsel %vm1668, %v3220, %v2557
    %v3253 = vsel %vm1668, %v3221, %v2559
    %v3254 = vsel %vm1668, %v3222, %v2561
    %v3255 = vsel %vm1668, %v3223, %v2563
    %v3256 = vsel %vm1668, %v3224, %v2565
    %v3257 = vsel %vm1668, %v3225, %v2567
    %v3258 = vsel %vm1668, %v3226, %v2569
    %v3259 = vsel %vm1668, %v3227, %v2571
    %v3260 = vsel %vm1668, %v3228, %v2573
    %v3261 = vsel %vm1668, %v3229, %v2575
    %v3262 = vsel %vm1668, %v3230, %v2577
    %v3263 = vsel %vm1668, %v3231, %v2579
    %v3264 = vsel %vm1668, %v3232, %v2581
    %v3265 = vsel %vm1668, %v3233, %v2583
    %v3266 = vsel %vm1668, %v3234, %v2585
    %v3267 = vsel %vm1668, %v3235, %v2587
    %v3268 = vsel %vm1668, %v3236, %v2589
    %v3269 = vsel %vm1668, %v3237, %v2591
    %v3270 = vsel %vm1668, %v3238, %v2593
    %v3271 = vsel %vm1668, %v3239, %v2595
    %v3272 = vsel %vm1668, %v3240, %v2597
    %v3273 = vsel %vm1668, %v3241, %v2599
    %v3274 = vsel %vm1668, %v3242, %v2601
    %v3275 = vsel %vm1668, %v3243, %v2603
    %v3276 = vsel %vm1701, %v3244, %v2669
    %v3277 = vsel %vm1701, %v3245, %v2671
    %v3278 = vsel %vm1701, %v3246, %v2673
    %v3279 = vsel %vm1701, %v3247, %v2675
    %v3280 = vsel %vm1701, %v3248, %v2677
    %v3281 = vsel %vm1701, %v3249, %v2679
    %v3282 = vsel %vm1701, %v3250, %v2681
    %v3283 = vsel %vm1701, %v3251, %v2683
    %v3284 = vsel %vm1701, %v3252, %v2685
    %v3285 = vsel %vm1701, %v3253, %v2687
    %v3286 = vsel %vm1701, %v3254, %v2689
    %v3287 = vsel %vm1701, %v3255, %v2691
    %v3288 = vsel %vm1701, %v3256, %v2693
    %v3289 = vsel %vm1701, %v3257, %v2695
    %v3290 = vsel %vm1701, %v3258, %v2697
    %v3291 = vsel %vm1701, %v3259, %v2699
    %v3292 = vsel %vm1701, %v3260, %v2701
    %v3293 = vsel %vm1701, %v3261, %v2703
    %v3294 = vsel %vm1701, %v3262, %v2705
    %v3295 = vsel %vm1701, %v3263, %v2707
    %v3296 = vsel %vm1701, %v3264, %v2709
    %v3297 = vsel %vm1701, %v3265, %v2711
    %v3298 = vsel %vm1701, %v3266, %v2713
    %v3299 = vsel %vm1701, %v3267, %v2715
    %v3300 = vsel %vm1701, %v3268, %v2717
    %v3301 = vsel %vm1701, %v3269, %v2719
    %v3302 = vsel %vm1701, %v3270, %v2721
    %v3303 = vsel %vm1701, %v3271, %v2723
    %v3304 = vsel %vm1701, %v3272, %v2725
    %v3305 = vsel %vm1701, %v3273, %v2727
    %v3306 = vsel %vm1701, %v3274, %v2729
    %v3307 = vsel %vm1701, %v3275, %v2731
    %v3308 = vsel %vm1734, %v3276, %v2797
    %v3309 = vsel %vm1734, %v3277, %v2799
    %v3310 = vsel %vm1734, %v3278, %v2801
    %v3311 = vsel %vm1734, %v3279, %v2803
    %v3312 = vsel %vm1734, %v3280, %v2805
    %v3313 = vsel %vm1734, %v3281, %v2807
    %v3314 = vsel %vm1734, %v3282, %v2809
    %v3315 = vsel %vm1734, %v3283, %v2811
    %v3316 = vsel %vm1734, %v3284, %v2813
    %v3317 = vsel %vm1734, %v3285, %v2815
    %v3318 = vsel %vm1734, %v3286, %v2817
    %v3319 = vsel %vm1734, %v3287, %v2819
    %v3320 = vsel %vm1734, %v3288, %v2821
    %v3321 = vsel %vm1734, %v3289, %v2823
    %v3322 = vsel %vm1734, %v3290, %v2825
    %v3323 = vsel %vm1734, %v3291, %v2827
    %v3324 = vsel %vm1734, %v3292, %v2829
    %v3325 = vsel %vm1734, %v3293, %v2831
    %v3326 = vsel %vm1734, %v3294, %v2833
    %v3327 = vsel %vm1734, %v3295, %v2835
    %v3328 = vsel %vm1734, %v3296, %v2837
    %v3329 = vsel %vm1734, %v3297, %v2839
    %v3330 = vsel %vm1734, %v3298, %v2841
    %v3331 = vsel %vm1734, %v3299, %v2843
    %v3332 = vsel %vm1734, %v3300, %v2845
    %v3333 = vsel %vm1734, %v3301, %v2847
    %v3334 = vsel %vm1734, %v3302, %v2849
    %v3335 = vsel %vm1734, %v3303, %v2851
    %v3336 = vsel %vm1734, %v3304, %v2853
    %v3337 = vsel %vm1734, %v3305, %v2855
    %v3338 = vsel %vm1734, %v3306, %v2857
    %v3339 = vsel %vm1734, %v3307, %v2859
    %v3340 = vsel %vm1767, %v3308, %v2925
    %v3341 = vsel %vm1767, %v3309, %v2927
    %v3342 = vsel %vm1767, %v3310, %v2929
    %v3343 = vsel %vm1767, %v3311, %v2931
    %v3344 = vsel %vm1767, %v3312, %v2933
    %v3345 = vsel %vm1767, %v3313, %v2935
    %v3346 = vsel %vm1767, %v3314, %v2937
    %v3347 = vsel %vm1767, %v3315, %v2939
    %v3348 = vsel %vm1767, %v3316, %v2941
    %v3349 = vsel %vm1767, %v3317, %v2943
    %v3350 = vsel %vm1767, %v3318, %v2945
    %v3351 = vsel %vm1767, %v3319, %v2947
    %v3352 = vsel %vm1767, %v3320, %v2949
    %v3353 = vsel %vm1767, %v3321, %v2951
    %v3354 = vsel %vm1767, %v3322, %v2953
    %v3355 = vsel %vm1767, %v3323, %v2955
    %v3356 = vsel %vm1767, %v3324, %v2957
    %v3357 = vsel %vm1767, %v3325, %v2959
    %v3358 = vsel %vm1767, %v3326, %v2961
    %v3359 = vsel %vm1767, %v3327, %v2963
    %v3360 = vsel %vm1767, %v3328, %v2965
    %v3361 = vsel %vm1767, %v3329, %v2967
    %v3362 = vsel %vm1767, %v3330, %v2969
    %v3363 = vsel %vm1767, %v3331, %v2971
    %v3364 = vsel %vm1767, %v3332, %v2973
    %v3365 = vsel %vm1767, %v3333, %v2975
    %v3366 = vsel %vm1767, %v3334, %v2977
    %v3367 = vsel %vm1767, %v3335, %v2979
    %v3368 = vsel %vm1767, %v3336, %v2981
    %v3369 = vsel %vm1767, %v3337, %v2983
    %v3370 = vsel %vm1767, %v3338, %v2985
    %v3371 = vsel %vm1767, %v3339, %v2987
    %v3372 = vsel %vm1800, %v3340, %v3053
    %v3373 = vsel %vm1800, %v3341, %v3055
    %v3374 = vsel %vm1800, %v3342, %v3057
    %v3375 = vsel %vm1800, %v3343, %v3059
    %v3376 = vsel %vm1800, %v3344, %v3061
    %v3377 = vsel %vm1800, %v3345, %v3063
    %v3378 = vsel %vm1800, %v3346, %v3065
    %v3379 = vsel %vm1800, %v3347, %v3067
    %v3380 = vsel %vm1800, %v3348, %v3069
    %v3381 = vsel %vm1800, %v3349, %v3071
    %v3382 = vsel %vm1800, %v3350, %v3073
    %v3383 = vsel %vm1800, %v3351, %v3075
    %v3384 = vsel %vm1800, %v3352, %v3077
    %v3385 = vsel %vm1800, %v3353, %v3079
    %v3386 = vsel %vm1800, %v3354, %v3081
    %v3387 = vsel %vm1800, %v3355, %v3083
    %v3388 = vsel %vm1800, %v3356, %v3085
    %v3389 = vsel %vm1800, %v3357, %v3087
    %v3390 = vsel %vm1800, %v3358, %v3089
    %v3391 = vsel %vm1800, %v3359, %v3091
    %v3392 = vsel %vm1800, %v3360, %v3093
    %v3393 = vsel %vm1800, %v3361, %v3095
    %v3394 = vsel %vm1800, %v3362, %v3097
    %v3395 = vsel %vm1800, %v3363, %v3099
    %v3396 = vsel %vm1800, %v3364, %v3101
    %v3397 = vsel %vm1800, %v3365, %v3103
    %v3398 = vsel %vm1800, %v3366, %v3105
    %v3399 = vsel %vm1800, %v3367, %v3107
    %v3400 = vsel %vm1800, %v3368, %v3109
    %v3401 = vsel %vm1800, %v3369, %v3111
    %v3402 = vsel %vm1800, %v3370, %v3113
    %v3403 = vsel %vm1800, %v3371, %v3115
    %v3404 = vld [vmem:[%s1] sm:$0xff]
    %v3405 = vld [vmem:[%s1 + $0x8] sm:$0xff]
    %v3406 = vld [vmem:[%s1 + $0x10] sm:$0xff]
    %v3407 = vld [vmem:[%s1 + $0x18] sm:$0xff]
    %v3408 = vld [vmem:[%s1 + $0x20] sm:$0xf]
    %vm3409 = vcmask 293888
    %v3411 = vsel %vm3409, %v1801, 0
    %v3414 = vsel %vm3409, %v1802, 0
    %v3417 = vsel %vm3409, %v1803, 0
    %v3420 = vsel %vm3409, %v1804, 0
    %v3423 = vsel %vm3409, %v1805, 0
    %v3426 = vsel %vm3409, %v1806, 0
    %v3429 = vsel %vm3409, %v1807, 0
    %v3432 = vsel %vm3409, %v1808, 0
    %v3435 = vsel %vm3409, %v1809, 0
    %v3438 = vsel %vm3409, %v1810, 0
    %v3441 = vsel %vm3409, %v1811, 0
    %v3444 = vsel %vm3409, %v1812, 0
    %v3447 = vsel %vm3409, %v1813, 0
    %v3450 = vsel %vm3409, %v1814, 0
    %v3453 = vsel %vm3409, %v1815, 0
    %v3456 = vsel %vm3409, %v1816, 0
    %v3459 = vsel %vm3409, %v1817, 0
    %v3462 = vsel %vm3409, %v1818, 0
    %v3465 = vsel %vm3409, %v1819, 0
    %v3468 = vsel %vm3409, %v1820, 0
    %v3471 = vsel %vm3409, %v1821, 0
    %v3474 = vsel %vm3409, %v1822, 0
    %v3477 = vsel %vm3409, %v1823, 0
    %v3480 = vsel %vm3409, %v1824, 0
    %v3483 = vsel %vm3409, %v1825, 0
    %v3486 = vsel %vm3409, %v1826, 0
    %v3489 = vsel %vm3409, %v1827, 0
    %v3492 = vsel %vm3409, %v1828, 0
    %v3495 = vsel %vm3409, %v1829, 0
    %v3498 = vsel %vm3409, %v1830, 0
    %v3501 = vsel %vm3409, %v1831, 0
    %v3504 = vsel %vm3409, %v1832, 0
    %v3507 = vsel %vm3409, %v3372, 0
    %v3510 = vsel %vm3409, %v3373, 0
    %v3513 = vsel %vm3409, %v3374, 0
    %v3516 = vsel %vm3409, %v3375, 0
    %v3519 = vsel %vm3409, %v3376, 0
    %v3522 = vsel %vm3409, %v3377, 0
    %v3525 = vsel %vm3409, %v3378, 0
    %v3528 = vsel %vm3409, %v3379, 0
    %v3531 = vsel %vm3409, %v3380, 0
    %v3534 = vsel %vm3409, %v3381, 0
    %v3537 = vsel %vm3409, %v3382, 0
    %v3540 = vsel %vm3409, %v3383, 0
    %v3543 = vsel %vm3409, %v3384, 0
    %v3546 = vsel %vm3409, %v3385, 0
    %v3549 = vsel %vm3409, %v3386, 0
    %v3552 = vsel %vm3409, %v3387, 0
    %v3555 = vsel %vm3409, %v3388, 0
    %v3558 = vsel %vm3409, %v3389, 0
    %v3561 = vsel %vm3409, %v3390, 0
    %v3564 = vsel %vm3409, %v3391, 0
    %v3567 = vsel %vm3409, %v3392, 0
    %v3570 = vsel %vm3409, %v3393, 0
    %v3573 = vsel %vm3409, %v3394, 0
    %v3576 = vsel %vm3409, %v3395, 0
    %v3579 = vsel %vm3409, %v3396, 0
    %v3582 = vsel %vm3409, %v3397, 0
    %v3585 = vsel %vm3409, %v3398, 0
    %v3588 = vsel %vm3409, %v3399, 0
    %v3591 = vsel %vm3409, %v3400, 0
    %v3594 = vsel %vm3409, %v3401, 0
    %v3597 = vsel %vm3409, %v3402, 0
    %v3600 = vsel %vm3409, %v3403, 0
    %vm3602 = vcmask 1043456
    %v3604 = vsel %vm3602, %v3408, 0
    %3606 = vmatprep.subr.mxu0 0.0
    %3607 = vmatpush1.msra.mxu0 %v3404
    %3608 = vmatprep.subr.mxu0 0.0
    %3609 = vmatpush1.msra.mxu0 %v3405
    %3610 = vmatprep.subr.mxu0 0.0
    %3611 = vmatpush1.msra.mxu0 %v3406
    %3612 = vmatprep.subr.mxu0 0.0
    %3613 = vmatpush1.msra.mxu0 %v3407
    %3614 = vmatprep.subr.mxu0 0.0
    %3615 = vmatpush1.msra.mxu0 %v3604
    %3616 = vmatprep.subr.mxu0 0.0
    %3617 = vmatpush1.msra.mxu0 0.0
    %3618 = vmatprep.subr.mxu0 0.0
    %3619 = vmatpush1.msra.mxu0 0.0
    %3620 = vmatprep.subr.mxu0 0.0
    %3621 = vmatpush1.msra.mxu0 0.0
    %3622 = vmatprep.subr.mxu0 0.0
    %3623 = vmatpush1.msra.mxu0 0.0
    %3624 = vmatprep.subr.mxu0 0.0
    %3625 = vmatpush1.msra.mxu0 0.0
    %3626 = vmatprep.subr.mxu0 0.0
    %3627 = vmatpush1.msra.mxu0 0.0
    %3628 = vmatprep.subr.mxu0 0.0
    %3629 = vmatpush1.msra.mxu0 0.0
    %3630 = vmatprep.subr.mxu0 0.0
    %3631 = vmatpush1.msra.mxu0 0.0
    %3632 = vmatprep.subr.mxu0 0.0
    %3633 = vmatpush1.msra.mxu0 0.0
    %3634 = vmatprep.subr.mxu0 0.0
    %3635 = vmatpush1.msra.mxu0 0.0
    %3636 = vmatprep.subr.mxu0 0.0
    %3637 = vmatpush1.msra.mxu0 0.0
    %3638 = vmatprep.subr.mxu0 0.0
    %3639 = vmatpush1.msra.mxu0 0.0
    %3640 = vmatprep.subr.mxu0 0.0
    %3641 = vmatpush1.msra.mxu0 0.0
    %3642 = vmatprep.subr.mxu0 0.0
    %3643 = vmatpush1.msra.mxu0 0.0
    %3644 = vmatprep.subr.mxu0 0.0
    %3645 = vmatpush1.msra.mxu0 0.0
    %3646 = vmatprep.subr.mxu0 0.0
    %3647 = vmatpush1.msra.mxu0 0.0
    %3648 = vmatprep.subr.mxu0 0.0
    %3649 = vmatpush1.msra.mxu0 0.0
    %3650 = vmatprep.subr.mxu0 0.0
    %3651 = vmatpush1.msra.mxu0 0.0
    %3652 = vmatprep.subr.mxu0 0.0
    %3653 = vmatpush1.msra.mxu0 0.0
    %3654 = vmatprep.subr.mxu0 0.0
    %3655 = vmatpush1.msra.mxu0 0.0
    %3656 = vmatprep.subr.mxu0 0.0
    %3657 = vmatpush1.msra.mxu0 0.0
    %3658 = vmatprep.subr.mxu0 0.0
    %3659 = vmatpush1.msra.mxu0 0.0
    %3660 = vmatprep.subr.mxu0 0.0
    %3661 = vmatpush1.msra.mxu0 0.0
    %3662 = vmatprep.subr.mxu0 0.0
    %3663 = vmatpush1.msra.mxu0 0.0
    %3664 = vmatprep.subr.mxu0 0.0
    %3665 = vmatpush1.msra.mxu0 0.0
    %3666 = vmatprep.subr.mxu0 0.0
    %3667 = vmatpush1.msra.mxu0 0.0
    %3668 = vmatprep.subr.mxu0 0.0
    %3669 = vmatpush1.msra.mxu0 0.0
    %3670 = vmatprep.mubr.f32.mxu0 0.0
    %3671 = vmatmul.mubr.f32.gmra.mrb[0].mxu0 %v3411
    %v3672 = vpop.f32.mrb[0].mxu0
    %v3673 = vadd.f32 0.0, %v3672
    %v3674 = vpop.f32.mrb[0].mxu0
    %3675 = vmatprep.mubr.f32.mxu0 0.0
    %3676 = vmatmul.mubr.f32.gmra.mrb[0].mxu0 %v3414
    %v3677 = vpop.f32.mrb[0].mxu0
    %v3678 = vadd.f32 0.0, %v3677
    %v3679 = vpop.f32.mrb[0].mxu0
    %3680 = vmatprep.mubr.f32.mxu0 0.0
    %3681 = vmatmul.mubr.f32.gmra.mrb[0].mxu0 %v3417
    %v3682 = vpop.f32.mrb[0].mxu0
    %v3683 = vadd.f32 0.0, %v3682
    %v3684 = vpop.f32.mrb[0].mxu0
    %3685 = vmatprep.mubr.f32.mxu0 0.0
    %3686 = vmatmul.mubr.f32.gmra.mrb[0].mxu0 %v3420
    %v3687 = vpop.f32.mrb[0].mxu0
    %v3688 = vadd.f32 0.0, %v3687
    %v3689 = vpop.f32.mrb[0].mxu0
    %3690 = vmatprep.mubr.f32.mxu0 0.0
    %3691 = vmatmul.mubr.f32.gmra.mrb[0].mxu0 %v3423
    %v3692 = vpop.f32.mrb[0].mxu0
    %v3693 = vadd.f32 0.0, %v3692
    %v3694 = vpop.f32.mrb[0].mxu0
    %3695 = vmatprep.mubr.f32.mxu0 0.0
    %3696 = vmatmul.mubr.f32.gmra.mrb[0].mxu0 %v3426
    %v3697 = vpop.f32.mrb[0].mxu0
    %v3698 = vadd.f32 0.0, %v3697
    %v3699 = vpop.f32.mrb[0].mxu0
    %3700 = vmatprep.mubr.f32.mxu0 0.0
    %3701 = vmatmul.mubr.f32.gmra.mrb[0].mxu0 %v3429
    %v3702 = vpop.f32.mrb[0].mxu0
    %v3703 = vadd.f32 0.0, %v3702
    %v3704 = vpop.f32.mrb[0].mxu0
    %3705 = vmatprep.mubr.f32.mxu0 0.0
    %3706 = vmatmul.mubr.f32.gmra.mrb[0].mxu0 %v3432
    %v3707 = vpop.f32.mrb[0].mxu0
    %v3708 = vadd.f32 0.0, %v3707
    %v3709 = vpop.f32.mrb[0].mxu0
    %3710 = vmatprep.mubr.f32.mxu0 0.0
    %3711 = vmatmul.mubr.f32.gmra.mrb[0].mxu0 %v3435
    %v3712 = vpop.f32.mrb[0].mxu0
    %v3713 = vadd.f32 0.0, %v3712
    %v3714 = vpop.f32.mrb[0].mxu0
    %3715 = vmatprep.mubr.f32.mxu0 0.0
    %3716 = vmatmul.mubr.f32.gmra.mrb[0].mxu0 %v3438
    %v3717 = vpop.f32.mrb[0].mxu0
    %v3718 = vadd.f32 0.0, %v3717
    %v3719 = vpop.f32.mrb[0].mxu0
    %3720 = vmatprep.mubr.f32.mxu0 0.0
    %3721 = vmatmul.mubr.f32.gmra.mrb[0].mxu0 %v3441
    %v3722 = vpop.f32.mrb[0].mxu0
    %v3723 = vadd.f32 0.0, %v3722
    %v3724 = vpop.f32.mrb[0].mxu0
    %3725 = vmatprep.mubr.f32.mxu0 0.0
    %3726 = vmatmul.mubr.f32.gmra.mrb[0].mxu0 %v3444
    %v3727 = vpop.f32.mrb[0].mxu0
    %v3728 = vadd.f32 0.0, %v3727
    %v3729 = vpop.f32.mrb[0].mxu0
    %3730 = vmatprep.mubr.f32.mxu0 0.0
    %3731 = vmatmul.mubr.f32.gmra.mrb[0].mxu0 %v3447
    %v3732 = vpop.f32.mrb[0].mxu0
    %v3733 = vadd.f32 0.0, %v3732
    %v3734 = vpop.f32.mrb[0].mxu0
    %3735 = vmatprep.mubr.f32.mxu0 0.0
    %3736 = vmatmul.mubr.f32.gmra.mrb[0].mxu0 %v3450
    %v3737 = vpop.f32.mrb[0].mxu0
    %v3738 = vadd.f32 0.0, %v3737
    %v3739 = vpop.f32.mrb[0].mxu0
    %3740 = vmatprep.mubr.f32.mxu0 0.0
    %3741 = vmatmul.mubr.f32.gmra.mrb[0].mxu0 %v3453
    %v3742 = vpop.f32.mrb[0].mxu0
    %v3743 = vadd.f32 0.0, %v3742
    %v3744 = vpop.f32.mrb[0].mxu0
    %3745 = vmatprep.mubr.f32.mxu0 0.0
    %3746 = vmatmul.mubr.f32.gmra.mrb[0].mxu0 %v3456
    %v3747 = vpop.f32.mrb[0].mxu0
    %v3748 = vadd.f32 0.0, %v3747
    %v3749 = vpop.f32.mrb[0].mxu0
    %3750 = vmatprep.mubr.f32.mxu0 0.0
    %3751 = vmatmul.mubr.f32.gmra.mrb[0].mxu0 %v3459
    %v3752 = vpop.f32.mrb[0].mxu0
    %v3753 = vadd.f32 0.0, %v3752
    %v3754 = vpop.f32.mrb[0].mxu0
    %3755 = vmatprep.mubr.f32.mxu0 0.0
    %3756 = vmatmul.mubr.f32.gmra.mrb[0].mxu0 %v3462
    %v3757 = vpop.f32.mrb[0].mxu0
    %v3758 = vadd.f32 0.0, %v3757
    %v3759 = vpop.f32.mrb[0].mxu0
    %3760 = vmatprep.mubr.f32.mxu0 0.0
    %3761 = vmatmul.mubr.f32.gmra.mrb[0].mxu0 %v3465
    %v3762 = vpop.f32.mrb[0].mxu0
    %v3763 = vadd.f32 0.0, %v3762
    %v3764 = vpop.f32.mrb[0].mxu0
    %3765 = vmatprep.mubr.f32.mxu0 0.0
    %3766 = vmatmul.mubr.f32.gmra.mrb[0].mxu0 %v3468
    %v3767 = vpop.f32.mrb[0].mxu0
    %v3768 = vadd.f32 0.0, %v3767
    %v3769 = vpop.f32.mrb[0].mxu0
    %3770 = vmatprep.mubr.f32.mxu0 0.0
    %3771 = vmatmul.mubr.f32.gmra.mrb[0].mxu0 %v3471
    %v3772 = vpop.f32.mrb[0].mxu0
    %v3773 = vadd.f32 0.0, %v3772
    %v3774 = vpop.f32.mrb[0].mxu0
    %3775 = vmatprep.mubr.f32.mxu0 0.0
    %3776 = vmatmul.mubr.f32.gmra.mrb[0].mxu0 %v3474
    %v3777 = vpop.f32.mrb[0].mxu0
    %v3778 = vadd.f32 0.0, %v3777
    %v3779 = vpop.f32.mrb[0].mxu0
    %3780 = vmatprep.mubr.f32.mxu0 0.0
    %3781 = vmatmul.mubr.f32.gmra.mrb[0].mxu0 %v3477
    %v3782 = vpop.f32.mrb[0].mxu0
    %v3783 = vadd.f32 0.0, %v3782
    %v3784 = vpop.f32.mrb[0].mxu0
    %3785 = vmatprep.mubr.f32.mxu0 0.0
    %3786 = vmatmul.mubr.f32.gmra.mrb[0].mxu0 %v3480
    %v3787 = vpop.f32.mrb[0].mxu0
    %v3788 = vadd.f32 0.0, %v3787
    %v3789 = vpop.f32.mrb[0].mxu0
    %3790 = vmatprep.mubr.f32.mxu0 0.0
    %3791 = vmatmul.mubr.f32.gmra.mrb[0].mxu0 %v3483
    %v3792 = vpop.f32.mrb[0].mxu0
    %v3793 = vadd.f32 0.0, %v3792
    %v3794 = vpop.f32.mrb[0].mxu0
    %3795 = vmatprep.mubr.f32.mxu0 0.0
    %3796 = vmatmul.mubr.f32.gmra.mrb[0].mxu0 %v3486
    %v3797 = vpop.f32.mrb[0].mxu0
    %v3798 = vadd.f32 0.0, %v3797
    %v3799 = vpop.f32.mrb[0].mxu0
    %3800 = vmatprep.mubr.f32.mxu0 0.0
    %3801 = vmatmul.mubr.f32.gmra.mrb[0].mxu0 %v3489
    %v3802 = vpop.f32.mrb[0].mxu0
    %v3803 = vadd.f32 0.0, %v3802
    %v3804 = vpop.f32.mrb[0].mxu0
    %3805 = vmatprep.mubr.f32.mxu0 0.0
    %3806 = vmatmul.mubr.f32.gmra.mrb[0].mxu0 %v3492
    %v3807 = vpop.f32.mrb[0].mxu0
    %v3808 = vadd.f32 0.0, %v3807
    %v3809 = vpop.f32.mrb[0].mxu0
    %3810 = vmatprep.mubr.f32.mxu0 0.0
    %3811 = vmatmul.mubr.f32.gmra.mrb[0].mxu0 %v3495
    %v3812 = vpop.f32.mrb[0].mxu0
    %v3813 = vadd.f32 0.0, %v3812
    %v3814 = vpop.f32.mrb[0].mxu0
    %3815 = vmatprep.mubr.f32.mxu0 0.0
    %3816 = vmatmul.mubr.f32.gmra.mrb[0].mxu0 %v3498
    %v3817 = vpop.f32.mrb[0].mxu0
    %v3818 = vadd.f32 0.0, %v3817
    %v3819 = vpop.f32.mrb[0].mxu0
    %3820 = vmatprep.mubr.f32.mxu0 0.0
    %3821 = vmatmul.mubr.f32.gmra.mrb[0].mxu0 %v3501
    %v3822 = vpop.f32.mrb[0].mxu0
    %v3823 = vadd.f32 0.0, %v3822
    %v3824 = vpop.f32.mrb[0].mxu0
    %3825 = vmatprep.mubr.f32.mxu0 0.0
    %3826 = vmatmul.mubr.f32.gmra.mrb[0].mxu0 %v3504
    %v3827 = vpop.f32.mrb[0].mxu0
    %v3828 = vadd.f32 0.0, %v3827
    %v3829 = vpop.f32.mrb[0].mxu0
    %3830 = vmatprep.mubr.f32.mxu0 0.0
    %3831 = vmatmul.mubr.f32.gmra.mrb[0].mxu0 %v3507
    %v3832 = vpop.f32.mrb[0].mxu0
    %v3833 = vadd.f32 0.0, %v3832
    %v3834 = vpop.f32.mrb[0].mxu0
    %3835 = vmatprep.mubr.f32.mxu0 0.0
    %3836 = vmatmul.mubr.f32.gmra.mrb[0].mxu0 %v3510
    %v3837 = vpop.f32.mrb[0].mxu0
    %v3838 = vadd.f32 0.0, %v3837
    %v3839 = vpop.f32.mrb[0].mxu0
    %3840 = vmatprep.mubr.f32.mxu0 0.0
    %3841 = vmatmul.mubr.f32.gmra.mrb[0].mxu0 %v3513
    %v3842 = vpop.f32.mrb[0].mxu0
    %v3843 = vadd.f32 0.0, %v3842
    %v3844 = vpop.f32.mrb[0].mxu0
    %3845 = vmatprep.mubr.f32.mxu0 0.0
    %3846 = vmatmul.mubr.f32.gmra.mrb[0].mxu0 %v3516
    %v3847 = vpop.f32.mrb[0].mxu0
    %v3848 = vadd.f32 0.0, %v3847
    %v3849 = vpop.f32.mrb[0].mxu0
    %3850 = vmatprep.mubr.f32.mxu0 0.0
    %3851 = vmatmul.mubr.f32.gmra.mrb[0].mxu0 %v3519
    %v3852 = vpop.f32.mrb[0].mxu0
    %v3853 = vadd.f32 0.0, %v3852
    %v3854 = vpop.f32.mrb[0].mxu0
    %3855 = vmatprep.mubr.f32.mxu0 0.0
    %3856 = vmatmul.mubr.f32.gmra.mrb[0].mxu0 %v3522
    %v3857 = vpop.f32.mrb[0].mxu0
    %v3858 = vadd.f32 0.0, %v3857
    %v3859 = vpop.f32.mrb[0].mxu0
    %3860 = vmatprep.mubr.f32.mxu0 0.0
    %3861 = vmatmul.mubr.f32.gmra.mrb[0].mxu0 %v3525
    %v3862 = vpop.f32.mrb[0].mxu0
    %v3863 = vadd.f32 0.0, %v3862
    %v3864 = vpop.f32.mrb[0].mxu0
    %3865 = vmatprep.mubr.f32.mxu0 0.0
    %3866 = vmatmul.mubr.f32.gmra.mrb[0].mxu0 %v3528
    %v3867 = vpop.f32.mrb[0].mxu0
    %v3868 = vadd.f32 0.0, %v3867
    %v3869 = vpop.f32.mrb[0].mxu0
    %3870 = vmatprep.mubr.f32.mxu0 0.0
    %3871 = vmatmul.mubr.f32.gmra.mrb[0].mxu0 %v3531
    %v3872 = vpop.f32.mrb[0].mxu0
    %v3873 = vadd.f32 0.0, %v3872
    %v3874 = vpop.f32.mrb[0].mxu0
    %3875 = vmatprep.mubr.f32.mxu0 0.0
    %3876 = vmatmul.mubr.f32.gmra.mrb[0].mxu0 %v3534
    %v3877 = vpop.f32.mrb[0].mxu0
    %v3878 = vadd.f32 0.0, %v3877
    %v3879 = vpop.f32.mrb[0].mxu0
    %3880 = vmatprep.mubr.f32.mxu0 0.0
    %3881 = vmatmul.mubr.f32.gmra.mrb[0].mxu0 %v3537
    %v3882 = vpop.f32.mrb[0].mxu0
    %v3883 = vadd.f32 0.0, %v3882
    %v3884 = vpop.f32.mrb[0].mxu0
    %3885 = vmatprep.mubr.f32.mxu0 0.0
    %3886 = vmatmul.mubr.f32.gmra.mrb[0].mxu0 %v3540
    %v3887 = vpop.f32.mrb[0].mxu0
    %v3888 = vadd.f32 0.0, %v3887
    %v3889 = vpop.f32.mrb[0].mxu0
    %3890 = vmatprep.mubr.f32.mxu0 0.0
    %3891 = vmatmul.mubr.f32.gmra.mrb[0].mxu0 %v3543
    %v3892 = vpop.f32.mrb[0].mxu0
    %v3893 = vadd.f32 0.0, %v3892
    %v3894 = vpop.f32.mrb[0].mxu0
    %3895 = vmatprep.mubr.f32.mxu0 0.0
    %3896 = vmatmul.mubr.f32.gmra.mrb[0].mxu0 %v3546
    %v3897 = vpop.f32.mrb[0].mxu0
    %v3898 = vadd.f32 0.0, %v3897
    %v3899 = vpop.f32.mrb[0].mxu0
    %3900 = vmatprep.mubr.f32.mxu0 0.0
    %3901 = vmatmul.mubr.f32.gmra.mrb[0].mxu0 %v3549
    %v3902 = vpop.f32.mrb[0].mxu0
    %v3903 = vadd.f32 0.0, %v3902
    %v3904 = vpop.f32.mrb[0].mxu0
    %3905 = vmatprep.mubr.f32.mxu0 0.0
    %3906 = vmatmul.mubr.f32.gmra.mrb[0].mxu0 %v3552
    %v3907 = vpop.f32.mrb[0].mxu0
    %v3908 = vadd.f32 0.0, %v3907
    %v3909 = vpop.f32.mrb[0].mxu0
    %3910 = vmatprep.mubr.f32.mxu0 0.0
    %3911 = vmatmul.mubr.f32.gmra.mrb[0].mxu0 %v3555
    %v3912 = vpop.f32.mrb[0].mxu0
    %v3913 = vadd.f32 0.0, %v3912
    %v3914 = vpop.f32.mrb[0].mxu0
    %3915 = vmatprep.mubr.f32.mxu0 0.0
    %3916 = vmatmul.mubr.f32.gmra.mrb[0].mxu0 %v3558
    %v3917 = vpop.f32.mrb[0].mxu0
    %v3918 = vadd.f32 0.0, %v3917
    %v3919 = vpop.f32.mrb[0].mxu0
    %3920 = vmatprep.mubr.f32.mxu0 0.0
    %3921 = vmatmul.mubr.f32.gmra.mrb[0].mxu0 %v3561
    %v3922 = vpop.f32.mrb[0].mxu0
    %v3923 = vadd.f32 0.0, %v3922
    %v3924 = vpop.f32.mrb[0].mxu0
    %3925 = vmatprep.mubr.f32.mxu0 0.0
    %3926 = vmatmul.mubr.f32.gmra.mrb[0].mxu0 %v3564
    %v3927 = vpop.f32.mrb[0].mxu0
    %v3928 = vadd.f32 0.0, %v3927
    %v3929 = vpop.f32.mrb[0].mxu0
    %3930 = vmatprep.mubr.f32.mxu0 0.0
    %3931 = vmatmul.mubr.f32.gmra.mrb[0].mxu0 %v3567
    %v3932 = vpop.f32.mrb[0].mxu0
    %v3933 = vadd.f32 0.0, %v3932
    %v3934 = vpop.f32.mrb[0].mxu0
    %3935 = vmatprep.mubr.f32.mxu0 0.0
    %3936 = vmatmul.mubr.f32.gmra.mrb[0].mxu0 %v3570
    %v3937 = vpop.f32.mrb[0].mxu0
    %v3938 = vadd.f32 0.0, %v3937
    %v3939 = vpop.f32.mrb[0].mxu0
    %3940 = vmatprep.mubr.f32.mxu0 0.0
    %3941 = vmatmul.mubr.f32.gmra.mrb[0].mxu0 %v3573
    %v3942 = vpop.f32.mrb[0].mxu0
    %v3943 = vadd.f32 0.0, %v3942
    %v3944 = vpop.f32.mrb[0].mxu0
    %3945 = vmatprep.mubr.f32.mxu0 0.0
    %3946 = vmatmul.mubr.f32.gmra.mrb[0].mxu0 %v3576
    %v3947 = vpop.f32.mrb[0].mxu0
    %v3948 = vadd.f32 0.0, %v3947
    %v3949 = vpop.f32.mrb[0].mxu0
    %3950 = vmatprep.mubr.f32.mxu0 0.0
    %3951 = vmatmul.mubr.f32.gmra.mrb[0].mxu0 %v3579
    %v3952 = vpop.f32.mrb[0].mxu0
    %v3953 = vadd.f32 0.0, %v3952
    %v3954 = vpop.f32.mrb[0].mxu0
    %3955 = vmatprep.mubr.f32.mxu0 0.0
    %3956 = vmatmul.mubr.f32.gmra.mrb[0].mxu0 %v3582
    %v3957 = vpop.f32.mrb[0].mxu0
    %v3958 = vadd.f32 0.0, %v3957
    %v3959 = vpop.f32.mrb[0].mxu0
    %3960 = vmatprep.mubr.f32.mxu0 0.0
    %3961 = vmatmul.mubr.f32.gmra.mrb[0].mxu0 %v3585
    %v3962 = vpop.f32.mrb[0].mxu0
    %v3963 = vadd.f32 0.0, %v3962
    %v3964 = vpop.f32.mrb[0].mxu0
    %3965 = vmatprep.mubr.f32.mxu0 0.0
    %3966 = vmatmul.mubr.f32.gmra.mrb[0].mxu0 %v3588
    %v3967 = vpop.f32.mrb[0].mxu0
    %v3968 = vadd.f32 0.0, %v3967
    %v3969 = vpop.f32.mrb[0].mxu0
    %3970 = vmatprep.mubr.f32.mxu0 0.0
    %3971 = vmatmul.mubr.f32.gmra.mrb[0].mxu0 %v3591
    %v3972 = vpop.f32.mrb[0].mxu0
    %v3973 = vadd.f32 0.0, %v3972
    %v3974 = vpop.f32.mrb[0].mxu0
    %3975 = vmatprep.mubr.f32.mxu0 0.0
    %3976 = vmatmul.mubr.f32.gmra.mrb[0].mxu0 %v3594
    %v3977 = vpop.f32.mrb[0].mxu0
    %v3978 = vadd.f32 0.0, %v3977
    %v3979 = vpop.f32.mrb[0].mxu0
    %3980 = vmatprep.mubr.f32.mxu0 0.0
    %3981 = vmatmul.mubr.f32.gmra.mrb[0].mxu0 %v3597
    %v3982 = vpop.f32.mrb[0].mxu0
    %v3983 = vadd.f32 0.0, %v3982
    %v3984 = vpop.f32.mrb[0].mxu0
    %3985 = vmatprep.mubr.f32.mxu0 0.0
    %3986 = vmatmul.mubr.f32.gmra.mrb[0].mxu0 %v3600
    %v3987 = vpop.f32.mrb[0].mxu0
    %v3988 = vadd.f32 0.0, %v3987
    %v3989 = vpop.f32.mrb[0].mxu0
    %3990 = vdwg.mxu0
    %v3991 = vsel %vm1602, %v3673, 0.0
    %v3992 = vsel %vm1602, %v3678, 0.0
    %v3993 = vadd.f32 %v3991, %v3992
    %v3994 = vsel %vm1602, %v3683, 0.0
    %v3995 = vadd.f32 %v3993, %v3994
    %v3996 = vsel %vm1602, %v3688, 0.0
    %v3997 = vadd.f32 %v3995, %v3996
    %v3998 = vsel %vm1602, %v3693, 0.0
    %v3999 = vadd.f32 %v3997, %v3998
    %v4000 = vsel %vm1602, %v3698, 0.0
    %v4001 = vadd.f32 %v3999, %v4000
    %v4002 = vsel %vm1602, %v3703, 0.0
    %v4003 = vadd.f32 %v4001, %v4002
    %v4004 = vsel %vm1602, %v3708, 0.0
    %v4005 = vadd.f32 %v4003, %v4004
    %v4006 = vsel %vm1602, %v3713, 0.0
    %v4007 = vadd.f32 %v4005, %v4006
    %v4008 = vsel %vm1602, %v3718, 0.0
    %v4009 = vadd.f32 %v4007, %v4008
    %v4010 = vsel %vm1602, %v3723, 0.0
    %v4011 = vadd.f32 %v4009, %v4010
    %v4012 = vsel %vm1602, %v3728, 0.0
    %v4013 = vadd.f32 %v4011, %v4012
    %v4014 = vsel %vm1602, %v3733, 0.0
    %v4015 = vadd.f32 %v4013, %v4014
    %v4016 = vsel %vm1602, %v3738, 0.0
    %v4017 = vadd.f32 %v4015, %v4016
    %v4018 = vsel %vm1602, %v3743, 0.0
    %v4019 = vadd.f32 %v4017, %v4018
    %v4020 = vsel %vm1602, %v3748, 0.0
    %v4021 = vadd.f32 %v4019, %v4020
    %v4022 = vsel %vm1602, %v3753, 0.0
    %v4023 = vadd.f32 %v4021, %v4022
    %v4024 = vsel %vm1602, %v3758, 0.0
    %v4025 = vadd.f32 %v4023, %v4024
    %v4026 = vsel %vm1602, %v3763, 0.0
    %v4027 = vadd.f32 %v4025, %v4026
    %v4028 = vsel %vm1602, %v3768, 0.0
    %v4029 = vadd.f32 %v4027, %v4028
    %v4030 = vsel %vm1602, %v3773, 0.0
    %v4031 = vadd.f32 %v4029, %v4030
    %v4032 = vsel %vm1602, %v3778, 0.0
    %v4033 = vadd.f32 %v4031, %v4032
    %v4034 = vsel %vm1602, %v3783, 0.0
    %v4035 = vadd.f32 %v4033, %v4034
    %v4036 = vsel %vm1602, %v3788, 0.0
    %v4037 = vadd.f32 %v4035, %v4036
    %v4038 = vsel %vm1602, %v3793, 0.0
    %v4039 = vadd.f32 %v4037, %v4038
    %v4040 = vsel %vm1602, %v3798, 0.0
    %v4041 = vadd.f32 %v4039, %v4040
    %v4042 = vsel %vm1602, %v3803, 0.0
    %v4043 = vadd.f32 %v4041, %v4042
    %v4044 = vsel %vm1602, %v3808, 0.0
    %v4045 = vadd.f32 %v4043, %v4044
    %v4046 = vsel %vm1602, %v3813, 0.0
    %v4047 = vadd.f32 %v4045, %v4046
    %v4048 = vsel %vm1602, %v3818, 0.0
    %v4049 = vadd.f32 %v4047, %v4048
    %v4050 = vsel %vm1602, %v3823, 0.0
    %v4051 = vadd.f32 %v4049, %v4050
    %v4052 = vsel %vm1602, %v3828, 0.0
    %v4053 = vadd.f32 %v4051, %v4052
    %v4054 = vsel %vm1602, %v3833, 0.0
    %v4055 = vadd.f32 %v4053, %v4054
    %v4056 = vsel %vm1602, %v3838, 0.0
    %v4057 = vadd.f32 %v4055, %v4056
    %v4058 = vsel %vm1602, %v3843, 0.0
    %v4059 = vadd.f32 %v4057, %v4058
    %v4060 = vsel %vm1602, %v3848, 0.0
    %v4061 = vadd.f32 %v4059, %v4060
    %v4062 = vsel %vm1602, %v3853, 0.0
    %v4063 = vadd.f32 %v4061, %v4062
    %v4064 = vsel %vm1602, %v3858, 0.0
    %v4065 = vadd.f32 %v4063, %v4064
    %v4066 = vsel %vm1602, %v3863, 0.0
    %v4067 = vadd.f32 %v4065, %v4066
    %v4068 = vsel %vm1602, %v3868, 0.0
    %v4069 = vadd.f32 %v4067, %v4068
    %v4070 = vsel %vm1602, %v3873, 0.0
    %v4071 = vadd.f32 %v4069, %v4070
    %v4072 = vsel %vm1602, %v3878, 0.0
    %v4073 = vadd.f32 %v4071, %v4072
    %v4074 = vsel %vm1602, %v3883, 0.0
    %v4075 = vadd.f32 %v4073, %v4074
    %v4076 = vsel %vm1602, %v3888, 0.0
    %v4077 = vadd.f32 %v4075, %v4076
    %v4078 = vsel %vm1602, %v3893, 0.0
    %v4079 = vadd.f32 %v4077, %v4078
    %v4080 = vsel %vm1602, %v3898, 0.0
    %v4081 = vadd.f32 %v4079, %v4080
    %v4082 = vsel %vm1602, %v3903, 0.0
    %v4083 = vadd.f32 %v4081, %v4082
    %v4084 = vsel %vm1602, %v3908, 0.0
    %v4085 = vadd.f32 %v4083, %v4084
    %v4086 = vsel %vm1602, %v3913, 0.0
    %v4087 = vadd.f32 %v4085, %v4086
    %v4088 = vsel %vm1602, %v3918, 0.0
    %v4089 = vadd.f32 %v4087, %v4088
    %v4090 = vsel %vm1602, %v3923, 0.0
    %v4091 = vadd.f32 %v4089, %v4090
    %v4092 = vsel %vm1602, %v3928, 0.0
    %v4093 = vadd.f32 %v4091, %v4092
    %v4094 = vsel %vm1602, %v3933, 0.0
    %v4095 = vadd.f32 %v4093, %v4094
    %v4096 = vsel %vm1602, %v3938, 0.0
    %v4097 = vadd.f32 %v4095, %v4096
    %v4098 = vsel %vm1602, %v3943, 0.0
    %v4099 = vadd.f32 %v4097, %v4098
    %v4100 = vsel %vm1602, %v3948, 0.0
    %v4101 = vadd.f32 %v4099, %v4100
    %v4102 = vsel %vm1602, %v3953, 0.0
    %v4103 = vadd.f32 %v4101, %v4102
    %v4104 = vsel %vm1602, %v3958, 0.0
    %v4105 = vadd.f32 %v4103, %v4104
    %v4106 = vsel %vm1602, %v3963, 0.0
    %v4107 = vadd.f32 %v4105, %v4106
    %v4108 = vsel %vm1602, %v3968, 0.0
    %v4109 = vadd.f32 %v4107, %v4108
    %v4110 = vsel %vm1602, %v3973, 0.0
    %v4111 = vadd.f32 %v4109, %v4110
    %v4112 = vsel %vm1602, %v3978, 0.0
    %v4113 = vadd.f32 %v4111, %v4112
    %v4114 = vsel %vm1602, %v3983, 0.0
    %v4115 = vadd.f32 %v4113, %v4114
    %v4116 = vsel %vm1602, %v3988, 0.0
    %v4117 = vadd.f32 %v4115, %v4116
    %v4118 = vrot.slane %v4117, 4
    %v4119 = vadd.f32 %v4117, %v4118
    %v4120 = vrot.slane %v4119, 2
    %v4121 = vadd.f32 %v4119, %v4120
    %v4122 = vrot.slane %v4121, 1
    %v4123 = vadd.f32 %v4121, %v4122
    %v4124 = vrcp.pop 512.0
    %v4125 = vmul.f32 %v4123, %v4124
    %v4126 = vmul.f32 %v3673, %v3673
    %v4127 = vmul.f32 %v3678, %v3678
    %v4128 = vmul.f32 %v3683, %v3683
    %v4129 = vmul.f32 %v3688, %v3688
    %v4130 = vmul.f32 %v3693, %v3693
    %v4131 = vmul.f32 %v3698, %v3698
    %v4132 = vmul.f32 %v3703, %v3703
    %v4133 = vmul.f32 %v3708, %v3708
    %v4134 = vmul.f32 %v3713, %v3713
    %v4135 = vmul.f32 %v3718, %v3718
    %v4136 = vmul.f32 %v3723, %v3723
    %v4137 = vmul.f32 %v3728, %v3728
    %v4138 = vmul.f32 %v3733, %v3733
    %v4139 = vmul.f32 %v3738, %v3738
    %v4140 = vmul.f32 %v3743, %v3743
    %v4141 = vmul.f32 %v3748, %v3748
    %v4142 = vmul.f32 %v3753, %v3753
    %v4143 = vmul.f32 %v3758, %v3758
    %v4144 = vmul.f32 %v3763, %v3763
    %v4145 = vmul.f32 %v3768, %v3768
    %v4146 = vmul.f32 %v3773, %v3773
    %v4147 = vmul.f32 %v3778, %v3778
    %v4148 = vmul.f32 %v3783, %v3783
    %v4149 = vmul.f32 %v3788, %v3788
    %v4150 = vmul.f32 %v3793, %v3793
    %v4151 = vmul.f32 %v3798, %v3798
    %v4152 = vmul.f32 %v3803, %v3803
    %v4153 = vmul.f32 %v3808, %v3808
    %v4154 = vmul.f32 %v3813, %v3813
    %v4155 = vmul.f32 %v3818, %v3818
    %v4156 = vmul.f32 %v3823, %v3823
    %v4157 = vmul.f32 %v3828, %v3828
    %v4158 = vmul.f32 %v3833, %v3833
    %v4159 = vmul.f32 %v3838, %v3838
    %v4160 = vmul.f32 %v3843, %v3843
    %v4161 = vmul.f32 %v3848, %v3848
    %v4162 = vmul.f32 %v3853, %v3853
    %v4163 = vmul.f32 %v3858, %v3858
    %v4164 = vmul.f32 %v3863, %v3863
    %v4165 = vmul.f32 %v3868, %v3868
    %v4166 = vmul.f32 %v3873, %v3873
    %v4167 = vmul.f32 %v3878, %v3878
    %v4168 = vmul.f32 %v3883, %v3883
    %v4169 = vmul.f32 %v3888, %v3888
    %v4170 = vmul.f32 %v3893, %v3893
    %v4171 = vmul.f32 %v3898, %v3898
    %v4172 = vmul.f32 %v3903, %v3903
    %v4173 = vmul.f32 %v3908, %v3908
    %v4174 = vmul.f32 %v3913, %v3913
    %v4175 = vmul.f32 %v3918, %v3918
    %v4176 = vmul.f32 %v3923, %v3923
    %v4177 = vmul.f32 %v3928, %v3928
    %v4178 = vmul.f32 %v3933, %v3933
    %v4179 = vmul.f32 %v3938, %v3938
    %v4180 = vmul.f32 %v3943, %v3943
    %v4181 = vmul.f32 %v3948, %v3948
    %v4182 = vmul.f32 %v3953, %v3953
    %v4183 = vmul.f32 %v3958, %v3958
    %v4184 = vmul.f32 %v3963, %v3963
    %v4185 = vmul.f32 %v3968, %v3968
    %v4186 = vmul.f32 %v3973, %v3973
    %v4187 = vmul.f32 %v3978, %v3978
    %v4188 = vmul.f32 %v3983, %v3983
    %v4189 = vmul.f32 %v3988, %v3988
    %v4190 = vsel %vm1602, %v4126, 0.0
    %v4191 = vsel %vm1602, %v4127, 0.0
    %v4192 = vadd.f32 %v4190, %v4191
    %v4193 = vsel %vm1602, %v4128, 0.0
    %v4194 = vadd.f32 %v4192, %v4193
    %v4195 = vsel %vm1602, %v4129, 0.0
    %v4196 = vadd.f32 %v4194, %v4195
    %v4197 = vsel %vm1602, %v4130, 0.0
    %v4198 = vadd.f32 %v4196, %v4197
    %v4199 = vsel %vm1602, %v4131, 0.0
    %v4200 = vadd.f32 %v4198, %v4199
    %v4201 = vsel %vm1602, %v4132, 0.0
    %v4202 = vadd.f32 %v4200, %v4201
    %v4203 = vsel %vm1602, %v4133, 0.0
    %v4204 = vadd.f32 %v4202, %v4203
    %v4205 = vsel %vm1602, %v4134, 0.0
    %v4206 = vadd.f32 %v4204, %v4205
    %v4207 = vsel %vm1602, %v4135, 0.0
    %v4208 = vadd.f32 %v4206, %v4207
    %v4209 = vsel %vm1602, %v4136, 0.0
    %v4210 = vadd.f32 %v4208, %v4209
    %v4211 = vsel %vm1602, %v4137, 0.0
    %v4212 = vadd.f32 %v4210, %v4211
    %v4213 = vsel %vm1602, %v4138, 0.0
    %v4214 = vadd.f32 %v4212, %v4213
    %v4215 = vsel %vm1602, %v4139, 0.0
    %v4216 = vadd.f32 %v4214, %v4215
    %v4217 = vsel %vm1602, %v4140, 0.0
    %v4218 = vadd.f32 %v4216, %v4217
    %v4219 = vsel %vm1602, %v4141, 0.0
    %v4220 = vadd.f32 %v4218, %v4219
    %v4221 = vsel %vm1602, %v4142, 0.0
    %v4222 = vadd.f32 %v4220, %v4221
    %v4223 = vsel %vm1602, %v4143, 0.0
    %v4224 = vadd.f32 %v4222, %v4223
    %v4225 = vsel %vm1602, %v4144, 0.0
    %v4226 = vadd.f32 %v4224, %v4225
    %v4227 = vsel %vm1602, %v4145, 0.0
    %v4228 = vadd.f32 %v4226, %v4227
    %v4229 = vsel %vm1602, %v4146, 0.0
    %v4230 = vadd.f32 %v4228, %v4229
    %v4231 = vsel %vm1602, %v4147, 0.0
    %v4232 = vadd.f32 %v4230, %v4231
    %v4233 = vsel %vm1602, %v4148, 0.0
    %v4234 = vadd.f32 %v4232, %v4233
    %v4235 = vsel %vm1602, %v4149, 0.0
    %v4236 = vadd.f32 %v4234, %v4235
    %v4237 = vsel %vm1602, %v4150, 0.0
    %v4238 = vadd.f32 %v4236, %v4237
    %v4239 = vsel %vm1602, %v4151, 0.0
    %v4240 = vadd.f32 %v4238, %v4239
    %v4241 = vsel %vm1602, %v4152, 0.0
    %v4242 = vadd.f32 %v4240, %v4241
    %v4243 = vsel %vm1602, %v4153, 0.0
    %v4244 = vadd.f32 %v4242, %v4243
    %v4245 = vsel %vm1602, %v4154, 0.0
    %v4246 = vadd.f32 %v4244, %v4245
    %v4247 = vsel %vm1602, %v4155, 0.0
    %v4248 = vadd.f32 %v4246, %v4247
    %v4249 = vsel %vm1602, %v4156, 0.0
    %v4250 = vadd.f32 %v4248, %v4249
    %v4251 = vsel %vm1602, %v4157, 0.0
    %v4252 = vadd.f32 %v4250, %v4251
    %v4253 = vsel %vm1602, %v4158, 0.0
    %v4254 = vadd.f32 %v4252, %v4253
    %v4255 = vsel %vm1602, %v4159, 0.0
    %v4256 = vadd.f32 %v4254, %v4255
    %v4257 = vsel %vm1602, %v4160, 0.0
    %v4258 = vadd.f32 %v4256, %v4257
    %v4259 = vsel %vm1602, %v4161, 0.0
    %v4260 = vadd.f32 %v4258, %v4259
    %v4261 = vsel %vm1602, %v4162, 0.0
    %v4262 = vadd.f32 %v4260, %v4261
    %v4263 = vsel %vm1602, %v4163, 0.0
    %v4264 = vadd.f32 %v4262, %v4263
    %v4265 = vsel %vm1602, %v4164, 0.0
    %v4266 = vadd.f32 %v4264, %v4265
    %v4267 = vsel %vm1602, %v4165, 0.0
    %v4268 = vadd.f32 %v4266, %v4267
    %v4269 = vsel %vm1602, %v4166, 0.0
    %v4270 = vadd.f32 %v4268, %v4269
    %v4271 = vsel %vm1602, %v4167, 0.0
    %v4272 = vadd.f32 %v4270, %v4271
    %v4273 = vsel %vm1602, %v4168, 0.0
    %v4274 = vadd.f32 %v4272, %v4273
    %v4275 = vsel %vm1602, %v4169, 0.0
    %v4276 = vadd.f32 %v4274, %v4275
    %v4277 = vsel %vm1602, %v4170, 0.0
    %v4278 = vadd.f32 %v4276, %v4277
    %v4279 = vsel %vm1602, %v4171, 0.0
    %v4280 = vadd.f32 %v4278, %v4279
    %v4281 = vsel %vm1602, %v4172, 0.0
    %v4282 = vadd.f32 %v4280, %v4281
    %v4283 = vsel %vm1602, %v4173, 0.0
    %v4284 = vadd.f32 %v4282, %v4283
    %v4285 = vsel %vm1602, %v4174, 0.0
    %v4286 = vadd.f32 %v4284, %v4285
    %v4287 = vsel %vm1602, %v4175, 0.0
    %v4288 = vadd.f32 %v4286, %v4287
    %v4289 = vsel %vm1602, %v4176, 0.0
    %v4290 = vadd.f32 %v4288, %v4289
    %v4291 = vsel %vm1602, %v4177, 0.0
    %v4292 = vadd.f32 %v4290, %v4291
    %v4293 = vsel %vm1602, %v4178, 0.0
    %v4294 = vadd.f32 %v4292, %v4293
    %v4295 = vsel %vm1602, %v4179, 0.0
    %v4296 = vadd.f32 %v4294, %v4295
    %v4297 = vsel %vm1602, %v4180, 0.0
    %v4298 = vadd.f32 %v4296, %v4297
    %v4299 = vsel %vm1602, %v4181, 0.0
    %v4300 = vadd.f32 %v4298, %v4299
    %v4301 = vsel %vm1602, %v4182, 0.0
    %v4302 = vadd.f32 %v4300, %v4301
    %v4303 = vsel %vm1602, %v4183, 0.0
    %v4304 = vadd.f32 %v4302, %v4303
    %v4305 = vsel %vm1602, %v4184, 0.0
    %v4306 = vadd.f32 %v4304, %v4305
    %v4307 = vsel %vm1602, %v4185, 0.0
    %v4308 = vadd.f32 %v4306, %v4307
    %v4309 = vsel %vm1602, %v4186, 0.0
    %v4310 = vadd.f32 %v4308, %v4309
    %v4311 = vsel %vm1602, %v4187, 0.0
    %v4312 = vadd.f32 %v4310, %v4311
    %v4313 = vsel %vm1602, %v4188, 0.0
    %v4314 = vadd.f32 %v4312, %v4313
    %v4315 = vsel %vm1602, %v4189, 0.0
    %v4316 = vadd.f32 %v4314, %v4315
    %v4317 = vrot.slane %v4316, 4
    %v4318 = vadd.f32 %v4316, %v4317
    %v4319 = vrot.slane %v4318, 2
    %v4320 = vadd.f32 %v4318, %v4319
    %v4321 = vrot.slane %v4320, 1
    %v4322 = vadd.f32 %v4320, %v4321
    %v4323 = vmul.f32 %v4322, %v4124
    %v4324 = vmul.f32 %v4125, %v4125
    %v4325 = vsub.f32 %v4323, %v4324
    %v4326 = vld [vmem:[%s2] sm:$0x1]
    %v4327 = vadd.f32 %v4325, 1e-05
    %v4328 = vrsqrt.pop %v4327
    %v4329 = vmul.f32 %v4326, %v4328
    %v4330 = vld [vmem:[%s3] sm:$0x1]
    %v4331 = vmul.f32 %v4125, %v4329
    %v4332 = vsub.f32 %v4330, %v4331
    %v4334 = vlaneseq
    %v4335 = vshrl.u32 %v4334, 7
    %v4336 = vsub.s32 0, %v4335
    %v4337 = vrot.slane %v4329, %v4336
    %v4339 = vmul.f32 %v3673, %v4337
    %v4340 = vmul.f32 %v3678, %v4337
    %v4341 = vmul.f32 %v3683, %v4337
    %v4342 = vmul.f32 %v3688, %v4337
    %v4343 = vmul.f32 %v3693, %v4337
    %v4344 = vmul.f32 %v3698, %v4337
    %v4345 = vmul.f32 %v3703, %v4337
    %v4346 = vmul.f32 %v3708, %v4337
    %v4347 = vmul.f32 %v3713, %v4337
    %v4348 = vmul.f32 %v3718, %v4337
    %v4349 = vmul.f32 %v3723, %v4337
    %v4350 = vmul.f32 %v3728, %v4337
    %v4351 = vmul.f32 %v3733, %v4337
    %v4352 = vmul.f32 %v3738, %v4337
    %v4353 = vmul.f32 %v3743, %v4337
    %v4354 = vmul.f32 %v3748, %v4337
    %v4355 = vmul.f32 %v3753, %v4337
    %v4356 = vmul.f32 %v3758, %v4337
    %v4357 = vmul.f32 %v3763, %v4337
    %v4358 = vmul.f32 %v3768, %v4337
    %v4359 = vmul.f32 %v3773, %v4337
    %v4360 = vmul.f32 %v3778, %v4337
    %v4361 = vmul.f32 %v3783, %v4337
    %v4362 = vmul.f32 %v3788, %v4337
    %v4363 = vmul.f32 %v3793, %v4337
    %v4364 = vmul.f32 %v3798, %v4337
    %v4365 = vmul.f32 %v3803, %v4337
    %v4366 = vmul.f32 %v3808, %v4337
    %v4367 = vmul.f32 %v3813, %v4337
    %v4368 = vmul.f32 %v3818, %v4337
    %v4369 = vmul.f32 %v3823, %v4337
    %v4370 = vmul.f32 %v3828, %v4337
    %v4371 = vmul.f32 %v3833, %v4337
    %v4372 = vmul.f32 %v3838, %v4337
    %v4373 = vmul.f32 %v3843, %v4337
    %v4374 = vmul.f32 %v3848, %v4337
    %v4375 = vmul.f32 %v3853, %v4337
    %v4376 = vmul.f32 %v3858, %v4337
    %v4377 = vmul.f32 %v3863, %v4337
    %v4378 = vmul.f32 %v3868, %v4337
    %v4379 = vmul.f32 %v3873, %v4337
    %v4380 = vmul.f32 %v3878, %v4337
    %v4381 = vmul.f32 %v3883, %v4337
    %v4382 = vmul.f32 %v3888, %v4337
    %v4383 = vmul.f32 %v3893, %v4337
    %v4384 = vmul.f32 %v3898, %v4337
    %v4385 = vmul.f32 %v3903, %v4337
    %v4386 = vmul.f32 %v3908, %v4337
    %v4387 = vmul.f32 %v3913, %v4337
    %v4388 = vmul.f32 %v3918, %v4337
    %v4389 = vmul.f32 %v3923, %v4337
    %v4390 = vmul.f32 %v3928, %v4337
    %v4391 = vmul.f32 %v3933, %v4337
    %v4392 = vmul.f32 %v3938, %v4337
    %v4393 = vmul.f32 %v3943, %v4337
    %v4394 = vmul.f32 %v3948, %v4337
    %v4395 = vmul.f32 %v3953, %v4337
    %v4396 = vmul.f32 %v3958, %v4337
    %v4397 = vmul.f32 %v3963, %v4337
    %v4398 = vmul.f32 %v3968, %v4337
    %v4399 = vmul.f32 %v3973, %v4337
    %v4400 = vmul.f32 %v3978, %v4337
    %v4401 = vmul.f32 %v3983, %v4337
    %v4402 = vmul.f32 %v3988, %v4337
    %v4404 = vlaneseq
    %v4405 = vshrl.u32 %v4404, 7
    %v4406 = vsub.s32 0, %v4405
    %v4407 = vrot.slane %v4332, %v4406
    %v4409 = vadd.f32 %v4339, %v4407
    %v4410 = vadd.f32 %v4340, %v4407
    %v4411 = vadd.f32 %v4341, %v4407
    %v4412 = vadd.f32 %v4342, %v4407
    %v4413 = vadd.f32 %v4343, %v4407
    %v4414 = vadd.f32 %v4344, %v4407
    %v4415 = vadd.f32 %v4345, %v4407
    %v4416 = vadd.f32 %v4346, %v4407
    %v4417 = vadd.f32 %v4347, %v4407
    %v4418 = vadd.f32 %v4348, %v4407
    %v4419 = vadd.f32 %v4349, %v4407
    %v4420 = vadd.f32 %v4350, %v4407
    %v4421 = vadd.f32 %v4351, %v4407
    %v4422 = vadd.f32 %v4352, %v4407
    %v4423 = vadd.f32 %v4353, %v4407
    %v4424 = vadd.f32 %v4354, %v4407
    %v4425 = vadd.f32 %v4355, %v4407
    %v4426 = vadd.f32 %v4356, %v4407
    %v4427 = vadd.f32 %v4357, %v4407
    %v4428 = vadd.f32 %v4358, %v4407
    %v4429 = vadd.f32 %v4359, %v4407
    %v4430 = vadd.f32 %v4360, %v4407
    %v4431 = vadd.f32 %v4361, %v4407
    %v4432 = vadd.f32 %v4362, %v4407
    %v4433 = vadd.f32 %v4363, %v4407
    %v4434 = vadd.f32 %v4364, %v4407
    %v4435 = vadd.f32 %v4365, %v4407
    %v4436 = vadd.f32 %v4366, %v4407
    %v4437 = vadd.f32 %v4367, %v4407
    %v4438 = vadd.f32 %v4368, %v4407
    %v4439 = vadd.f32 %v4369, %v4407
    %v4440 = vadd.f32 %v4370, %v4407
    %v4441 = vadd.f32 %v4371, %v4407
    %v4442 = vadd.f32 %v4372, %v4407
    %v4443 = vadd.f32 %v4373, %v4407
    %v4444 = vadd.f32 %v4374, %v4407
    %v4445 = vadd.f32 %v4375, %v4407
    %v4446 = vadd.f32 %v4376, %v4407
    %v4447 = vadd.f32 %v4377, %v4407
    %v4448 = vadd.f32 %v4378, %v4407
    %v4449 = vadd.f32 %v4379, %v4407
    %v4450 = vadd.f32 %v4380, %v4407
    %v4451 = vadd.f32 %v4381, %v4407
    %v4452 = vadd.f32 %v4382, %v4407
    %v4453 = vadd.f32 %v4383, %v4407
    %v4454 = vadd.f32 %v4384, %v4407
    %v4455 = vadd.f32 %v4385, %v4407
    %v4456 = vadd.f32 %v4386, %v4407
    %v4457 = vadd.f32 %v4387, %v4407
    %v4458 = vadd.f32 %v4388, %v4407
    %v4459 = vadd.f32 %v4389, %v4407
    %v4460 = vadd.f32 %v4390, %v4407
    %v4461 = vadd.f32 %v4391, %v4407
    %v4462 = vadd.f32 %v4392, %v4407
    %v4463 = vadd.f32 %v4393, %v4407
    %v4464 = vadd.f32 %v4394, %v4407
    %v4465 = vadd.f32 %v4395, %v4407
    %v4466 = vadd.f32 %v4396, %v4407
    %v4467 = vadd.f32 %v4397, %v4407
    %v4468 = vadd.f32 %v4398, %v4407
    %v4469 = vadd.f32 %v4399, %v4407
    %v4470 = vadd.f32 %v4400, %v4407
    %v4471 = vadd.f32 %v4401, %v4407
    %v4472 = vadd.f32 %v4402, %v4407
    %vm4473 = vcmp.gt.f32.partialorder %v4409, 0.0
    %vm4474 = vcmp.gt.f32.partialorder %v4410, 0.0
    %vm4475 = vcmp.gt.f32.partialorder %v4411, 0.0
    %vm4476 = vcmp.gt.f32.partialorder %v4412, 0.0
    %vm4477 = vcmp.gt.f32.partialorder %v4413, 0.0
    %vm4478 = vcmp.gt.f32.partialorder %v4414, 0.0
    %vm4479 = vcmp.gt.f32.partialorder %v4415, 0.0
    %vm4480 = vcmp.gt.f32.partialorder %v4416, 0.0
    %vm4481 = vcmp.gt.f32.partialorder %v4417, 0.0
    %vm4482 = vcmp.gt.f32.partialorder %v4418, 0.0
    %vm4483 = vcmp.gt.f32.partialorder %v4419, 0.0
    %vm4484 = vcmp.gt.f32.partialorder %v4420, 0.0
    %vm4485 = vcmp.gt.f32.partialorder %v4421, 0.0
    %vm4486 = vcmp.gt.f32.partialorder %v4422, 0.0
    %vm4487 = vcmp.gt.f32.partialorder %v4423, 0.0
    %vm4488 = vcmp.gt.f32.partialorder %v4424, 0.0
    %vm4489 = vcmp.gt.f32.partialorder %v4425, 0.0
    %vm4490 = vcmp.gt.f32.partialorder %v4426, 0.0
    %vm4491 = vcmp.gt.f32.partialorder %v4427, 0.0
    %vm4492 = vcmp.gt.f32.partialorder %v4428, 0.0
    %vm4493 = vcmp.gt.f32.partialorder %v4429, 0.0
    %vm4494 = vcmp.gt.f32.partialorder %v4430, 0.0
    %vm4495 = vcmp.gt.f32.partialorder %v4431, 0.0
    %vm4496 = vcmp.gt.f32.partialorder %v4432, 0.0
    %vm4497 = vcmp.gt.f32.partialorder %v4433, 0.0
    %vm4498 = vcmp.gt.f32.partialorder %v4434, 0.0
    %vm4499 = vcmp.gt.f32.partialorder %v4435, 0.0
    %vm4500 = vcmp.gt.f32.partialorder %v4436, 0.0
    %vm4501 = vcmp.gt.f32.partialorder %v4437, 0.0
    %vm4502 = vcmp.gt.f32.partialorder %v4438, 0.0
    %vm4503 = vcmp.gt.f32.partialorder %v4439, 0.0
    %vm4504 = vcmp.gt.f32.partialorder %v4440, 0.0
    %vm4505 = vcmp.gt.f32.partialorder %v4441, 0.0
    %vm4506 = vcmp.gt.f32.partialorder %v4442, 0.0
    %vm4507 = vcmp.gt.f32.partialorder %v4443, 0.0
    %vm4508 = vcmp.gt.f32.partialorder %v4444, 0.0
    %vm4509 = vcmp.gt.f32.partialorder %v4445, 0.0
    %vm4510 = vcmp.gt.f32.partialorder %v4446, 0.0
    %vm4511 = vcmp.gt.f32.partialorder %v4447, 0.0
    %vm4512 = vcmp.gt.f32.partialorder %v4448, 0.0
    %vm4513 = vcmp.gt.f32.partialorder %v4449, 0.0
    %vm4514 = vcmp.gt.f32.partialorder %v4450, 0.0
    %vm4515 = vcmp.gt.f32.partialorder %v4451, 0.0
    %vm4516 = vcmp.gt.f32.partialorder %v4452, 0.0
    %vm4517 = vcmp.gt.f32.partialorder %v4453, 0.0
    %vm4518 = vcmp.gt.f32.partialorder %v4454, 0.0
    %vm4519 = vcmp.gt.f32.partialorder %v4455, 0.0
    %vm4520 = vcmp.gt.f32.partialorder %v4456, 0.0
    %vm4521 = vcmp.gt.f32.partialorder %v4457, 0.0
    %vm4522 = vcmp.gt.f32.partialorder %v4458, 0.0
    %vm4523 = vcmp.gt.f32.partialorder %v4459, 0.0
    %vm4524 = vcmp.gt.f32.partialorder %v4460, 0.0
    %vm4525 = vcmp.gt.f32.partialorder %v4461, 0.0
    %vm4526 = vcmp.gt.f32.partialorder %v4462, 0.0
    %vm4527 = vcmp.gt.f32.partialorder %v4463, 0.0
    %vm4528 = vcmp.gt.f32.partialorder %v4464, 0.0
    %vm4529 = vcmp.gt.f32.partialorder %v4465, 0.0
    %vm4530 = vcmp.gt.f32.partialorder %v4466, 0.0
    %vm4531 = vcmp.gt.f32.partialorder %v4467, 0.0
    %vm4532 = vcmp.gt.f32.partialorder %v4468, 0.0
    %vm4533 = vcmp.gt.f32.partialorder %v4469, 0.0
    %vm4534 = vcmp.gt.f32.partialorder %v4470, 0.0
    %vm4535 = vcmp.gt.f32.partialorder %v4471, 0.0
    %vm4536 = vcmp.gt.f32.partialorder %v4472, 0.0
    %v4537 = vmul.f32 %v4409, 0.01
    %v4538 = vmul.f32 %v4410, 0.01
    %v4539 = vmul.f32 %v4411, 0.01
    %v4540 = vmul.f32 %v4412, 0.01
    %v4541 = vmul.f32 %v4413, 0.01
    %v4542 = vmul.f32 %v4414, 0.01
    %v4543 = vmul.f32 %v4415, 0.01
    %v4544 = vmul.f32 %v4416, 0.01
    %v4545 = vmul.f32 %v4417, 0.01
    %v4546 = vmul.f32 %v4418, 0.01
    %v4547 = vmul.f32 %v4419, 0.01
    %v4548 = vmul.f32 %v4420, 0.01
    %v4549 = vmul.f32 %v4421, 0.01
    %v4550 = vmul.f32 %v4422, 0.01
    %v4551 = vmul.f32 %v4423, 0.01
    %v4552 = vmul.f32 %v4424, 0.01
    %v4553 = vmul.f32 %v4425, 0.01
    %v4554 = vmul.f32 %v4426, 0.01
    %v4555 = vmul.f32 %v4427, 0.01
    %v4556 = vmul.f32 %v4428, 0.01
    %v4557 = vmul.f32 %v4429, 0.01
    %v4558 = vmul.f32 %v4430, 0.01
    %v4559 = vmul.f32 %v4431, 0.01
    %v4560 = vmul.f32 %v4432, 0.01
    %v4561 = vmul.f32 %v4433, 0.01
    %v4562 = vmul.f32 %v4434, 0.01
    %v4563 = vmul.f32 %v4435, 0.01
    %v4564 = vmul.f32 %v4436, 0.01
    %v4565 = vmul.f32 %v4437, 0.01
    %v4566 = vmul.f32 %v4438, 0.01
    %v4567 = vmul.f32 %v4439, 0.01
    %v4568 = vmul.f32 %v4440, 0.01
    %v4569 = vmul.f32 %v4441, 0.01
    %v4570 = vmul.f32 %v4442, 0.01
    %v4571 = vmul.f32 %v4443, 0.01
    %v4572 = vmul.f32 %v4444, 0.01
    %v4573 = vmul.f32 %v4445, 0.01
    %v4574 = vmul.f32 %v4446, 0.01
    %v4575 = vmul.f32 %v4447, 0.01
    %v4576 = vmul.f32 %v4448, 0.01
    %v4577 = vmul.f32 %v4449, 0.01
    %v4578 = vmul.f32 %v4450, 0.01
    %v4579 = vmul.f32 %v4451, 0.01
    %v4580 = vmul.f32 %v4452, 0.01
    %v4581 = vmul.f32 %v4453, 0.01
    %v4582 = vmul.f32 %v4454, 0.01
    %v4583 = vmul.f32 %v4455, 0.01
    %v4584 = vmul.f32 %v4456, 0.01
    %v4585 = vmul.f32 %v4457, 0.01
    %v4586 = vmul.f32 %v4458, 0.01
    %v4587 = vmul.f32 %v4459, 0.01
    %v4588 = vmul.f32 %v4460, 0.01
    %v4589 = vmul.f32 %v4461, 0.01
    %v4590 = vmul.f32 %v4462, 0.01
    %v4591 = vmul.f32 %v4463, 0.01
    %v4592 = vmul.f32 %v4464, 0.01
    %v4593 = vmul.f32 %v4465, 0.01
    %v4594 = vmul.f32 %v4466, 0.01
    %v4595 = vmul.f32 %v4467, 0.01
    %v4596 = vmul.f32 %v4468, 0.01
    %v4597 = vmul.f32 %v4469, 0.01
    %v4598 = vmul.f32 %v4470, 0.01
    %v4599 = vmul.f32 %v4471, 0.01
    %v4600 = vmul.f32 %v4472, 0.01
    %v4601 = vsel %vm4473, %v4409, %v4537
    %v4602 = vsel %vm4474, %v4410, %v4538
    %v4603 = vsel %vm4475, %v4411, %v4539
    %v4604 = vsel %vm4476, %v4412, %v4540
    %v4605 = vsel %vm4477, %v4413, %v4541
    %v4606 = vsel %vm4478, %v4414, %v4542
    %v4607 = vsel %vm4479, %v4415, %v4543
    %v4608 = vsel %vm4480, %v4416, %v4544
    %v4609 = vsel %vm4481, %v4417, %v4545
    %v4610 = vsel %vm4482, %v4418, %v4546
    %v4611 = vsel %vm4483, %v4419, %v4547
    %v4612 = vsel %vm4484, %v4420, %v4548
    %v4613 = vsel %vm4485, %v4421, %v4549
    %v4614 = vsel %vm4486, %v4422, %v4550
    %v4615 = vsel %vm4487, %v4423, %v4551
    %v4616 = vsel %vm4488, %v4424, %v4552
    %v4617 = vsel %vm4489, %v4425, %v4553
    %v4618 = vsel %vm4490, %v4426, %v4554
    %v4619 = vsel %vm4491, %v4427, %v4555
    %v4620 = vsel %vm4492, %v4428, %v4556
    %v4621 = vsel %vm4493, %v4429, %v4557
    %v4622 = vsel %vm4494, %v4430, %v4558
    %v4623 = vsel %vm4495, %v4431, %v4559
    %v4624 = vsel %vm4496, %v4432, %v4560
    %v4625 = vsel %vm4497, %v4433, %v4561
    %v4626 = vsel %vm4498, %v4434, %v4562
    %v4627 = vsel %vm4499, %v4435, %v4563
    %v4628 = vsel %vm4500, %v4436, %v4564
    %v4629 = vsel %vm4501, %v4437, %v4565
    %v4630 = vsel %vm4502, %v4438, %v4566
    %v4631 = vsel %vm4503, %v4439, %v4567
    %v4632 = vsel %vm4504, %v4440, %v4568
    %v4633 = vsel %vm4505, %v4441, %v4569
    %v4634 = vsel %vm4506, %v4442, %v4570
    %v4635 = vsel %vm4507, %v4443, %v4571
    %v4636 = vsel %vm4508, %v4444, %v4572
    %v4637 = vsel %vm4509, %v4445, %v4573
    %v4638 = vsel %vm4510, %v4446, %v4574
    %v4639 = vsel %vm4511, %v4447, %v4575
    %v4640 = vsel %vm4512, %v4448, %v4576
    %v4641 = vsel %vm4513, %v4449, %v4577
    %v4642 = vsel %vm4514, %v4450, %v4578
    %v4643 = vsel %vm4515, %v4451, %v4579
    %v4644 = vsel %vm4516, %v4452, %v4580
    %v4645 = vsel %vm4517, %v4453, %v4581
    %v4646 = vsel %vm4518, %v4454, %v4582
    %v4647 = vsel %vm4519, %v4455, %v4583
    %v4648 = vsel %vm4520, %v4456, %v4584
    %v4649 = vsel %vm4521, %v4457, %v4585
    %v4650 = vsel %vm4522, %v4458, %v4586
    %v4651 = vsel %vm4523, %v4459, %v4587
    %v4652 = vsel %vm4524, %v4460, %v4588
    %v4653 = vsel %vm4525, %v4461, %v4589
    %v4654 = vsel %vm4526, %v4462, %v4590
    %v4655 = vsel %vm4527, %v4463, %v4591
    %v4656 = vsel %vm4528, %v4464, %v4592
    %v4657 = vsel %vm4529, %v4465, %v4593
    %v4658 = vsel %vm4530, %v4466, %v4594
    %v4659 = vsel %vm4531, %v4467, %v4595
    %v4660 = vsel %vm4532, %v4468, %v4596
    %v4661 = vsel %vm4533, %v4469, %v4597
    %v4662 = vsel %vm4534, %v4470, %v4598
    %v4663 = vsel %vm4535, %v4471, %v4599
    %v4664 = vsel %vm4536, %v4472, %v4600
    %4665 = vxpose.xlu0.b32.start [1/16] %v4601, 128
    %4666 = vxpose.xlu0.b32.cont [2/16] %v4602, 128
    %4667 = vxpose.xlu0.b32.cont [3/16] %v4603, 128
    %4668 = vxpose.xlu0.b32.cont [4/16] %v4604, 128
    %4669 = vxpose.xlu0.b32.cont [5/16] %v4605, 128
    %4670 = vxpose.xlu0.b32.cont [6/16] %v4606, 128
    %4671 = vxpose.xlu0.b32.cont [7/16] %v4607, 128
    %4672 = vxpose.xlu0.b32.cont [8/16] %v4608, 128
    %4673 = vxpose.xlu0.b32.cont [9/16] %v4609, 128
    %4674 = vxpose.xlu0.b32.cont [10/16] %v4610, 128
    %4675 = vxpose.xlu0.b32.cont [11/16] %v4611, 128
    %4676 = vxpose.xlu0.b32.cont [12/16] %v4612, 128
    %4677 = vxpose.xlu0.b32.cont [13/16] %v4613, 128
    %4678 = vxpose.xlu0.b32.cont [14/16] %v4614, 128
    %4679 = vxpose.xlu0.b32.cont [15/16] %v4615, 128
    %4680 = vxpose.xlu0.b32.end [16/16] %v4616, 128
    %v4681 = vpop.trf.xlu0
    %v4682 = vpop.trf.xlu0
    %v4683 = vpop.trf.xlu0
    %v4684 = vpop.trf.xlu0
    %v4685 = vpop.trf.xlu0
    %v4686 = vpop.trf.xlu0
    %v4687 = vpop.trf.xlu0
    %v4688 = vpop.trf.xlu0
    %v4689 = vpop.trf.xlu0
    %v4690 = vpop.trf.xlu0
    %v4691 = vpop.trf.xlu0
    %v4692 = vpop.trf.xlu0
    %v4693 = vpop.trf.xlu0
    %v4694 = vpop.trf.xlu0
    %v4695 = vpop.trf.xlu0
    %v4696 = vpop.trf.xlu0
    %4697 = vxpose.xlu0.b32.start [1/16] %v4617, 128
    %4698 = vxpose.xlu0.b32.cont [2/16] %v4618, 128
    %4699 = vxpose.xlu0.b32.cont [3/16] %v4619, 128
    %4700 = vxpose.xlu0.b32.cont [4/16] %v4620, 128
    %4701 = vxpose.xlu0.b32.cont [5/16] %v4621, 128
    %4702 = vxpose.xlu0.b32.cont [6/16] %v4622, 128
    %4703 = vxpose.xlu0.b32.cont [7/16] %v4623, 128
    %4704 = vxpose.xlu0.b32.cont [8/16] %v4624, 128
    %4705 = vxpose.xlu0.b32.cont [9/16] %v4625, 128
    %4706 = vxpose.xlu0.b32.cont [10/16] %v4626, 128
    %4707 = vxpose.xlu0.b32.cont [11/16] %v4627, 128
    %4708 = vxpose.xlu0.b32.cont [12/16] %v4628, 128
    %4709 = vxpose.xlu0.b32.cont [13/16] %v4629, 128
    %4710 = vxpose.xlu0.b32.cont [14/16] %v4630, 128
    %4711 = vxpose.xlu0.b32.cont [15/16] %v4631, 128
    %4712 = vxpose.xlu0.b32.end [16/16] %v4632, 128
    %v4713 = vpop.trf.xlu0
    %v4714 = vpop.trf.xlu0
    %v4715 = vpop.trf.xlu0
    %v4716 = vpop.trf.xlu0
    %v4717 = vpop.trf.xlu0
    %v4718 = vpop.trf.xlu0
    %v4719 = vpop.trf.xlu0
    %v4720 = vpop.trf.xlu0
    %v4721 = vpop.trf.xlu0
    %v4722 = vpop.trf.xlu0
    %v4723 = vpop.trf.xlu0
    %v4724 = vpop.trf.xlu0
    %v4725 = vpop.trf.xlu0
    %v4726 = vpop.trf.xlu0
    %v4727 = vpop.trf.xlu0
    %v4728 = vpop.trf.xlu0
    %4729 = vxpose.xlu0.b32.start [1/16] %v4633, 128
    %4730 = vxpose.xlu0.b32.cont [2/16] %v4634, 128
    %4731 = vxpose.xlu0.b32.cont [3/16] %v4635, 128
    %4732 = vxpose.xlu0.b32.cont [4/16] %v4636, 128
    %4733 = vxpose.xlu0.b32.cont [5/16] %v4637, 128
    %4734 = vxpose.xlu0.b32.cont [6/16] %v4638, 128
    %4735 = vxpose.xlu0.b32.cont [7/16] %v4639, 128
    %4736 = vxpose.xlu0.b32.cont [8/16] %v4640, 128
    %4737 = vxpose.xlu0.b32.cont [9/16] %v4641, 128
    %4738 = vxpose.xlu0.b32.cont [10/16] %v4642, 128
    %4739 = vxpose.xlu0.b32.cont [11/16] %v4643, 128
    %4740 = vxpose.xlu0.b32.cont [12/16] %v4644, 128
    %4741 = vxpose.xlu0.b32.cont [13/16] %v4645, 128
    %4742 = vxpose.xlu0.b32.cont [14/16] %v4646, 128
    %4743 = vxpose.xlu0.b32.cont [15/16] %v4647, 128
    %4744 = vxpose.xlu0.b32.end [16/16] %v4648, 128
    %v4745 = vpop.trf.xlu0
    %v4746 = vpop.trf.xlu0
    %v4747 = vpop.trf.xlu0
    %v4748 = vpop.trf.xlu0
    %v4749 = vpop.trf.xlu0
    %v4750 = vpop.trf.xlu0
    %v4751 = vpop.trf.xlu0
    %v4752 = vpop.trf.xlu0
    %v4753 = vpop.trf.xlu0
    %v4754 = vpop.trf.xlu0
    %v4755 = vpop.trf.xlu0
    %v4756 = vpop.trf.xlu0
    %v4757 = vpop.trf.xlu0
    %v4758 = vpop.trf.xlu0
    %v4759 = vpop.trf.xlu0
    %v4760 = vpop.trf.xlu0
    %4761 = vxpose.xlu0.b32.start [1/16] %v4649, 128
    %4762 = vxpose.xlu0.b32.cont [2/16] %v4650, 128
    %4763 = vxpose.xlu0.b32.cont [3/16] %v4651, 128
    %4764 = vxpose.xlu0.b32.cont [4/16] %v4652, 128
    %4765 = vxpose.xlu0.b32.cont [5/16] %v4653, 128
    %4766 = vxpose.xlu0.b32.cont [6/16] %v4654, 128
    %4767 = vxpose.xlu0.b32.cont [7/16] %v4655, 128
    %4768 = vxpose.xlu0.b32.cont [8/16] %v4656, 128
    %4769 = vxpose.xlu0.b32.cont [9/16] %v4657, 128
    %4770 = vxpose.xlu0.b32.cont [10/16] %v4658, 128
    %4771 = vxpose.xlu0.b32.cont [11/16] %v4659, 128
    %4772 = vxpose.xlu0.b32.cont [12/16] %v4660, 128
    %4773 = vxpose.xlu0.b32.cont [13/16] %v4661, 128
    %4774 = vxpose.xlu0.b32.cont [14/16] %v4662, 128
    %4775 = vxpose.xlu0.b32.cont [15/16] %v4663, 128
    %4776 = vxpose.xlu0.b32.end [16/16] %v4664, 128
    %v4777 = vpop.trf.xlu0
    %v4778 = vpop.trf.xlu0
    %v4779 = vpop.trf.xlu0
    %v4780 = vpop.trf.xlu0
    %v4781 = vpop.trf.xlu0
    %v4782 = vpop.trf.xlu0
    %v4783 = vpop.trf.xlu0
    %v4784 = vpop.trf.xlu0
    %v4785 = vpop.trf.xlu0
    %v4786 = vpop.trf.xlu0
    %v4787 = vpop.trf.xlu0
    %v4788 = vpop.trf.xlu0
    %v4789 = vpop.trf.xlu0
    %v4790 = vpop.trf.xlu0
    %v4791 = vpop.trf.xlu0
    %v4792 = vpop.trf.xlu0
    %4793 = vst [vmem:[#allocation3] sm:$0xff] %v4681
    %4794 = vst [vmem:[#allocation3 + $0x8] sm:$0xff] %v4713
    %s4795 = scalar_lea.vmem [#allocation3], 16
    %4796 = vst [vmem:[%s4795] sm:$0xff] %v4745
    %4797 = vst [vmem:[%s4795 + $0x8] sm:$0xff] %v4777
    // Predicated region
    $region18: #{tpu_custom_call.1} parent=1 // pred_check
      _
    $region19: #{tpu_custom_call.1} parent=1 // pred_check_branch
      %4799 = sbr.rel (0) target = $region21
    $region20: #{tpu_custom_call.1} parent=1 // pred_region
      %s4801 = ssub.s32 512, 512
      %4802 = vsyncadd [#allocation4], %s4801
      %s4803 = sshll.u32 [#allocation3], 4
      %s4804 = int_to_ptr.vmem [resolvable:$true] %s4803
      %4809 = dma.vmem_to_hbm [thread:$0]  %s4804, 512, %s4, [#allocation4], 256, 256, 16
    $region21: #{tpu_custom_call.1} parent=1 // pred_fallthru
      _
    // Predicated region
    $region22: #{tpu_custom_call.1} parent=1 // pred_check
      _
    $region23: #{tpu_custom_call.1} parent=1 // pred_check_branch
      %4811 = sbr.rel (0) target = $region25
    $region24: #{tpu_custom_call.1} parent=1 // pred_region
      %4812 = dma.done [#allocation4], 512
    $region25: #{tpu_custom_call.1} parent=1 // pred_fallthru
      _
    %4813 = vsyncpa [#allocation4], 1

</llo_original>
